<compile_context>
chip_gen: v7x
topology: tpu7x:2x2x1
jax: 0.10.0
libtpu: 0.0.40
codegen_flags: <defaults>
</compile_context>

<pallas_src>
import functools
import math

import jax
import jax.numpy as jnp
from jax.experimental import pallas as pl
from jax.experimental.pallas import tpu as pltpu


# ---------------------------------------------------------------------------
# Generation-aware VMEM budgets (v5e/v6e: 128 MiB, v7x: 64 MiB physical).
# ---------------------------------------------------------------------------
def _vmem_capacity_bytes():
    try:
        return int(pltpu.get_tpu_info().vmem_capacity_bytes)
    except Exception:
        return 64 * 1024 * 1024  # conservative (v7x-sized) default


_VMEM_CAP = _vmem_capacity_bytes()
_VMEM_LIMIT_BYTES = min(int(_VMEM_CAP * 0.90), 120 * 1024 * 1024)
_FUSED_VMEM_BUDGET = int(_VMEM_LIMIT_BYTES * 0.85)
_TILED_VMEM_BUDGET = int(_VMEM_LIMIT_BYTES * 0.70)
# Lane-dense output tiles: bigger on 128-MiB parts, smaller on v7x (64 MiB).
_TN_CAP = 2048 if _VMEM_CAP >= 96 * 1024 * 1024 else 1024

_ACT_DTYPE = jnp.bfloat16   # activations streamed as bf16 (f32 MXU accumulate)
_SUBLANE = 16               # bf16 sublane packing


def _round_up(x, m):
    return ((x + m - 1) // m) * m


def _pad2d(a, rows, cols):
    r, c = a.shape
    if r == rows and c == cols:
        return a
    return jnp.pad(a, ((0, rows - r), (0, cols - c)))


def _pick_tm(M, target=256, cap=512):
    """Batch tile: minimize padding, stay a multiple of the bf16 sublane pack."""
    M = max(int(M), 1)
    n_tiles = max(1, -(-M // target))
    tm = _round_up(-(-M // n_tiles), _SUBLANE)
    return min(tm, cap)


# ---------------------------------------------------------------------------
# Fused 3-layer MLP kernel (main path): one grid axis over batch tiles,
# all weights VMEM-resident, intermediates never touch HBM.
# ---------------------------------------------------------------------------
def _fused_mlp_kernel(x_ref, w1_ref, b1_ref, w2_ref, b2_ref, w3_ref, b3_ref, o_ref):
    w_dtype = w1_ref.dtype  # bf16 -> native MXU path, f32 accumulation
    h = jnp.dot(x_ref[...], w1_ref[...], preferred_element_type=jnp.float32)
    h = jnp.maximum(h + b1_ref[...], 0.0)
    h = jnp.dot(h.astype(w_dtype), w2_ref[...], preferred_element_type=jnp.float32)
    h = jnp.maximum(h + b2_ref[...], 0.0)
    h = jnp.dot(h.astype(w_dtype), w3_ref[...], preferred_element_type=jnp.float32)
    o_ref[...] = (h + b3_ref[...]).astype(o_ref.dtype)


def fused_mlp_fits_vmem(M, K1, H1, H2, N, w_itemsize):
    tm = _pick_tm(M)
    K1p, H1p, H2p, Np = (_round_up(d, 128) for d in (K1, H1, H2, N))
    weights = (K1p * H1p + H1p * H2p + H2p * Np) * w_itemsize   # Buffered(1): once
    biases = (H1p + H2p + Np) * 4
    io = 2 * tm * (K1p * 2 + Np * 4)            # double-buffered bf16 x + f32 out
    inter = 2 * tm * (H1p + H2p) * 4            # f32 temporaries / headroom
    return weights + biases + io + inter <= _FUSED_VMEM_BUDGET


def fused_mlp_pallas(x, w1, b1, w2, b2, w3, b3):
    M, K1 = x.shape
    H1, H2, N = w1.shape[1], w2.shape[1], w3.shape[1]

    tm = _pick_tm(M)
    Mp = _round_up(M, tm)
    # v7x has 2 TensorCores: make sure the parallel grid has >= 2 steps when the
    # batch tile allows it (negligible overhead on single-TC v5e/v6e).
    if Mp // tm == 1 and tm % (2 * _SUBLANE) == 0:
        tm //= 2
    grid_m = Mp // tm

    K1p, H1p, H2p, Np = (_round_up(d, 128) for d in (K1, H1, H2, N))

    xp = _pad2d(x.astype(_ACT_DTYPE), Mp, K1p)
    w1p = _pad2d(w1, K1p, H1p)
    b1p = _pad2d(b1.reshape(1, -1).astype(jnp.float32), 1, H1p)
    w2p = _pad2d(w2, H1p, H2p)
    b2p = _pad2d(b2.reshape(1, -1).astype(jnp.float32), 1, H2p)
    w3p = _pad2d(w3, H2p, Np)
    b3p = _pad2d(b3.reshape(1, -1).astype(jnp.float32), 1, Np)

    flops = 2 * Mp * (K1p * H1p + H1p * H2p + H2p * Np)
    bytes_accessed = (
        xp.size * xp.dtype.itemsize
        + sum(a.size * a.dtype.itemsize for a in (w1p, b1p, w2p, b2p, w3p, b3p))
        + Mp * Np * 4
    )

    row = lambda i: (i, 0)
    const = lambda i: (0, 0)

    def _specs(weight_mode):
        kw = {} if weight_mode is None else dict(pipeline_mode=weight_mode)
        return [
            pl.BlockSpec((tm, K1p), row),
            pl.BlockSpec((K1p, H1p), const, **kw),
            pl.BlockSpec((1, H1p), const, **kw),
            pl.BlockSpec((H1p, H2p), const, **kw),
            pl.BlockSpec((1, H2p), const, **kw),
            pl.BlockSpec((H2p, Np), const, **kw),
            pl.BlockSpec((1, Np), const, **kw),
        ]

    def _run(weight_mode):
        out = pl.pallas_call(
            _fused_mlp_kernel,
            out_shape=jax.ShapeDtypeStruct((Mp, Np), jnp.float32),
            grid_spec=pltpu.PrefetchScalarGridSpec(
                num_scalar_prefetch=0,
                grid=(grid_m,),
                in_specs=_specs(weight_mode),
                out_specs=pl.BlockSpec((tm, Np), row),
            ),
            compiler_params=pltpu.CompilerParams(
                dimension_semantics=("parallel",),
                vmem_limit_bytes=_VMEM_LIMIT_BYTES,
            ),
            cost_estimate=pl.CostEstimate(
                flops=flops, transcendentals=0, bytes_accessed=bytes_accessed),
        )(xp, w1p, b1p, w2p, b2p, w3p, b3p)
        return jax.block_until_ready(out)

    try:
        # Grid-invariant weights/biases: single-buffered (no pointless 2x VMEM).
        out = _run(pl.Buffered(1))
    except Exception:
        out = _run(None)
    return out[:M, :N]


# ---------------------------------------------------------------------------
# Per-layer tiled fallback (used when fused weights exceed the VMEM budget,
# e.g. the real hidden_size=6000 / hidden_size2=10000 model).
# ---------------------------------------------------------------------------
def _linear_kernel_nok(x_ref, w_ref, b_ref, o_ref, *, apply_relu):
    # Full-K contraction in a single dot: no accumulator scratch, no k axis.
    out = jnp.dot(x_ref[...], w_ref[...], preferred_element_type=jnp.float32)
    out = out + b_ref[...]
    if apply_relu:
        out = jnp.maximum(out, 0.0)
    o_ref[...] = out.astype(o_ref.dtype)


def _linear_kernel_ktiled(x_ref, w_ref, b_ref, o_ref, acc_ref, *, apply_relu):
    k = pl.program_id(2)

    @pl.when(k == 0)
    def _():
        acc_ref[...] = jnp.zeros_like(acc_ref)

    acc_ref[...] += jnp.dot(x_ref[...], w_ref[...],
                            preferred_element_type=jnp.float32)

    @pl.when(k == pl.num_programs(2) - 1)
    def _():
        out = acc_ref[...] + b_ref[...]
        if apply_relu:
            out = jnp.maximum(out, 0.0)
        o_ref[...] = out.astype(o_ref.dtype)


def linear_pallas(x, w, b, *, apply_relu, out_dtype=jnp.float32,
                  tm=None, tn=None, tk=None):
    """y = x @ w + b (optional ReLU). Pads to tile multiples, slices result."""
    M, K = x.shape
    K2, N = w.shape
    assert K == K2 and b.shape[-1] == N
    w_bytes = jnp.dtype(w.dtype).itemsize
    x_bytes = jnp.dtype(_ACT_DTYPE).itemsize

    if tm is None:
        tm = _pick_tm(M)
    if tn is None:
        tn = min(_TN_CAP, _round_up(N, 128))

    if tk is None:
        k_full = _round_up(K, 128)

        def fits(tk_, tn_):
            return (2 * (tm * tk_ * x_bytes + tk_ * tn_ * w_bytes + tm * tn_ * 4)
                    <= _TILED_VMEM_BUDGET)

        # Prefer full-K (single dot, no accumulator): shrink tn first.
        while tn > 128 and not fits(k_full, tn):
            tn = max(128, _round_up(tn // 2, 128))
        if fits(k_full, tn):
            tk = k_full
        else:
            tk = 2048
            while tk > 128 and not fits(tk, tn):
                tk //= 2

    Mp, Kp, Np = _round_up(M, tm), _round_up(K, tk), _round_up(N, tn)
    xp = _pad2d(x.astype(_ACT_DTYPE), Mp, Kp)
    wp = _pad2d(w, Kp, Np)
    bp = _pad2d(b.reshape(1, -1).astype(jnp.float32), 1, Np)
    kt = Kp // tk

    flops = 2 * Mp * Kp * Np
    bytes_accessed = (xp.size * x_bytes + wp.size * w_bytes
                      + bp.size * bp.dtype.itemsize
                      + Mp * Np * jnp.dtype(out_dtype).itemsize)
    cost = pl.CostEstimate(flops=flops, transcendentals=0,
                           bytes_accessed=bytes_accessed)

    if kt == 1:
        # Batch axis innermost: the large W block is invariant across the inner
        # sweep, so weights stream from HBM exactly once regardless of batch.
        out = pl.pallas_call(
            functools.partial(_linear_kernel_nok, apply_relu=apply_relu),
            out_shape=jax.ShapeDtypeStruct((Mp, Np), out_dtype),
            grid_spec=pltpu.PrefetchScalarGridSpec(
                num_scalar_prefetch=0,
                grid=(Np // tn, Mp // tm),
                in_specs=[
                    pl.BlockSpec((tm, Kp), lambda j, i: (i, 0)),
                    pl.BlockSpec((Kp, tn), lambda j, i: (0, j)),
                    pl.BlockSpec((1, tn), lambda j, i: (0, j)),
                ],
                out_specs=pl.BlockSpec((tm, tn), lambda j, i: (i, j)),
            ),
            compiler_params=pltpu.CompilerParams(
                dimension_semantics=("parallel", "parallel"),
                vmem_limit_bytes=_VMEM_LIMIT_BYTES,
            ),
            cost_estimate=cost,
        )(xp, wp, bp)
    else:
        out = pl.pallas_call(
            functools.partial(_linear_kernel_ktiled, apply_relu=apply_relu),
            out_shape=jax.ShapeDtypeStruct((Mp, Np), out_dtype),
            grid_spec=pltpu.PrefetchScalarGridSpec(
                num_scalar_prefetch=0,
                grid=(Mp // tm, Np // tn, kt),
                in_specs=[
                    pl.BlockSpec((tm, tk), lambda i, j, k: (i, k)),
                    pl.BlockSpec((tk, tn), lambda i, j, k: (k, j)),
                    pl.BlockSpec((1, tn), lambda i, j, k: (0, j)),  # k-invariant
                ],
                out_specs=pl.BlockSpec((tm, tn), lambda i, j, k: (i, j)),
                scratch_shapes=[pltpu.VMEM((tm, tn), jnp.float32)],
            ),
            compiler_params=pltpu.CompilerParams(
                dimension_semantics=("parallel", "parallel", "arbitrary"),
                vmem_limit_bytes=_VMEM_LIMIT_BYTES,
            ),
            cost_estimate=cost,
        )(xp, wp, bp)
    return out[:M, :N]


# ---------------------------------------------------------------------------
# Model wrapper
# ---------------------------------------------------------------------------
class NeuralNetPallas:
    """Pallas implementation of the PyTorch NeuralNet: l1 -> ReLU -> l2 -> ReLU -> l3."""

    def __init__(self, input_size, hidden_size, hidden_size2, num_classes, key,
                 param_dtype=jnp.bfloat16):
        self.param_dtype = jnp.dtype(param_dtype)
        k1, k2, k3, k4, k5, k6 = jax.random.split(key, 6)

        def init_linear(kw, kb, fan_in, fan_out):
            bound = 1.0 / math.sqrt(fan_in)
            # PyTorch-Linear-like uniform init; stored (in, out) so kernels do x @ W + b.
            w = jax.random.uniform(kw, (fan_in, fan_out), jnp.float32, -bound, bound)
            b = jax.random.uniform(kb, (fan_out,), jnp.float32, -bound, bound)
            # Weights are the HBM-bandwidth cost at small batch -> store in bf16.
            return w.astype(self.param_dtype), b

        self.w1, self.b1 = init_linear(k1, k2, input_size, hidden_size)
        self.w2, self.b2 = init_linear(k3, k4, hidden_size, hidden_size2)
        self.w3, self.b3 = init_linear(k5, k6, hidden_size2, num_classes)
        self.dims = (input_size, hidden_size, hidden_size2, num_classes)

    def __call__(self, x, force_tiled=False):
        K1, H1, H2, N = self.dims
        M = x.shape[0]
        if (not force_tiled
                and fused_mlp_fits_vmem(M, K1, H1, H2, N, self.param_dtype.itemsize)):
            try:
                # Main path: single fused pallas_call, weights VMEM-resident.
                return fused_mlp_pallas(x, self.w1, self.b1, self.w2, self.b2,
                                        self.w3, self.b3)
            except Exception:
                pass  # over-admitted by the heuristic -> fall back to tiled
        # Fallback for very large hidden sizes (e.g. 6000 / 10000):
        # per-layer tiled kernels, bf16 intermediates (no f32 HBM round trip).
        h = linear_pallas(x, self.w1, self.b1, apply_relu=True, out_dtype=jnp.bfloat16)
        h = linear_pallas(h, self.w2, self.b2, apply_relu=True, out_dtype=jnp.bfloat16)
        return linear_pallas(h, self.w3, self.b3, apply_relu=False,
                             out_dtype=jnp.float32)


def mlp_reference(x, model):
    """Pure-JAX reference with the same bf16-weight / f32-accumulate semantics."""
    dt = jnp.bfloat16

    def layer(h, w, b, relu):
        y = jnp.dot(h.astype(dt), w.astype(dt),
                    preferred_element_type=jnp.float32) + b
        return jnp.maximum(y, 0.0) if relu else y

    h = layer(x, model.w1, model.b1, True)
    h = layer(h, model.w2, model.b2, True)
    return layer(h, model.w3, model.b3, False)


if __name__ == "__main__":
    key = jax.random.PRNGKey(0)

    # Small, TPU-tile-friendly shapes (the spec's 6000/10000 hidden sizes and
    # arbitrary vocab/class counts are handled by padding + the tiled fallback).
    batch, input_size, hidden_size, hidden_size2, num_classes = 8, 256, 512, 512, 128
    kx, kp = jax.random.split(key)
    x = jax.random.normal(kx, (batch, input_size), dtype=jnp.float32)
    model = NeuralNetPallas(input_size, hidden_size, hidden_size2, num_classes, kp)
    ref = mlp_reference(x, model)

    # Main path: fused single-kernel MLP.
    out_fused = jax.block_until_ready(model(x))
    assert out_fused.shape == (batch, num_classes)
    assert jnp.allclose(out_fused, ref, atol=2e-2, rtol=2e-2)

    # Fallback path: per-layer tiled kernels (full-K, batch axis innermost).
    out_tiled = jax.block_until_ready(model(x, force_tiled=True))
    assert jnp.allclose(out_tiled, ref, atol=2e-2, rtol=2e-2)

    # K-accumulation kernel coverage (forced small tk).
    l1_ref = jnp.maximum(
        jnp.dot(x.astype(jnp.bfloat16), model.w1,
                preferred_element_type=jnp.float32) + model.b1, 0.0)
    l1_out = jax.block_until_ready(
        linear_pallas(x, model.w1, model.b1, apply_relu=True, tk=128))
    assert jnp.allclose(l1_out, l1_ref, atol=2e-2, rtol=2e-2)

    # Unaligned shapes exercise padding on every axis.
    b2_, in2, h1_, h2_, nc2 = 5, 250, 300, 200, 7
    kx2, kp2 = jax.random.split(kp)
    x2 = jax.random.normal(kx2, (b2_, in2), dtype=jnp.float32)
    model2 = NeuralNetPallas(in2, h1_, h2_, nc2, kp2)
    ref2 = mlp_reference(x2, model2)
    out2 = jax.block_until_ready(model2(x2))
    assert out2.shape == (b2_, nc2)
    assert jnp.allclose(out2, ref2, atol=2e-2, rtol=2e-2)

    print("KERNEL_OK")
</pallas_src>

<mosaic_0001>
module attributes {stable_mosaic.version = 11 : i64} {
  func.func @_fused_mlp_kernel(%arg0: i32, %arg1: memref<16x256xbf16, #tpu.memory_space<vmem>>, %arg2: memref<256x512xbf16, #tpu.memory_space<vmem>>, %arg3: memref<1x512xf32, #tpu.memory_space<vmem>>, %arg4: memref<512x512xbf16, #tpu.memory_space<vmem>>, %arg5: memref<1x512xf32, #tpu.memory_space<vmem>>, %arg6: memref<512x128xbf16, #tpu.memory_space<vmem>>, %arg7: memref<1x128xf32, #tpu.memory_space<vmem>>, %arg8: memref<16x128xf32, #tpu.memory_space<vmem>>) attributes {dimension_semantics = [#tpu.dimension_semantics<parallel>], iteration_bounds = array<i64: 1>, scalar_prefetch = 0 : i64, scratch_operands = 0 : i64, tpu.core_type = #tpu.core_type<tc>, window_params = [{transform_indices = @transform_0, window_bounds = array<i64: 16, 256>}, {pipeline_mode = #tpu.pipeline_mode<synchronous>, transform_indices = @transform_1, window_bounds = array<i64: 256, 512>}, {pipeline_mode = #tpu.pipeline_mode<synchronous>, transform_indices = @transform_2, window_bounds = array<i64: 1, 512>}, {pipeline_mode = #tpu.pipeline_mode<synchronous>, transform_indices = @transform_3, window_bounds = array<i64: 512, 512>}, {pipeline_mode = #tpu.pipeline_mode<synchronous>, transform_indices = @transform_4, window_bounds = array<i64: 1, 512>}, {pipeline_mode = #tpu.pipeline_mode<synchronous>, transform_indices = @transform_5, window_bounds = array<i64: 512, 128>}, {pipeline_mode = #tpu.pipeline_mode<synchronous>, transform_indices = @transform_6, window_bounds = array<i64: 1, 128>}, {transform_indices = @transform_7, window_bounds = array<i64: 16, 128>}]} {
    %c0 = arith.constant 0 : index
    %c0_0 = arith.constant 0 : index
    %0 = vector.load %arg1[%c0, %c0_0] : memref<16x256xbf16, #tpu.memory_space<vmem>>, vector<16x256xbf16>
    %c0_1 = arith.constant 0 : index
    %c0_2 = arith.constant 0 : index
    %1 = vector.load %arg2[%c0_1, %c0_2] : memref<256x512xbf16, #tpu.memory_space<vmem>>, vector<256x512xbf16>
    %cst = arith.constant dense<0.000000e+00> : vector<16x512xf32>
    %2 = tpu.matmul %0, %1, %cst {dimension_numbers = #tpu.dot_dimension_numbers<[1], [0], [0], [1], [0, 0, 1, 1], [], []>} : vector<16x256xbf16>, vector<256x512xbf16>, vector<16x512xf32> -> vector<16x512xf32>
    %c0_3 = arith.constant 0 : index
    %c0_4 = arith.constant 0 : index
    %3 = vector.load %arg3[%c0_3, %c0_4] : memref<1x512xf32, #tpu.memory_space<vmem>>, vector<1x512xf32>
    %4 = vector.broadcast %3 : vector<1x512xf32> to vector<16x512xf32>
    %5 = arith.addf %2, %4 : vector<16x512xf32>
    %cst_5 = arith.constant 0.000000e+00 : f32
    %6 = vector.broadcast %cst_5 : f32 to vector<16x512xf32>
    %7 = arith.maximumf %5, %6 : vector<16x512xf32>
    %8 = arith.truncf %7 : vector<16x512xf32> to vector<16x512xbf16>
    %c0_6 = arith.constant 0 : index
    %c0_7 = arith.constant 0 : index
    %9 = vector.load %arg4[%c0_6, %c0_7] : memref<512x512xbf16, #tpu.memory_space<vmem>>, vector<512x512xbf16>
    %cst_8 = arith.constant dense<0.000000e+00> : vector<16x512xf32>
    %10 = tpu.matmul %8, %9, %cst_8 {dimension_numbers = #tpu.dot_dimension_numbers<[1], [0], [0], [1], [0, 0, 1, 1], [], []>} : vector<16x512xbf16>, vector<512x512xbf16>, vector<16x512xf32> -> vector<16x512xf32>
    %c0_9 = arith.constant 0 : index
    %c0_10 = arith.constant 0 : index
    %11 = vector.load %arg5[%c0_9, %c0_10] : memref<1x512xf32, #tpu.memory_space<vmem>>, vector<1x512xf32>
    %12 = vector.broadcast %11 : vector<1x512xf32> to vector<16x512xf32>
    %13 = arith.addf %10, %12 : vector<16x512xf32>
    %cst_11 = arith.constant 0.000000e+00 : f32
    %14 = vector.broadcast %cst_11 : f32 to vector<16x512xf32>
    %15 = arith.maximumf %13, %14 : vector<16x512xf32>
    %16 = arith.truncf %15 : vector<16x512xf32> to vector<16x512xbf16>
    %c0_12 = arith.constant 0 : index
    %c0_13 = arith.constant 0 : index
    %17 = vector.load %arg6[%c0_12, %c0_13] : memref<512x128xbf16, #tpu.memory_space<vmem>>, vector<512x128xbf16>
    %cst_14 = arith.constant dense<0.000000e+00> : vector<16x128xf32>
    %18 = tpu.matmul %16, %17, %cst_14 {dimension_numbers = #tpu.dot_dimension_numbers<[1], [0], [0], [1], [0, 0, 1, 1], [], []>} : vector<16x512xbf16>, vector<512x128xbf16>, vector<16x128xf32> -> vector<16x128xf32>
    %c0_15 = arith.constant 0 : index
    %c0_16 = arith.constant 0 : index
    %19 = vector.load %arg7[%c0_15, %c0_16] : memref<1x128xf32, #tpu.memory_space<vmem>>, vector<1x128xf32>
    %20 = vector.broadcast %19 : vector<1x128xf32> to vector<16x128xf32>
    %21 = arith.addf %18, %20 : vector<16x128xf32>
    %c0_17 = arith.constant 0 : index
    %c0_18 = arith.constant 0 : index
    %22 = vector.load %arg8[%c0_17, %c0_18] : memref<16x128xf32, #tpu.memory_space<vmem>>, vector<16x128xf32>
    tpu.vector_store %arg8[%c0_17, %c0_18], %21 {strides = array<i32>} : memref<16x128xf32, #tpu.memory_space<vmem>>, vector<16x128xf32>,
    return
  }
  func.func @transform_0(%arg0: i32) -> (i32, i32) {
    %c0_i32 = arith.constant 0 : i32
    %c0_i32_0 = arith.constant 0 : i32
    return %arg0, %c0_i32 : i32, i32
  }
  func.func @transform_1(%arg0: i32) -> (i32, i32) {
    %c0_i32 = arith.constant 0 : i32
    %c0_i32_0 = arith.constant 0 : i32
    %c0_i32_1 = arith.constant 0 : i32
    return %c0_i32, %c0_i32_0 : i32, i32
  }
  func.func @transform_2(%arg0: i32) -> (i32, i32) {
    %c0_i32 = arith.constant 0 : i32
    %c0_i32_0 = arith.constant 0 : i32
    %c0_i32_1 = arith.constant 0 : i32
    return %c0_i32, %c0_i32_0 : i32, i32
  }
  func.func @transform_3(%arg0: i32) -> (i32, i32) {
    %c0_i32 = arith.constant 0 : i32
    %c0_i32_0 = arith.constant 0 : i32
    %c0_i32_1 = arith.constant 0 : i32
    return %c0_i32, %c0_i32_0 : i32, i32
  }
  func.func @transform_4(%arg0: i32) -> (i32, i32) {
    %c0_i32 = arith.constant 0 : i32
    %c0_i32_0 = arith.constant 0 : i32
    %c0_i32_1 = arith.constant 0 : i32
    return %c0_i32, %c0_i32_0 : i32, i32
  }
  func.func @transform_5(%arg0: i32) -> (i32, i32) {
    %c0_i32 = arith.constant 0 : i32
    %c0_i32_0 = arith.constant 0 : i32
    %c0_i32_1 = arith.constant 0 : i32
    return %c0_i32, %c0_i32_0 : i32, i32
  }
  func.func @transform_6(%arg0: i32) -> (i32, i32) {
    %c0_i32 = arith.constant 0 : i32
    %c0_i32_0 = arith.constant 0 : i32
    %c0_i32_1 = arith.constant 0 : i32
    return %c0_i32, %c0_i32_0 : i32, i32
  }
  func.func @transform_7(%arg0: i32) -> (i32, i32) {
    %c0_i32 = arith.constant 0 : i32
    %c0_i32_0 = arith.constant 0 : i32
    return %arg0, %c0_i32 : i32, i32
  }
}

module attributes {stable_mosaic.version = 11 : i64} {
  func.func @_fused_mlp_kernel(%arg0: i32, %arg1: memref<16x256xbf16, #tpu.memory_space<vmem>>, %arg2: memref<256x512xbf16, #tpu.memory_space<vmem>>, %arg3: memref<1x512xf32, #tpu.memory_space<vmem>>, %arg4: memref<512x512xbf16, #tpu.memory_space<vmem>>, %arg5: memref<1x512xf32, #tpu.memory_space<vmem>>, %arg6: memref<512x128xbf16, #tpu.memory_space<vmem>>, %arg7: memref<1x128xf32, #tpu.memory_space<vmem>>, %arg8: memref<16x128xf32, #tpu.memory_space<vmem>>) attributes {dimension_semantics = [#tpu.dimension_semantics<parallel>], iteration_bounds = array<i64: 1>, scalar_prefetch = 0 : i64, scratch_operands = 0 : i64, tpu.core_type = #tpu.core_type<tc>, window_params = [{transform_indices = @transform_0, window_bounds = array<i64: 16, 256>}, {pipeline_mode = #tpu.pipeline_mode<synchronous>, transform_indices = @transform_1, window_bounds = array<i64: 256, 512>}, {pipeline_mode = #tpu.pipeline_mode<synchronous>, transform_indices = @transform_2, window_bounds = array<i64: 1, 512>}, {pipeline_mode = #tpu.pipeline_mode<synchronous>, transform_indices = @transform_3, window_bounds = array<i64: 512, 512>}, {pipeline_mode = #tpu.pipeline_mode<synchronous>, transform_indices = @transform_4, window_bounds = array<i64: 1, 512>}, {pipeline_mode = #tpu.pipeline_mode<synchronous>, transform_indices = @transform_5, window_bounds = array<i64: 512, 128>}, {pipeline_mode = #tpu.pipeline_mode<synchronous>, transform_indices = @transform_6, window_bounds = array<i64: 1, 128>}, {transform_indices = @transform_7, window_bounds = array<i64: 16, 128>}]} {
    %c0 = arith.constant 0 : index
    %c0_0 = arith.constant 0 : index
    %0 = vector.load %arg1[%c0, %c0_0] : memref<16x256xbf16, #tpu.memory_space<vmem>>, vector<16x256xbf16>
    %c0_1 = arith.constant 0 : index
    %c0_2 = arith.constant 0 : index
    %1 = vector.load %arg2[%c0_1, %c0_2] : memref<256x512xbf16, #tpu.memory_space<vmem>>, vector<256x512xbf16>
    %cst = arith.constant dense<0.000000e+00> : vector<16x512xf32>
    %2 = tpu.matmul %0, %1, %cst {dimension_numbers = #tpu.dot_dimension_numbers<[1], [0], [0], [1], [0, 0, 1, 1], [], []>} : vector<16x256xbf16>, vector<256x512xbf16>, vector<16x512xf32> -> vector<16x512xf32>
    %c0_3 = arith.constant 0 : index
    %c0_4 = arith.constant 0 : index
    %3 = vector.load %arg3[%c0_3, %c0_4] : memref<1x512xf32, #tpu.memory_space<vmem>>, vector<1x512xf32>
    %4 = vector.broadcast %3 : vector<1x512xf32> to vector<16x512xf32>
    %5 = arith.addf %2, %4 : vector<16x512xf32>
    %cst_5 = arith.constant 0.000000e+00 : f32
    %6 = vector.broadcast %cst_5 : f32 to vector<16x512xf32>
    %7 = arith.maximumf %5, %6 : vector<16x512xf32>
    %8 = arith.truncf %7 : vector<16x512xf32> to vector<16x512xbf16>
    %c0_6 = arith.constant 0 : index
    %c0_7 = arith.constant 0 : index
    %9 = vector.load %arg4[%c0_6, %c0_7] : memref<512x512xbf16, #tpu.memory_space<vmem>>, vector<512x512xbf16>
    %cst_8 = arith.constant dense<0.000000e+00> : vector<16x512xf32>
    %10 = tpu.matmul %8, %9, %cst_8 {dimension_numbers = #tpu.dot_dimension_numbers<[1], [0], [0], [1], [0, 0, 1, 1], [], []>} : vector<16x512xbf16>, vector<512x512xbf16>, vector<16x512xf32> -> vector<16x512xf32>
    %c0_9 = arith.constant 0 : index
    %c0_10 = arith.constant 0 : index
    %11 = vector.load %arg5[%c0_9, %c0_10] : memref<1x512xf32, #tpu.memory_space<vmem>>, vector<1x512xf32>
    %12 = vector.broadcast %11 : vector<1x512xf32> to vector<16x512xf32>
    %13 = arith.addf %10, %12 : vector<16x512xf32>
    %cst_11 = arith.constant 0.000000e+00 : f32
    %14 = vector.broadcast %cst_11 : f32 to vector<16x512xf32>
    %15 = arith.maximumf %13, %14 : vector<16x512xf32>
    %16 = arith.truncf %15 : vector<16x512xf32> to vector<16x512xbf16>
    %c0_12 = arith.constant 0 : index
    %c0_13 = arith.constant 0 : index
    %17 = vector.load %arg6[%c0_12, %c0_13] : memref<512x128xbf16, #tpu.memory_space<vmem>>, vector<512x128xbf16>
    %cst_14 = arith.constant dense<0.000000e+00> : vector<16x128xf32>
    %18 = tpu.matmul %16, %17, %cst_14 {dimension_numbers = #tpu.dot_dimension_numbers<[1], [0], [0], [1], [0, 0, 1, 1], [], []>} : vector<16x512xbf16>, vector<512x128xbf16>, vector<16x128xf32> -> vector<16x128xf32>
    %c0_15 = arith.constant 0 : index
    %c0_16 = arith.constant 0 : index
    %19 = vector.load %arg7[%c0_15, %c0_16] : memref<1x128xf32, #tpu.memory_space<vmem>>, vector<1x128xf32>
    %20 = vector.broadcast %19 : vector<1x128xf32> to vector<16x128xf32>
    %21 = arith.addf %18, %20 : vector<16x128xf32>
    %c0_17 = arith.constant 0 : index
    %c0_18 = arith.constant 0 : index
    %22 = vector.load %arg8[%c0_17, %c0_18] : memref<16x128xf32, #tpu.memory_space<vmem>>, vector<16x128xf32>
    tpu.vector_store %arg8[%c0_17, %c0_18], %21 {strides = array<i32>} : memref<16x128xf32, #tpu.memory_space<vmem>>, vector<16x128xf32>,
    return
  }
  func.func @transform_0(%arg0: i32) -> (i32, i32) {
    %c0_i32 = arith.constant 0 : i32
    %c0_i32_0 = arith.constant 0 : i32
    return %arg0, %c0_i32 : i32, i32
  }
  func.func @transform_1(%arg0: i32) -> (i32, i32) {
    %c0_i32 = arith.constant 0 : i32
    %c0_i32_0 = arith.constant 0 : i32
    %c0_i32_1 = arith.constant 0 : i32
    return %c0_i32, %c0_i32_0 : i32, i32
  }
  func.func @transform_2(%arg0: i32) -> (i32, i32) {
    %c0_i32 = arith.constant 0 : i32
    %c0_i32_0 = arith.constant 0 : i32
    %c0_i32_1 = arith.constant 0 : i32
    return %c0_i32, %c0_i32_0 : i32, i32
  }
  func.func @transform_3(%arg0: i32) -> (i32, i32) {
    %c0_i32 = arith.constant 0 : i32
    %c0_i32_0 = arith.constant 0 : i32
    %c0_i32_1 = arith.constant 0 : i32
    return %c0_i32, %c0_i32_0 : i32, i32
  }
  func.func @transform_4(%arg0: i32) -> (i32, i32) {
    %c0_i32 = arith.constant 0 : i32
    %c0_i32_0 = arith.constant 0 : i32
    %c0_i32_1 = arith.constant 0 : i32
    return %c0_i32, %c0_i32_0 : i32, i32
  }
  func.func @transform_5(%arg0: i32) -> (i32, i32) {
    %c0_i32 = arith.constant 0 : i32
    %c0_i32_0 = arith.constant 0 : i32
    %c0_i32_1 = arith.constant 0 : i32
    return %c0_i32, %c0_i32_0 : i32, i32
  }
  func.func @transform_6(%arg0: i32) -> (i32, i32) {
    %c0_i32 = arith.constant 0 : i32
    %c0_i32_0 = arith.constant 0 : i32
    %c0_i32_1 = arith.constant 0 : i32
    return %c0_i32, %c0_i32_0 : i32, i32
  }
  func.func @transform_7(%arg0: i32) -> (i32, i32) {
    %c0_i32 = arith.constant 0 : i32
    %c0_i32_0 = arith.constant 0 : i32
    return %arg0, %c0_i32 : i32, i32
  }
}

module attributes {stable_mosaic.version = 11 : i64} {
  func.func @_linear_kernel_nok(%arg0: i32, %arg1: i32, %arg2: memref<16x256xbf16, #tpu.memory_space<vmem>>, %arg3: memref<256x512xbf16, #tpu.memory_space<vmem>>, %arg4: memref<1x512xf32, #tpu.memory_space<vmem>>, %arg5: memref<16x512xbf16, #tpu.memory_space<vmem>>) attributes {dimension_semantics = [#tpu.dimension_semantics<parallel>, #tpu.dimension_semantics<parallel>], iteration_bounds = array<i64: 1, 1>, scalar_prefetch = 0 : i64, scratch_operands = 0 : i64, tpu.core_type = #tpu.core_type<tc>, window_params = [{transform_indices = @transform_0, window_bounds = array<i64: 16, 256>}, {transform_indices = @transform_1, window_bounds = array<i64: 256, 512>}, {transform_indices = @transform_2, window_bounds = array<i64: 1, 512>}, {transform_indices = @transform_3, window_bounds = array<i64: 16, 512>}]} {
    %c0 = arith.constant 0 : index
    %c0_0 = arith.constant 0 : index
    %0 = vector.load %arg2[%c0, %c0_0] : memref<16x256xbf16, #tpu.memory_space<vmem>>, vector<16x256xbf16>
    %c0_1 = arith.constant 0 : index
    %c0_2 = arith.constant 0 : index
    %1 = vector.load %arg3[%c0_1, %c0_2] : memref<256x512xbf16, #tpu.memory_space<vmem>>, vector<256x512xbf16>
    %cst = arith.constant dense<0.000000e+00> : vector<16x512xf32>
    %2 = tpu.matmul %0, %1, %cst {dimension_numbers = #tpu.dot_dimension_numbers<[1], [0], [0], [1], [0, 0, 1, 1], [], []>} : vector<16x256xbf16>, vector<256x512xbf16>, vector<16x512xf32> -> vector<16x512xf32>
    %c0_3 = arith.constant 0 : index
    %c0_4 = arith.constant 0 : index
    %3 = vector.load %arg4[%c0_3, %c0_4] : memref<1x512xf32, #tpu.memory_space<vmem>>, vector<1x512xf32>
    %4 = vector.broadcast %3 : vector<1x512xf32> to vector<16x512xf32>
    %5 = arith.addf %2, %4 : vector<16x512xf32>
    %cst_5 = arith.constant 0.000000e+00 : f32
    %6 = vector.broadcast %cst_5 : f32 to vector<16x512xf32>
    %7 = arith.maximumf %5, %6 : vector<16x512xf32>
    %8 = arith.truncf %7 : vector<16x512xf32> to vector<16x512xbf16>
    %c0_6 = arith.constant 0 : index
    %c0_7 = arith.constant 0 : index
    %9 = vector.load %arg5[%c0_6, %c0_7] : memref<16x512xbf16, #tpu.memory_space<vmem>>, vector<16x512xbf16>
    tpu.vector_store %arg5[%c0_6, %c0_7], %8 {strides = array<i32>} : memref<16x512xbf16, #tpu.memory_space<vmem>>, vector<16x512xbf16>,
    return
  }
  func.func @transform_0(%arg0: i32, %arg1: i32) -> (i32, i32) {
    %c0_i32 = arith.constant 0 : i32
    %c0_i32_0 = arith.constant 0 : i32
    return %arg1, %c0_i32 : i32, i32
  }
  func.func @transform_1(%arg0: i32, %arg1: i32) -> (i32, i32) {
    %c0_i32 = arith.constant 0 : i32
    %c0_i32_0 = arith.constant 0 : i32
    return %c0_i32, %arg0 : i32, i32
  }
  func.func @transform_2(%arg0: i32, %arg1: i32) -> (i32, i32) {
    %c0_i32 = arith.constant 0 : i32
    %c0_i32_0 = arith.constant 0 : i32
    return %c0_i32, %arg0 : i32, i32
  }
  func.func @transform_3(%arg0: i32, %arg1: i32) -> (i32, i32) {
    %c0_i32 = arith.constant 0 : i32
    return %arg1, %arg0 : i32, i32
  }
}

</mosaic_0001>

<llo_original>
// kernel: tpu_custom_call.1
$region0: #{tpu_custom_call.1}
  #allocation0 [shape = 'u32[]', space=smem, size = 0x4, offset = 0x4, fixed_abs, tag = 'smem constant byte address 0x4 - core index']
  #allocation1 [shape = 'u32[144,128]{1,0:T(1,128)}', space=vmem, size = 0x12000, scoped, tag = 'internal scratch']
  %s0 = inlined_call_operand.hbm [shape: bf16[16,256], index: 0, kind: input, shape index: {}]
  %s1 = inlined_call_operand.hbm [shape: bf16[256,512], index: 1, kind: input, shape index: {}]
  %s2 = inlined_call_operand.vmem [shape: f32[1,512], index: 2, kind: input, shape index: {}]
  %s3 = inlined_call_operand.hbm [shape: bf16[512,512], index: 3, kind: input, shape index: {}]
  %s4 = inlined_call_operand.vmem [shape: f32[1,512], index: 4, kind: input, shape index: {}]
  %s5 = inlined_call_operand.hbm [shape: bf16[512,128], index: 5, kind: input, shape index: {}]
  %s6 = inlined_call_operand.vmem [shape: f32[1,128], index: 6, kind: input, shape index: {}]
  %s7 = inlined_call_operand.hbm [shape: f32[16,128], index: 7, kind: output, shape index: {}]
  %s8 = sld [smem:[#allocation0]]
  $region54: #{tpu_custom_call.1} parent=0
    _
  %s10 = ssub.s32 1, %s8
  %s11 = scalar_select 0, %s10, %s8
  $region1: #{tpu_custom_call.1} parent=0
    #allocation2 [shape = 'u8[8192]{0}', space=vmem, size = 0x2000, scoped, tag = 'input window, operand 0, single buffered']
    #allocation3 [shape = 's32[1]{0}', space=sflag, size = 0x4, scoped, tag = 'scoped memory for tpu_custom_call.1']
    #allocation4 [shape = 's32[1]{0}', space=sflag, size = 0x4, scoped, tag = 'scoped memory for tpu_custom_call.1']
    #allocation5 [shape = 'u8[262144]{0}', space=vmem, size = 0x40000, scoped, tag = 'input window, operand 1, single buffered']
    #allocation6 [shape = 's32[1]{0}', space=sflag, size = 0x4, scoped, tag = 'scoped memory for tpu_custom_call.1']
    #allocation7 [shape = 'u8[524288]{0}', space=vmem, size = 0x80000, scoped, tag = 'input window, operand 3, single buffered']
    #allocation8 [shape = 'u8[131072]{0}', space=vmem, size = 0x20000, scoped, tag = 'input window, operand 5, single buffered']
    #allocation9 [shape = 's32[1]{0}', space=sflag, size = 0x4, scoped, tag = 'scoped memory for tpu_custom_call.1']
    #allocation10 [shape = 'u8[8192]{0}', space=vmem, size = 0x2000, scoped, tag = 'output window, operand 0, single buffered']
    %12 = vsyncpa [#allocation3], 0
    %13 = vsyncpa [#allocation6], 0
    %14 = vsyncpa [#allocation9], 0
    %15 = vsyncpa [#allocation4], 0
    // Predicated region
    $region2: #{tpu_custom_call.1} parent=1 // pred_check
      _
    $region3: #{tpu_custom_call.1} parent=1 // pred_check_branch
      %17 = sbr.rel (0) target = $region5
    $region4: #{tpu_custom_call.1} parent=1 // pred_region
      %s19 = ssub.s32 256, 256
      %20 = vsyncadd [#allocation3], %s19
      %s21 = sshll.u32 [#allocation2], 4
      %s22 = int_to_ptr.vmem [resolvable:$true] %s21
      %27 = dma.hbm_to_vmem [thread:$0]  %s0, 256, %s22, [#allocation3], 128, 128, 8
    $region5: #{tpu_custom_call.1} parent=1 // pred_fallthru
      _
    // Predicated region
    $region6: #{tpu_custom_call.1} parent=1 // pred_check
      _
    $region7: #{tpu_custom_call.1} parent=1 // pred_check_branch
      %29 = sbr.rel (0) target = $region9
    $region8: #{tpu_custom_call.1} parent=1 // pred_region
      %s31 = ssub.s32 8192, 8192
      %32 = vsyncadd [#allocation6], %s31
      %s33 = sshll.u32 [#allocation5], 4
      %s34 = int_to_ptr.vmem [resolvable:$true] %s33
      %39 = dma.hbm_to_vmem [thread:$0]  %s1, 8192, %s34, [#allocation6], 256, 256, 16
    $region9: #{tpu_custom_call.1} parent=1 // pred_fallthru
      _
    // Predicated region
    $region10: #{tpu_custom_call.1} parent=1 // pred_check
      _
    $region11: #{tpu_custom_call.1} parent=1 // pred_check_branch
      %41 = sbr.rel (0) target = $region13
    $region12: #{tpu_custom_call.1} parent=1 // pred_region
      _
    $region13: #{tpu_custom_call.1} parent=1 // pred_fallthru
      _
    // Predicated region
    $region14: #{tpu_custom_call.1} parent=1 // pred_check
      _
    $region15: #{tpu_custom_call.1} parent=1 // pred_check_branch
      %43 = sbr.rel (0) target = $region17
    $region16: #{tpu_custom_call.1} parent=1 // pred_region
      %s45 = ssub.s32 16384, 16384
      %46 = vsyncadd [#allocation6], %s45
      %s47 = sshll.u32 [#allocation7], 4
      %s48 = int_to_ptr.vmem [resolvable:$true] %s47
      %53 = dma.hbm_to_vmem [thread:$0]  %s3, 16384, %s48, [#allocation6], 256, 256, 16
    $region17: #{tpu_custom_call.1} parent=1 // pred_fallthru
      _
    // Predicated region
    $region18: #{tpu_custom_call.1} parent=1 // pred_check
      _
    $region19: #{tpu_custom_call.1} parent=1 // pred_check_branch
      %55 = sbr.rel (0) target = $region21
    $region20: #{tpu_custom_call.1} parent=1 // pred_region
      _
    $region21: #{tpu_custom_call.1} parent=1 // pred_fallthru
      _
    // Predicated region
    $region22: #{tpu_custom_call.1} parent=1 // pred_check
      _
    $region23: #{tpu_custom_call.1} parent=1 // pred_check_branch
      %57 = sbr.rel (0) target = $region25
    $region24: #{tpu_custom_call.1} parent=1 // pred_region
      %s59 = ssub.s32 4096, 4096
      %60 = vsyncadd [#allocation9], %s59
      %s61 = sshll.u32 [#allocation8], 4
      %s62 = int_to_ptr.vmem [resolvable:$true] %s61
      %67 = dma.hbm_to_vmem [thread:$0]  %s5, 4096, %s62, [#allocation9], 64, 64, 4
    $region25: #{tpu_custom_call.1} parent=1 // pred_fallthru
      _
    // Predicated region
    $region26: #{tpu_custom_call.1} parent=1 // pred_check
      _
    $region27: #{tpu_custom_call.1} parent=1 // pred_check_branch
      %69 = sbr.rel (0) target = $region29
    $region28: #{tpu_custom_call.1} parent=1 // pred_region
      _
    $region29: #{tpu_custom_call.1} parent=1 // pred_fallthru
      _
    // Predicated region
    $region30: #{tpu_custom_call.1} parent=1 // pred_check
      _
    $region31: #{tpu_custom_call.1} parent=1 // pred_check_branch
      %71 = sbr.rel (0) target = $region33
    $region32: #{tpu_custom_call.1} parent=1 // pred_region
      %72 = dma.done [#allocation3], 256
    $region33: #{tpu_custom_call.1} parent=1 // pred_fallthru
      _
    // Predicated region
    $region34: #{tpu_custom_call.1} parent=1 // pred_check
      _
    $region35: #{tpu_custom_call.1} parent=1 // pred_check_branch
      %74 = sbr.rel (0) target = $region37
    $region36: #{tpu_custom_call.1} parent=1 // pred_region
      %75 = dma.done [#allocation6], 8192
    $region37: #{tpu_custom_call.1} parent=1 // pred_fallthru
      _
    // Predicated region
    $region38: #{tpu_custom_call.1} parent=1 // pred_check
      _
    $region39: #{tpu_custom_call.1} parent=1 // pred_check_branch
      %77 = sbr.rel (0) target = $region41
    $region40: #{tpu_custom_call.1} parent=1 // pred_region
      %78 = dma.done [#allocation6], 16384
    $region41: #{tpu_custom_call.1} parent=1 // pred_fallthru
      _
    // Predicated region
    $region42: #{tpu_custom_call.1} parent=1 // pred_check
      _
    $region43: #{tpu_custom_call.1} parent=1 // pred_check_branch
      %80 = sbr.rel (0) target = $region45
    $region44: #{tpu_custom_call.1} parent=1 // pred_region
      %81 = dma.done [#allocation9], 4096
    $region45: #{tpu_custom_call.1} parent=1 // pred_fallthru
      _
    %v83 = vld [vmem:[#allocation2] sm:$0xff]
    %v84 = vld [vmem:[#allocation2 + $0x8] sm:$0xff]
    %v85 = vld [vmem:[#allocation5] sm:$0xff]
    %v86 = vld [vmem:[#allocation5 + $0x8] sm:$0xff]
    %v87 = vld [vmem:[#allocation5 + $0x10] sm:$0xff]
    %v88 = vld [vmem:[#allocation5 + $0x18] sm:$0xff]
    %v89 = vld [vmem:[#allocation5 + $0x20] sm:$0xff]
    %v90 = vld [vmem:[#allocation5 + $0x28] sm:$0xff]
    %v91 = vld [vmem:[#allocation5 + $0x30] sm:$0xff]
    %v92 = vld [vmem:[#allocation5 + $0x38] sm:$0xff]
    %v93 = vld [vmem:[#allocation5 + $0x40] sm:$0xff]
    %v94 = vld [vmem:[#allocation5 + $0x48] sm:$0xff]
    %v95 = vld [vmem:[#allocation5 + $0x50] sm:$0xff]
    %v96 = vld [vmem:[#allocation5 + $0x58] sm:$0xff]
    %v97 = vld [vmem:[#allocation5 + $0x60] sm:$0xff]
    %v98 = vld [vmem:[#allocation5 + $0x68] sm:$0xff]
    %v99 = vld [vmem:[#allocation5 + $0x70] sm:$0xff]
    %v100 = vld [vmem:[#allocation5 + $0x78] sm:$0xff]
    %v101 = vld [vmem:[#allocation5 + $0x80] sm:$0xff]
    %v102 = vld [vmem:[#allocation5 + $0x88] sm:$0xff]
    %v103 = vld [vmem:[#allocation5 + $0x90] sm:$0xff]
    %v104 = vld [vmem:[#allocation5 + $0x98] sm:$0xff]
    %v105 = vld [vmem:[#allocation5 + $0xa0] sm:$0xff]
    %v106 = vld [vmem:[#allocation5 + $0xa8] sm:$0xff]
    %v107 = vld [vmem:[#allocation5 + $0xb0] sm:$0xff]
    %v108 = vld [vmem:[#allocation5 + $0xb8] sm:$0xff]
    %v109 = vld [vmem:[#allocation5 + $0xc0] sm:$0xff]
    %v110 = vld [vmem:[#allocation5 + $0xc8] sm:$0xff]
    %v111 = vld [vmem:[#allocation5 + $0xd0] sm:$0xff]
    %v112 = vld [vmem:[#allocation5 + $0xd8] sm:$0xff]
    %v113 = vld [vmem:[#allocation5 + $0xe0] sm:$0xff]
    %v114 = vld [vmem:[#allocation5 + $0xe8] sm:$0xff]
    %v115 = vld [vmem:[#allocation5 + $0xf0] sm:$0xff]
    %v116 = vld [vmem:[#allocation5 + $0xf8] sm:$0xff]
    %v117 = vld [vmem:[#allocation5 + $0x100] sm:$0xff]
    %v118 = vld [vmem:[#allocation5 + $0x108] sm:$0xff]
    %v119 = vld [vmem:[#allocation5 + $0x110] sm:$0xff]
    %v120 = vld [vmem:[#allocation5 + $0x118] sm:$0xff]
    %v121 = vld [vmem:[#allocation5 + $0x120] sm:$0xff]
    %v122 = vld [vmem:[#allocation5 + $0x128] sm:$0xff]
    %v123 = vld [vmem:[#allocation5 + $0x130] sm:$0xff]
    %v124 = vld [vmem:[#allocation5 + $0x138] sm:$0xff]
    %v125 = vld [vmem:[#allocation5 + $0x140] sm:$0xff]
    %v126 = vld [vmem:[#allocation5 + $0x148] sm:$0xff]
    %v127 = vld [vmem:[#allocation5 + $0x150] sm:$0xff]
    %v128 = vld [vmem:[#allocation5 + $0x158] sm:$0xff]
    %v129 = vld [vmem:[#allocation5 + $0x160] sm:$0xff]
    %v130 = vld [vmem:[#allocation5 + $0x168] sm:$0xff]
    %v131 = vld [vmem:[#allocation5 + $0x170] sm:$0xff]
    %v132 = vld [vmem:[#allocation5 + $0x178] sm:$0xff]
    %v133 = vld [vmem:[#allocation5 + $0x180] sm:$0xff]
    %v134 = vld [vmem:[#allocation5 + $0x188] sm:$0xff]
    %v135 = vld [vmem:[#allocation5 + $0x190] sm:$0xff]
    %v136 = vld [vmem:[#allocation5 + $0x198] sm:$0xff]
    %v137 = vld [vmem:[#allocation5 + $0x1a0] sm:$0xff]
    %v138 = vld [vmem:[#allocation5 + $0x1a8] sm:$0xff]
    %v139 = vld [vmem:[#allocation5 + $0x1b0] sm:$0xff]
    %v140 = vld [vmem:[#allocation5 + $0x1b8] sm:$0xff]
    %v141 = vld [vmem:[#allocation5 + $0x1c0] sm:$0xff]
    %v142 = vld [vmem:[#allocation5 + $0x1c8] sm:$0xff]
    %v143 = vld [vmem:[#allocation5 + $0x1d0] sm:$0xff]
    %v144 = vld [vmem:[#allocation5 + $0x1d8] sm:$0xff]
    %v145 = vld [vmem:[#allocation5 + $0x1e0] sm:$0xff]
    %v146 = vld [vmem:[#allocation5 + $0x1e8] sm:$0xff]
    %v147 = vld [vmem:[#allocation5 + $0x1f0] sm:$0xff]
    %v148 = vld [vmem:[#allocation5 + $0x1f8] sm:$0xff]
    %v149 = vld [vmem:[%s2] sm:$0xf]
    %v151 = vlaneseq
    %v152 = vshrl.u32 %v151, 7
    %v153 = vsub.s32 0, %v152
    %v154 = vrot.slane %v149, %v153
    %v155 = vlaneseq
    %v156 = vshrl.u32 %v155, 7
    %v157 = vsub.s32 1, %v156
    %v158 = vrot.slane %v149, %v157
    %v159 = vlaneseq
    %v160 = vshrl.u32 %v159, 7
    %v161 = vsub.s32 2, %v160
    %v162 = vrot.slane %v149, %v161
    %v163 = vlaneseq
    %v164 = vshrl.u32 %v163, 7
    %v165 = vsub.s32 3, %v164
    %v166 = vrot.slane %v149, %v165
    %v173 = vunpack.c.l.b16 %v83
    %v174 = vunpack.c.h.b16 %v83
    %v175 = vunpack.c.l.b16 %v84
    %v176 = vunpack.c.h.b16 %v84
    %v177 = vpack.c.b16 %v175, %v173
    %v178 = vpack.c.b16 %v176, %v174
    %v245 = vunpack.c.l.b16 %v85
    %v246 = vunpack.c.h.b16 %v85
    %v247 = vunpack.c.l.b16 %v86
    %v248 = vunpack.c.h.b16 %v86
    %v249 = vunpack.c.l.b16 %v87
    %v250 = vunpack.c.h.b16 %v87
    %v251 = vunpack.c.l.b16 %v88
    %v252 = vunpack.c.h.b16 %v88
    %v253 = vunpack.c.l.b16 %v89
    %v254 = vunpack.c.h.b16 %v89
    %v255 = vunpack.c.l.b16 %v90
    %v256 = vunpack.c.h.b16 %v90
    %v257 = vunpack.c.l.b16 %v91
    %v258 = vunpack.c.h.b16 %v91
    %v259 = vunpack.c.l.b16 %v92
    %v260 = vunpack.c.h.b16 %v92
    %v261 = vunpack.c.l.b16 %v93
    %v262 = vunpack.c.h.b16 %v93
    %v263 = vunpack.c.l.b16 %v94
    %v264 = vunpack.c.h.b16 %v94
    %v265 = vunpack.c.l.b16 %v95
    %v266 = vunpack.c.h.b16 %v95
    %v267 = vunpack.c.l.b16 %v96
    %v268 = vunpack.c.h.b16 %v96
    %v269 = vunpack.c.l.b16 %v97
    %v270 = vunpack.c.h.b16 %v97
    %v271 = vunpack.c.l.b16 %v98
    %v272 = vunpack.c.h.b16 %v98
    %v273 = vunpack.c.l.b16 %v99
    %v274 = vunpack.c.h.b16 %v99
    %v275 = vunpack.c.l.b16 %v100
    %v276 = vunpack.c.h.b16 %v100
    %v277 = vunpack.c.l.b16 %v101
    %v278 = vunpack.c.h.b16 %v101
    %v279 = vunpack.c.l.b16 %v102
    %v280 = vunpack.c.h.b16 %v102
    %v281 = vunpack.c.l.b16 %v103
    %v282 = vunpack.c.h.b16 %v103
    %v283 = vunpack.c.l.b16 %v104
    %v284 = vunpack.c.h.b16 %v104
    %v285 = vunpack.c.l.b16 %v105
    %v286 = vunpack.c.h.b16 %v105
    %v287 = vunpack.c.l.b16 %v106
    %v288 = vunpack.c.h.b16 %v106
    %v289 = vunpack.c.l.b16 %v107
    %v290 = vunpack.c.h.b16 %v107
    %v291 = vunpack.c.l.b16 %v108
    %v292 = vunpack.c.h.b16 %v108
    %v293 = vunpack.c.l.b16 %v109
    %v294 = vunpack.c.h.b16 %v109
    %v295 = vunpack.c.l.b16 %v110
    %v296 = vunpack.c.h.b16 %v110
    %v297 = vunpack.c.l.b16 %v111
    %v298 = vunpack.c.h.b16 %v111
    %v299 = vunpack.c.l.b16 %v112
    %v300 = vunpack.c.h.b16 %v112
    %v301 = vunpack.c.l.b16 %v113
    %v302 = vunpack.c.h.b16 %v113
    %v303 = vunpack.c.l.b16 %v114
    %v304 = vunpack.c.h.b16 %v114
    %v305 = vunpack.c.l.b16 %v115
    %v306 = vunpack.c.h.b16 %v115
    %v307 = vunpack.c.l.b16 %v116
    %v308 = vunpack.c.h.b16 %v116
    %v309 = vunpack.c.l.b16 %v117
    %v310 = vunpack.c.h.b16 %v117
    %v311 = vunpack.c.l.b16 %v118
    %v312 = vunpack.c.h.b16 %v118
    %v313 = vunpack.c.l.b16 %v119
    %v314 = vunpack.c.h.b16 %v119
    %v315 = vunpack.c.l.b16 %v120
    %v316 = vunpack.c.h.b16 %v120
    %v317 = vunpack.c.l.b16 %v121
    %v318 = vunpack.c.h.b16 %v121
    %v319 = vunpack.c.l.b16 %v122
    %v320 = vunpack.c.h.b16 %v122
    %v321 = vunpack.c.l.b16 %v123
    %v322 = vunpack.c.h.b16 %v123
    %v323 = vunpack.c.l.b16 %v124
    %v324 = vunpack.c.h.b16 %v124
    %v325 = vunpack.c.l.b16 %v125
    %v326 = vunpack.c.h.b16 %v125
    %v327 = vunpack.c.l.b16 %v126
    %v328 = vunpack.c.h.b16 %v126
    %v329 = vunpack.c.l.b16 %v127
    %v330 = vunpack.c.h.b16 %v127
    %v331 = vunpack.c.l.b16 %v128
    %v332 = vunpack.c.h.b16 %v128
    %v333 = vunpack.c.l.b16 %v129
    %v334 = vunpack.c.h.b16 %v129
    %v335 = vunpack.c.l.b16 %v130
    %v336 = vunpack.c.h.b16 %v130
    %v337 = vunpack.c.l.b16 %v131
    %v338 = vunpack.c.h.b16 %v131
    %v339 = vunpack.c.l.b16 %v132
    %v340 = vunpack.c.h.b16 %v132
    %v341 = vunpack.c.l.b16 %v133
    %v342 = vunpack.c.h.b16 %v133
    %v343 = vunpack.c.l.b16 %v134
    %v344 = vunpack.c.h.b16 %v134
    %v345 = vunpack.c.l.b16 %v135
    %v346 = vunpack.c.h.b16 %v135
    %v347 = vunpack.c.l.b16 %v136
    %v348 = vunpack.c.h.b16 %v136
    %v349 = vunpack.c.l.b16 %v137
    %v350 = vunpack.c.h.b16 %v137
    %v351 = vunpack.c.l.b16 %v138
    %v352 = vunpack.c.h.b16 %v138
    %v353 = vunpack.c.l.b16 %v139
    %v354 = vunpack.c.h.b16 %v139
    %v355 = vunpack.c.l.b16 %v140
    %v356 = vunpack.c.h.b16 %v140
    %v357 = vunpack.c.l.b16 %v141
    %v358 = vunpack.c.h.b16 %v141
    %v359 = vunpack.c.l.b16 %v142
    %v360 = vunpack.c.h.b16 %v142
    %v361 = vunpack.c.l.b16 %v143
    %v362 = vunpack.c.h.b16 %v143
    %v363 = vunpack.c.l.b16 %v144
    %v364 = vunpack.c.h.b16 %v144
    %v365 = vunpack.c.l.b16 %v145
    %v366 = vunpack.c.h.b16 %v145
    %v367 = vunpack.c.l.b16 %v146
    %v368 = vunpack.c.h.b16 %v146
    %v369 = vunpack.c.l.b16 %v147
    %v370 = vunpack.c.h.b16 %v147
    %v371 = vunpack.c.l.b16 %v148
    %v372 = vunpack.c.h.b16 %v148
    %v373 = vpack.c.b16 %v249, %v245
    %v374 = vpack.c.b16 %v250, %v246
    %v375 = vpack.c.b16 %v251, %v247
    %v376 = vpack.c.b16 %v252, %v248
    %v377 = vpack.c.b16 %v257, %v253
    %v378 = vpack.c.b16 %v258, %v254
    %v379 = vpack.c.b16 %v259, %v255
    %v380 = vpack.c.b16 %v260, %v256
    %v381 = vpack.c.b16 %v265, %v261
    %v382 = vpack.c.b16 %v266, %v262
    %v383 = vpack.c.b16 %v267, %v263
    %v384 = vpack.c.b16 %v268, %v264
    %v385 = vpack.c.b16 %v273, %v269
    %v386 = vpack.c.b16 %v274, %v270
    %v387 = vpack.c.b16 %v275, %v271
    %v388 = vpack.c.b16 %v276, %v272
    %v389 = vpack.c.b16 %v281, %v277
    %v390 = vpack.c.b16 %v282, %v278
    %v391 = vpack.c.b16 %v283, %v279
    %v392 = vpack.c.b16 %v284, %v280
    %v393 = vpack.c.b16 %v289, %v285
    %v394 = vpack.c.b16 %v290, %v286
    %v395 = vpack.c.b16 %v291, %v287
    %v396 = vpack.c.b16 %v292, %v288
    %v397 = vpack.c.b16 %v297, %v293
    %v398 = vpack.c.b16 %v298, %v294
    %v399 = vpack.c.b16 %v299, %v295
    %v400 = vpack.c.b16 %v300, %v296
    %v401 = vpack.c.b16 %v305, %v301
    %v402 = vpack.c.b16 %v306, %v302
    %v403 = vpack.c.b16 %v307, %v303
    %v404 = vpack.c.b16 %v308, %v304
    %v405 = vpack.c.b16 %v313, %v309
    %v406 = vpack.c.b16 %v314, %v310
    %v407 = vpack.c.b16 %v315, %v311
    %v408 = vpack.c.b16 %v316, %v312
    %v409 = vpack.c.b16 %v321, %v317
    %v410 = vpack.c.b16 %v322, %v318
    %v411 = vpack.c.b16 %v323, %v319
    %v412 = vpack.c.b16 %v324, %v320
    %v413 = vpack.c.b16 %v329, %v325
    %v414 = vpack.c.b16 %v330, %v326
    %v415 = vpack.c.b16 %v331, %v327
    %v416 = vpack.c.b16 %v332, %v328
    %v417 = vpack.c.b16 %v337, %v333
    %v418 = vpack.c.b16 %v338, %v334
    %v419 = vpack.c.b16 %v339, %v335
    %v420 = vpack.c.b16 %v340, %v336
    %v421 = vpack.c.b16 %v345, %v341
    %v422 = vpack.c.b16 %v346, %v342
    %v423 = vpack.c.b16 %v347, %v343
    %v424 = vpack.c.b16 %v348, %v344
    %v425 = vpack.c.b16 %v353, %v349
    %v426 = vpack.c.b16 %v354, %v350
    %v427 = vpack.c.b16 %v355, %v351
    %v428 = vpack.c.b16 %v356, %v352
    %v429 = vpack.c.b16 %v361, %v357
    %v430 = vpack.c.b16 %v362, %v358
    %v431 = vpack.c.b16 %v363, %v359
    %v432 = vpack.c.b16 %v364, %v360
    %v433 = vpack.c.b16 %v369, %v365
    %v434 = vpack.c.b16 %v370, %v366
    %v435 = vpack.c.b16 %v371, %v367
    %v436 = vpack.c.b16 %v372, %v368
    %501 = vmatprep.subr.bf16.mxu0 %v374
    %502 = vmatpush1.bf16.msra.mxu0 %v373
    %503 = vmatprep.subr.bf16.mxu0 %v378
    %504 = vmatpush1.bf16.msra.mxu0 %v377
    %505 = vmatprep.subr.bf16.mxu0 %v382
    %506 = vmatpush1.bf16.msra.mxu0 %v381
    %507 = vmatprep.subr.bf16.mxu0 %v386
    %508 = vmatpush1.bf16.msra.mxu0 %v385
    %509 = vmatprep.subr.bf16.mxu0 %v390
    %510 = vmatpush1.bf16.msra.mxu0 %v389
    %511 = vmatprep.subr.bf16.mxu0 %v394
    %512 = vmatpush1.bf16.msra.mxu0 %v393
    %513 = vmatprep.subr.bf16.mxu0 %v398
    %514 = vmatpush1.bf16.msra.mxu0 %v397
    %515 = vmatprep.subr.bf16.mxu0 %v402
    %516 = vmatpush1.bf16.msra.mxu0 %v401
    %517 = vmatprep.subr.bf16.mxu0 %v406
    %518 = vmatpush1.bf16.msra.mxu0 %v405
    %519 = vmatprep.subr.bf16.mxu0 %v410
    %520 = vmatpush1.bf16.msra.mxu0 %v409
    %521 = vmatprep.subr.bf16.mxu0 %v414
    %522 = vmatpush1.bf16.msra.mxu0 %v413
    %523 = vmatprep.subr.bf16.mxu0 %v418
    %524 = vmatpush1.bf16.msra.mxu0 %v417
    %525 = vmatprep.subr.bf16.mxu0 %v422
    %526 = vmatpush1.bf16.msra.mxu0 %v421
    %527 = vmatprep.subr.bf16.mxu0 %v426
    %528 = vmatpush1.bf16.msra.mxu0 %v425
    %529 = vmatprep.subr.bf16.mxu0 %v430
    %530 = vmatpush1.bf16.msra.mxu0 %v429
    %531 = vmatprep.subr.bf16.mxu0 %v434
    %532 = vmatpush1.bf16.msra.mxu0 %v433
    %533 = vmatprep.mubr.bf16.mxu0 %v178
    %534 = vmatmul.mubr.bf16.gmra.mrb[0].mxu0 %v177
    %v535 = vpop.f32.mrb[0].mxu0
    %v536 = vadd.f32 %v154, %v535
    %v537 = vpop.f32.mrb[0].mxu0
    %v538 = vadd.f32 %v158, %v537
    %v539 = vpop.f32.mrb[0].mxu0
    %v540 = vadd.f32 %v154, %v539
    %v541 = vpop.f32.mrb[0].mxu0
    %v542 = vadd.f32 %v158, %v541
    %543 = vdwg.mxu0
    %544 = vmatprep.subr.bf16.mxu0 %v376
    %545 = vmatpush1.bf16.msra.mxu0 %v375
    %546 = vmatprep.subr.bf16.mxu0 %v380
    %547 = vmatpush1.bf16.msra.mxu0 %v379
    %548 = vmatprep.subr.bf16.mxu0 %v384
    %549 = vmatpush1.bf16.msra.mxu0 %v383
    %550 = vmatprep.subr.bf16.mxu0 %v388
    %551 = vmatpush1.bf16.msra.mxu0 %v387
    %552 = vmatprep.subr.bf16.mxu0 %v392
    %553 = vmatpush1.bf16.msra.mxu0 %v391
    %554 = vmatprep.subr.bf16.mxu0 %v396
    %555 = vmatpush1.bf16.msra.mxu0 %v395
    %556 = vmatprep.subr.bf16.mxu0 %v400
    %557 = vmatpush1.bf16.msra.mxu0 %v399
    %558 = vmatprep.subr.bf16.mxu0 %v404
    %559 = vmatpush1.bf16.msra.mxu0 %v403
    %560 = vmatprep.subr.bf16.mxu0 %v408
    %561 = vmatpush1.bf16.msra.mxu0 %v407
    %562 = vmatprep.subr.bf16.mxu0 %v412
    %563 = vmatpush1.bf16.msra.mxu0 %v411
    %564 = vmatprep.subr.bf16.mxu0 %v416
    %565 = vmatpush1.bf16.msra.mxu0 %v415
    %566 = vmatprep.subr.bf16.mxu0 %v420
    %567 = vmatpush1.bf16.msra.mxu0 %v419
    %568 = vmatprep.subr.bf16.mxu0 %v424
    %569 = vmatpush1.bf16.msra.mxu0 %v423
    %570 = vmatprep.subr.bf16.mxu0 %v428
    %571 = vmatpush1.bf16.msra.mxu0 %v427
    %572 = vmatprep.subr.bf16.mxu0 %v432
    %573 = vmatpush1.bf16.msra.mxu0 %v431
    %574 = vmatprep.subr.bf16.mxu0 %v436
    %575 = vmatpush1.bf16.msra.mxu0 %v435
    %576 = vmatprep.mubr.bf16.mxu0 %v178
    %577 = vmatmul.mubr.bf16.gmra.mrb[0].mxu0 %v177
    %v578 = vpop.f32.mrb[0].mxu0
    %v579 = vadd.f32 %v162, %v578
    %v580 = vpop.f32.mrb[0].mxu0
    %v581 = vadd.f32 %v166, %v580
    %v582 = vpop.f32.mrb[0].mxu0
    %v583 = vadd.f32 %v162, %v582
    %v584 = vpop.f32.mrb[0].mxu0
    %v585 = vadd.f32 %v166, %v584
    %586 = vdwg.mxu0
    %v587 = vmax.f32 %v536, 0.0
    %v588 = vmax.f32 %v538, 0.0
    %v589 = vmax.f32 %v579, 0.0
    %v590 = vmax.f32 %v581, 0.0
    %v591 = vmax.f32 %v540, 0.0
    %v592 = vmax.f32 %v542, 0.0
    %v593 = vmax.f32 %v583, 0.0
    %v594 = vmax.f32 %v585, 0.0
    %v595 = vpack.c.bf16 %v591, %v587
    %v596 = vpack.c.bf16 %v592, %v588
    %v597 = vpack.c.bf16 %v593, %v589
    %v598 = vpack.c.bf16 %v594, %v590
    %v599 = vld [vmem:[#allocation7] sm:$0xff]
    %v600 = vld [vmem:[#allocation7 + $0x8] sm:$0xff]
    %v601 = vld [vmem:[#allocation7 + $0x10] sm:$0xff]
    %v602 = vld [vmem:[#allocation7 + $0x18] sm:$0xff]
    %v603 = vld [vmem:[#allocation7 + $0x20] sm:$0xff]
    %v604 = vld [vmem:[#allocation7 + $0x28] sm:$0xff]
    %v605 = vld [vmem:[#allocation7 + $0x30] sm:$0xff]
    %v606 = vld [vmem:[#allocation7 + $0x38] sm:$0xff]
    %v607 = vld [vmem:[#allocation7 + $0x40] sm:$0xff]
    %v608 = vld [vmem:[#allocation7 + $0x48] sm:$0xff]
    %v609 = vld [vmem:[#allocation7 + $0x50] sm:$0xff]
    %v610 = vld [vmem:[#allocation7 + $0x58] sm:$0xff]
    %v611 = vld [vmem:[#allocation7 + $0x60] sm:$0xff]
    %v612 = vld [vmem:[#allocation7 + $0x68] sm:$0xff]
    %v613 = vld [vmem:[#allocation7 + $0x70] sm:$0xff]
    %v614 = vld [vmem:[#allocation7 + $0x78] sm:$0xff]
    %v615 = vld [vmem:[#allocation7 + $0x80] sm:$0xff]
    %v616 = vld [vmem:[#allocation7 + $0x88] sm:$0xff]
    %v617 = vld [vmem:[#allocation7 + $0x90] sm:$0xff]
    %v618 = vld [vmem:[#allocation7 + $0x98] sm:$0xff]
    %v619 = vld [vmem:[#allocation7 + $0xa0] sm:$0xff]
    %v620 = vld [vmem:[#allocation7 + $0xa8] sm:$0xff]
    %v621 = vld [vmem:[#allocation7 + $0xb0] sm:$0xff]
    %v622 = vld [vmem:[#allocation7 + $0xb8] sm:$0xff]
    %v623 = vld [vmem:[#allocation7 + $0xc0] sm:$0xff]
    %v624 = vld [vmem:[#allocation7 + $0xc8] sm:$0xff]
    %v625 = vld [vmem:[#allocation7 + $0xd0] sm:$0xff]
    %v626 = vld [vmem:[#allocation7 + $0xd8] sm:$0xff]
    %v627 = vld [vmem:[#allocation7 + $0xe0] sm:$0xff]
    %v628 = vld [vmem:[#allocation7 + $0xe8] sm:$0xff]
    %v629 = vld [vmem:[#allocation7 + $0xf0] sm:$0xff]
    %v630 = vld [vmem:[#allocation7 + $0xf8] sm:$0xff]
    %v631 = vld [vmem:[#allocation7 + $0x100] sm:$0xff]
    %v632 = vld [vmem:[#allocation7 + $0x108] sm:$0xff]
    %v633 = vld [vmem:[#allocation7 + $0x110] sm:$0xff]
    %v634 = vld [vmem:[#allocation7 + $0x118] sm:$0xff]
    %v635 = vld [vmem:[#allocation7 + $0x120] sm:$0xff]
    %v636 = vld [vmem:[#allocation7 + $0x128] sm:$0xff]
    %v637 = vld [vmem:[#allocation7 + $0x130] sm:$0xff]
    %v638 = vld [vmem:[#allocation7 + $0x138] sm:$0xff]
    %v639 = vld [vmem:[#allocation7 + $0x140] sm:$0xff]
    %v640 = vld [vmem:[#allocation7 + $0x148] sm:$0xff]
    %v641 = vld [vmem:[#allocation7 + $0x150] sm:$0xff]
    %v642 = vld [vmem:[#allocation7 + $0x158] sm:$0xff]
    %v643 = vld [vmem:[#allocation7 + $0x160] sm:$0xff]
    %v644 = vld [vmem:[#allocation7 + $0x168] sm:$0xff]
    %v645 = vld [vmem:[#allocation7 + $0x170] sm:$0xff]
    %v646 = vld [vmem:[#allocation7 + $0x178] sm:$0xff]
    %v647 = vld [vmem:[#allocation7 + $0x180] sm:$0xff]
    %v648 = vld [vmem:[#allocation7 + $0x188] sm:$0xff]
    %v649 = vld [vmem:[#allocation7 + $0x190] sm:$0xff]
    %v650 = vld [vmem:[#allocation7 + $0x198] sm:$0xff]
    %v651 = vld [vmem:[#allocation7 + $0x1a0] sm:$0xff]
    %v652 = vld [vmem:[#allocation7 + $0x1a8] sm:$0xff]
    %v653 = vld [vmem:[#allocation7 + $0x1b0] sm:$0xff]
    %v654 = vld [vmem:[#allocation7 + $0x1b8] sm:$0xff]
    %v655 = vld [vmem:[#allocation7 + $0x1c0] sm:$0xff]
    %v656 = vld [vmem:[#allocation7 + $0x1c8] sm:$0xff]
    %v657 = vld [vmem:[#allocation7 + $0x1d0] sm:$0xff]
    %v658 = vld [vmem:[#allocation7 + $0x1d8] sm:$0xff]
    %v659 = vld [vmem:[#allocation7 + $0x1e0] sm:$0xff]
    %v660 = vld [vmem:[#allocation7 + $0x1e8] sm:$0xff]
    %v661 = vld [vmem:[#allocation7 + $0x1f0] sm:$0xff]
    %v662 = vld [vmem:[#allocation7 + $0x1f8] sm:$0xff]
    %v663 = vld [vmem:[#allocation7 + $0x200] sm:$0xff]
    %v664 = vld [vmem:[#allocation7 + $0x208] sm:$0xff]
    %v665 = vld [vmem:[#allocation7 + $0x210] sm:$0xff]
    %v666 = vld [vmem:[#allocation7 + $0x218] sm:$0xff]
    %v667 = vld [vmem:[#allocation7 + $0x220] sm:$0xff]
    %v668 = vld [vmem:[#allocation7 + $0x228] sm:$0xff]
    %v669 = vld [vmem:[#allocation7 + $0x230] sm:$0xff]
    %v670 = vld [vmem:[#allocation7 + $0x238] sm:$0xff]
    %v671 = vld [vmem:[#allocation7 + $0x240] sm:$0xff]
    %v672 = vld [vmem:[#allocation7 + $0x248] sm:$0xff]
    %v673 = vld [vmem:[#allocation7 + $0x250] sm:$0xff]
    %v674 = vld [vmem:[#allocation7 + $0x258] sm:$0xff]
    %v675 = vld [vmem:[#allocation7 + $0x260] sm:$0xff]
    %v676 = vld [vmem:[#allocation7 + $0x268] sm:$0xff]
    %v677 = vld [vmem:[#allocation7 + $0x270] sm:$0xff]
    %v678 = vld [vmem:[#allocation7 + $0x278] sm:$0xff]
    %v679 = vld [vmem:[#allocation7 + $0x280] sm:$0xff]
    %v680 = vld [vmem:[#allocation7 + $0x288] sm:$0xff]
    %v681 = vld [vmem:[#allocation7 + $0x290] sm:$0xff]
    %v682 = vld [vmem:[#allocation7 + $0x298] sm:$0xff]
    %v683 = vld [vmem:[#allocation7 + $0x2a0] sm:$0xff]
    %v684 = vld [vmem:[#allocation7 + $0x2a8] sm:$0xff]
    %v685 = vld [vmem:[#allocation7 + $0x2b0] sm:$0xff]
    %v686 = vld [vmem:[#allocation7 + $0x2b8] sm:$0xff]
    %v687 = vld [vmem:[#allocation7 + $0x2c0] sm:$0xff]
    %v688 = vld [vmem:[#allocation7 + $0x2c8] sm:$0xff]
    %v689 = vld [vmem:[#allocation7 + $0x2d0] sm:$0xff]
    %v690 = vld [vmem:[#allocation7 + $0x2d8] sm:$0xff]
    %v691 = vld [vmem:[#allocation7 + $0x2e0] sm:$0xff]
    %v692 = vld [vmem:[#allocation7 + $0x2e8] sm:$0xff]
    %v693 = vld [vmem:[#allocation7 + $0x2f0] sm:$0xff]
    %v694 = vld [vmem:[#allocation7 + $0x2f8] sm:$0xff]
    %v695 = vld [vmem:[#allocation7 + $0x300] sm:$0xff]
    %v696 = vld [vmem:[#allocation7 + $0x308] sm:$0xff]
    %v697 = vld [vmem:[#allocation7 + $0x310] sm:$0xff]
    %v698 = vld [vmem:[#allocation7 + $0x318] sm:$0xff]
    %v699 = vld [vmem:[#allocation7 + $0x320] sm:$0xff]
    %v700 = vld [vmem:[#allocation7 + $0x328] sm:$0xff]
    %v701 = vld [vmem:[#allocation7 + $0x330] sm:$0xff]
    %v702 = vld [vmem:[#allocation7 + $0x338] sm:$0xff]
    %v703 = vld [vmem:[#allocation7 + $0x340] sm:$0xff]
    %v704 = vld [vmem:[#allocation7 + $0x348] sm:$0xff]
    %v705 = vld [vmem:[#allocation7 + $0x350] sm:$0xff]
    %v706 = vld [vmem:[#allocation7 + $0x358] sm:$0xff]
    %v707 = vld [vmem:[#allocation7 + $0x360] sm:$0xff]
    %v708 = vld [vmem:[#allocation7 + $0x368] sm:$0xff]
    %v709 = vld [vmem:[#allocation7 + $0x370] sm:$0xff]
    %v710 = vld [vmem:[#allocation7 + $0x378] sm:$0xff]
    %v711 = vld [vmem:[#allocation7 + $0x380] sm:$0xff]
    %v712 = vld [vmem:[#allocation7 + $0x388] sm:$0xff]
    %v713 = vld [vmem:[#allocation7 + $0x390] sm:$0xff]
    %v714 = vld [vmem:[#allocation7 + $0x398] sm:$0xff]
    %v715 = vld [vmem:[#allocation7 + $0x3a0] sm:$0xff]
    %v716 = vld [vmem:[#allocation7 + $0x3a8] sm:$0xff]
    %v717 = vld [vmem:[#allocation7 + $0x3b0] sm:$0xff]
    %v718 = vld [vmem:[#allocation7 + $0x3b8] sm:$0xff]
    %v719 = vld [vmem:[#allocation7 + $0x3c0] sm:$0xff]
    %v720 = vld [vmem:[#allocation7 + $0x3c8] sm:$0xff]
    %v721 = vld [vmem:[#allocation7 + $0x3d0] sm:$0xff]
    %v722 = vld [vmem:[#allocation7 + $0x3d8] sm:$0xff]
    %v723 = vld [vmem:[#allocation7 + $0x3e0] sm:$0xff]
    %v724 = vld [vmem:[#allocation7 + $0x3e8] sm:$0xff]
    %v725 = vld [vmem:[#allocation7 + $0x3f0] sm:$0xff]
    %v726 = vld [vmem:[#allocation7 + $0x3f8] sm:$0xff]
    %v727 = vld [vmem:[%s4] sm:$0xf]
    %v729 = vlaneseq
    %v730 = vshrl.u32 %v729, 7
    %v731 = vsub.s32 0, %v730
    %v732 = vrot.slane %v727, %v731
    %v733 = vlaneseq
    %v734 = vshrl.u32 %v733, 7
    %v735 = vsub.s32 1, %v734
    %v736 = vrot.slane %v727, %v735
    %v737 = vlaneseq
    %v738 = vshrl.u32 %v737, 7
    %v739 = vsub.s32 2, %v738
    %v740 = vrot.slane %v727, %v739
    %v741 = vlaneseq
    %v742 = vshrl.u32 %v741, 7
    %v743 = vsub.s32 3, %v742
    %v744 = vrot.slane %v727, %v743
    %v877 = vunpack.c.l.b16 %v599
    %v878 = vunpack.c.h.b16 %v599
    %v879 = vunpack.c.l.b16 %v600
    %v880 = vunpack.c.h.b16 %v600
    %v881 = vunpack.c.l.b16 %v601
    %v882 = vunpack.c.h.b16 %v601
    %v883 = vunpack.c.l.b16 %v602
    %v884 = vunpack.c.h.b16 %v602
    %v885 = vunpack.c.l.b16 %v603
    %v886 = vunpack.c.h.b16 %v603
    %v887 = vunpack.c.l.b16 %v604
    %v888 = vunpack.c.h.b16 %v604
    %v889 = vunpack.c.l.b16 %v605
    %v890 = vunpack.c.h.b16 %v605
    %v891 = vunpack.c.l.b16 %v606
    %v892 = vunpack.c.h.b16 %v606
    %v893 = vunpack.c.l.b16 %v607
    %v894 = vunpack.c.h.b16 %v607
    %v895 = vunpack.c.l.b16 %v608
    %v896 = vunpack.c.h.b16 %v608
    %v897 = vunpack.c.l.b16 %v609
    %v898 = vunpack.c.h.b16 %v609
    %v899 = vunpack.c.l.b16 %v610
    %v900 = vunpack.c.h.b16 %v610
    %v901 = vunpack.c.l.b16 %v611
    %v902 = vunpack.c.h.b16 %v611
    %v903 = vunpack.c.l.b16 %v612
    %v904 = vunpack.c.h.b16 %v612
    %v905 = vunpack.c.l.b16 %v613
    %v906 = vunpack.c.h.b16 %v613
    %v907 = vunpack.c.l.b16 %v614
    %v908 = vunpack.c.h.b16 %v614
    %v909 = vunpack.c.l.b16 %v615
    %v910 = vunpack.c.h.b16 %v615
    %v911 = vunpack.c.l.b16 %v616
    %v912 = vunpack.c.h.b16 %v616
    %v913 = vunpack.c.l.b16 %v617
    %v914 = vunpack.c.h.b16 %v617
    %v915 = vunpack.c.l.b16 %v618
    %v916 = vunpack.c.h.b16 %v618
    %v917 = vunpack.c.l.b16 %v619
    %v918 = vunpack.c.h.b16 %v619
    %v919 = vunpack.c.l.b16 %v620
    %v920 = vunpack.c.h.b16 %v620
    %v921 = vunpack.c.l.b16 %v621
    %v922 = vunpack.c.h.b16 %v621
    %v923 = vunpack.c.l.b16 %v622
    %v924 = vunpack.c.h.b16 %v622
    %v925 = vunpack.c.l.b16 %v623
    %v926 = vunpack.c.h.b16 %v623
    %v927 = vunpack.c.l.b16 %v624
    %v928 = vunpack.c.h.b16 %v624
    %v929 = vunpack.c.l.b16 %v625
    %v930 = vunpack.c.h.b16 %v625
    %v931 = vunpack.c.l.b16 %v626
    %v932 = vunpack.c.h.b16 %v626
    %v933 = vunpack.c.l.b16 %v627
    %v934 = vunpack.c.h.b16 %v627
    %v935 = vunpack.c.l.b16 %v628
    %v936 = vunpack.c.h.b16 %v628
    %v937 = vunpack.c.l.b16 %v629
    %v938 = vunpack.c.h.b16 %v629
    %v939 = vunpack.c.l.b16 %v630
    %v940 = vunpack.c.h.b16 %v630
    %v941 = vunpack.c.l.b16 %v631
    %v942 = vunpack.c.h.b16 %v631
    %v943 = vunpack.c.l.b16 %v632
    %v944 = vunpack.c.h.b16 %v632
    %v945 = vunpack.c.l.b16 %v633
    %v946 = vunpack.c.h.b16 %v633
    %v947 = vunpack.c.l.b16 %v634
    %v948 = vunpack.c.h.b16 %v634
    %v949 = vunpack.c.l.b16 %v635
    %v950 = vunpack.c.h.b16 %v635
    %v951 = vunpack.c.l.b16 %v636
    %v952 = vunpack.c.h.b16 %v636
    %v953 = vunpack.c.l.b16 %v637
    %v954 = vunpack.c.h.b16 %v637
    %v955 = vunpack.c.l.b16 %v638
    %v956 = vunpack.c.h.b16 %v638
    %v957 = vunpack.c.l.b16 %v639
    %v958 = vunpack.c.h.b16 %v639
    %v959 = vunpack.c.l.b16 %v640
    %v960 = vunpack.c.h.b16 %v640
    %v961 = vunpack.c.l.b16 %v641
    %v962 = vunpack.c.h.b16 %v641
    %v963 = vunpack.c.l.b16 %v642
    %v964 = vunpack.c.h.b16 %v642
    %v965 = vunpack.c.l.b16 %v643
    %v966 = vunpack.c.h.b16 %v643
    %v967 = vunpack.c.l.b16 %v644
    %v968 = vunpack.c.h.b16 %v644
    %v969 = vunpack.c.l.b16 %v645
    %v970 = vunpack.c.h.b16 %v645
    %v971 = vunpack.c.l.b16 %v646
    %v972 = vunpack.c.h.b16 %v646
    %v973 = vunpack.c.l.b16 %v647
    %v974 = vunpack.c.h.b16 %v647
    %v975 = vunpack.c.l.b16 %v648
    %v976 = vunpack.c.h.b16 %v648
    %v977 = vunpack.c.l.b16 %v649
    %v978 = vunpack.c.h.b16 %v649
    %v979 = vunpack.c.l.b16 %v650
    %v980 = vunpack.c.h.b16 %v650
    %v981 = vunpack.c.l.b16 %v651
    %v982 = vunpack.c.h.b16 %v651
    %v983 = vunpack.c.l.b16 %v652
    %v984 = vunpack.c.h.b16 %v652
    %v985 = vunpack.c.l.b16 %v653
    %v986 = vunpack.c.h.b16 %v653
    %v987 = vunpack.c.l.b16 %v654
    %v988 = vunpack.c.h.b16 %v654
    %v989 = vunpack.c.l.b16 %v655
    %v990 = vunpack.c.h.b16 %v655
    %v991 = vunpack.c.l.b16 %v656
    %v992 = vunpack.c.h.b16 %v656
    %v993 = vunpack.c.l.b16 %v657
    %v994 = vunpack.c.h.b16 %v657
    %v995 = vunpack.c.l.b16 %v658
    %v996 = vunpack.c.h.b16 %v658
    %v997 = vunpack.c.l.b16 %v659
    %v998 = vunpack.c.h.b16 %v659
    %v999 = vunpack.c.l.b16 %v660
    %v1000 = vunpack.c.h.b16 %v660
    %v1001 = vunpack.c.l.b16 %v661
    %v1002 = vunpack.c.h.b16 %v661
    %v1003 = vunpack.c.l.b16 %v662
    %v1004 = vunpack.c.h.b16 %v662
    %v1005 = vunpack.c.l.b16 %v663
    %v1006 = vunpack.c.h.b16 %v663
    %v1007 = vunpack.c.l.b16 %v664
    %v1008 = vunpack.c.h.b16 %v664
    %v1009 = vunpack.c.l.b16 %v665
    %v1010 = vunpack.c.h.b16 %v665
    %v1011 = vunpack.c.l.b16 %v666
    %v1012 = vunpack.c.h.b16 %v666
    %v1013 = vunpack.c.l.b16 %v667
    %v1014 = vunpack.c.h.b16 %v667
    %v1015 = vunpack.c.l.b16 %v668
    %v1016 = vunpack.c.h.b16 %v668
    %v1017 = vunpack.c.l.b16 %v669
    %v1018 = vunpack.c.h.b16 %v669
    %v1019 = vunpack.c.l.b16 %v670
    %v1020 = vunpack.c.h.b16 %v670
    %v1021 = vunpack.c.l.b16 %v671
    %v1022 = vunpack.c.h.b16 %v671
    %v1023 = vunpack.c.l.b16 %v672
    %v1024 = vunpack.c.h.b16 %v672
    %v1025 = vunpack.c.l.b16 %v673
    %v1026 = vunpack.c.h.b16 %v673
    %v1027 = vunpack.c.l.b16 %v674
    %v1028 = vunpack.c.h.b16 %v674
    %v1029 = vunpack.c.l.b16 %v675
    %v1030 = vunpack.c.h.b16 %v675
    %v1031 = vunpack.c.l.b16 %v676
    %v1032 = vunpack.c.h.b16 %v676
    %v1033 = vunpack.c.l.b16 %v677
    %v1034 = vunpack.c.h.b16 %v677
    %v1035 = vunpack.c.l.b16 %v678
    %v1036 = vunpack.c.h.b16 %v678
    %v1037 = vunpack.c.l.b16 %v679
    %v1038 = vunpack.c.h.b16 %v679
    %v1039 = vunpack.c.l.b16 %v680
    %v1040 = vunpack.c.h.b16 %v680
    %v1041 = vunpack.c.l.b16 %v681
    %v1042 = vunpack.c.h.b16 %v681
    %v1043 = vunpack.c.l.b16 %v682
    %v1044 = vunpack.c.h.b16 %v682
    %v1045 = vunpack.c.l.b16 %v683
    %v1046 = vunpack.c.h.b16 %v683
    %v1047 = vunpack.c.l.b16 %v684
    %v1048 = vunpack.c.h.b16 %v684
    %v1049 = vunpack.c.l.b16 %v685
    %v1050 = vunpack.c.h.b16 %v685
    %v1051 = vunpack.c.l.b16 %v686
    %v1052 = vunpack.c.h.b16 %v686
    %v1053 = vunpack.c.l.b16 %v687
    %v1054 = vunpack.c.h.b16 %v687
    %v1055 = vunpack.c.l.b16 %v688
    %v1056 = vunpack.c.h.b16 %v688
    %v1057 = vunpack.c.l.b16 %v689
    %v1058 = vunpack.c.h.b16 %v689
    %v1059 = vunpack.c.l.b16 %v690
    %v1060 = vunpack.c.h.b16 %v690
    %v1061 = vunpack.c.l.b16 %v691
    %v1062 = vunpack.c.h.b16 %v691
    %v1063 = vunpack.c.l.b16 %v692
    %v1064 = vunpack.c.h.b16 %v692
    %v1065 = vunpack.c.l.b16 %v693
    %v1066 = vunpack.c.h.b16 %v693
    %v1067 = vunpack.c.l.b16 %v694
    %v1068 = vunpack.c.h.b16 %v694
    %v1069 = vunpack.c.l.b16 %v695
    %v1070 = vunpack.c.h.b16 %v695
    %v1071 = vunpack.c.l.b16 %v696
    %v1072 = vunpack.c.h.b16 %v696
    %v1073 = vunpack.c.l.b16 %v697
    %v1074 = vunpack.c.h.b16 %v697
    %v1075 = vunpack.c.l.b16 %v698
    %v1076 = vunpack.c.h.b16 %v698
    %v1077 = vunpack.c.l.b16 %v699
    %v1078 = vunpack.c.h.b16 %v699
    %v1079 = vunpack.c.l.b16 %v700
    %v1080 = vunpack.c.h.b16 %v700
    %v1081 = vunpack.c.l.b16 %v701
    %v1082 = vunpack.c.h.b16 %v701
    %v1083 = vunpack.c.l.b16 %v702
    %v1084 = vunpack.c.h.b16 %v702
    %v1085 = vunpack.c.l.b16 %v703
    %v1086 = vunpack.c.h.b16 %v703
    %v1087 = vunpack.c.l.b16 %v704
    %v1088 = vunpack.c.h.b16 %v704
    %v1089 = vunpack.c.l.b16 %v705
    %v1090 = vunpack.c.h.b16 %v705
    %v1091 = vunpack.c.l.b16 %v706
    %v1092 = vunpack.c.h.b16 %v706
    %v1093 = vunpack.c.l.b16 %v707
    %v1094 = vunpack.c.h.b16 %v707
    %v1095 = vunpack.c.l.b16 %v708
    %v1096 = vunpack.c.h.b16 %v708
    %v1097 = vunpack.c.l.b16 %v709
    %v1098 = vunpack.c.h.b16 %v709
    %v1099 = vunpack.c.l.b16 %v710
    %v1100 = vunpack.c.h.b16 %v710
    %v1101 = vunpack.c.l.b16 %v711
    %v1102 = vunpack.c.h.b16 %v711
    %v1103 = vunpack.c.l.b16 %v712
    %v1104 = vunpack.c.h.b16 %v712
    %v1105 = vunpack.c.l.b16 %v713
    %v1106 = vunpack.c.h.b16 %v713
    %v1107 = vunpack.c.l.b16 %v714
    %v1108 = vunpack.c.h.b16 %v714
    %v1109 = vunpack.c.l.b16 %v715
    %v1110 = vunpack.c.h.b16 %v715
    %v1111 = vunpack.c.l.b16 %v716
    %v1112 = vunpack.c.h.b16 %v716
    %v1113 = vunpack.c.l.b16 %v717
    %v1114 = vunpack.c.h.b16 %v717
    %v1115 = vunpack.c.l.b16 %v718
    %v1116 = vunpack.c.h.b16 %v718
    %v1117 = vunpack.c.l.b16 %v719
    %v1118 = vunpack.c.h.b16 %v719
    %v1119 = vunpack.c.l.b16 %v720
    %v1120 = vunpack.c.h.b16 %v720
    %v1121 = vunpack.c.l.b16 %v721
    %v1122 = vunpack.c.h.b16 %v721
    %v1123 = vunpack.c.l.b16 %v722
    %v1124 = vunpack.c.h.b16 %v722
    %v1125 = vunpack.c.l.b16 %v723
    %v1126 = vunpack.c.h.b16 %v723
    %v1127 = vunpack.c.l.b16 %v724
    %v1128 = vunpack.c.h.b16 %v724
    %v1129 = vunpack.c.l.b16 %v725
    %v1130 = vunpack.c.h.b16 %v725
    %v1131 = vunpack.c.l.b16 %v726
    %v1132 = vunpack.c.h.b16 %v726
    %v1133 = vpack.c.b16 %v881, %v877
    %v1134 = vpack.c.b16 %v882, %v878
    %v1135 = vpack.c.b16 %v883, %v879
    %v1136 = vpack.c.b16 %v884, %v880
    %v1137 = vpack.c.b16 %v889, %v885
    %v1138 = vpack.c.b16 %v890, %v886
    %v1139 = vpack.c.b16 %v891, %v887
    %v1140 = vpack.c.b16 %v892, %v888
    %v1141 = vpack.c.b16 %v897, %v893
    %v1142 = vpack.c.b16 %v898, %v894
    %v1143 = vpack.c.b16 %v899, %v895
    %v1144 = vpack.c.b16 %v900, %v896
    %v1145 = vpack.c.b16 %v905, %v901
    %v1146 = vpack.c.b16 %v906, %v902
    %v1147 = vpack.c.b16 %v907, %v903
    %v1148 = vpack.c.b16 %v908, %v904
    %v1149 = vpack.c.b16 %v913, %v909
    %v1150 = vpack.c.b16 %v914, %v910
    %v1151 = vpack.c.b16 %v915, %v911
    %v1152 = vpack.c.b16 %v916, %v912
    %v1153 = vpack.c.b16 %v921, %v917
    %v1154 = vpack.c.b16 %v922, %v918
    %v1155 = vpack.c.b16 %v923, %v919
    %v1156 = vpack.c.b16 %v924, %v920
    %v1157 = vpack.c.b16 %v929, %v925
    %v1158 = vpack.c.b16 %v930, %v926
    %v1159 = vpack.c.b16 %v931, %v927
    %v1160 = vpack.c.b16 %v932, %v928
    %v1161 = vpack.c.b16 %v937, %v933
    %v1162 = vpack.c.b16 %v938, %v934
    %v1163 = vpack.c.b16 %v939, %v935
    %v1164 = vpack.c.b16 %v940, %v936
    %v1165 = vpack.c.b16 %v945, %v941
    %v1166 = vpack.c.b16 %v946, %v942
    %v1167 = vpack.c.b16 %v947, %v943
    %v1168 = vpack.c.b16 %v948, %v944
    %v1169 = vpack.c.b16 %v953, %v949
    %v1170 = vpack.c.b16 %v954, %v950
    %v1171 = vpack.c.b16 %v955, %v951
    %v1172 = vpack.c.b16 %v956, %v952
    %v1173 = vpack.c.b16 %v961, %v957
    %v1174 = vpack.c.b16 %v962, %v958
    %v1175 = vpack.c.b16 %v963, %v959
    %v1176 = vpack.c.b16 %v964, %v960
    %v1177 = vpack.c.b16 %v969, %v965
    %v1178 = vpack.c.b16 %v970, %v966
    %v1179 = vpack.c.b16 %v971, %v967
    %v1180 = vpack.c.b16 %v972, %v968
    %v1181 = vpack.c.b16 %v977, %v973
    %v1182 = vpack.c.b16 %v978, %v974
    %v1183 = vpack.c.b16 %v979, %v975
    %v1184 = vpack.c.b16 %v980, %v976
    %v1185 = vpack.c.b16 %v985, %v981
    %v1186 = vpack.c.b16 %v986, %v982
    %v1187 = vpack.c.b16 %v987, %v983
    %v1188 = vpack.c.b16 %v988, %v984
    %v1189 = vpack.c.b16 %v993, %v989
    %v1190 = vpack.c.b16 %v994, %v990
    %v1191 = vpack.c.b16 %v995, %v991
    %v1192 = vpack.c.b16 %v996, %v992
    %v1193 = vpack.c.b16 %v1001, %v997
    %v1194 = vpack.c.b16 %v1002, %v998
    %v1195 = vpack.c.b16 %v1003, %v999
    %v1196 = vpack.c.b16 %v1004, %v1000
    %v1197 = vpack.c.b16 %v1009, %v1005
    %v1198 = vpack.c.b16 %v1010, %v1006
    %v1199 = vpack.c.b16 %v1011, %v1007
    %v1200 = vpack.c.b16 %v1012, %v1008
    %v1201 = vpack.c.b16 %v1017, %v1013
    %v1202 = vpack.c.b16 %v1018, %v1014
    %v1203 = vpack.c.b16 %v1019, %v1015
    %v1204 = vpack.c.b16 %v1020, %v1016
    %v1205 = vpack.c.b16 %v1025, %v1021
    %v1206 = vpack.c.b16 %v1026, %v1022
    %v1207 = vpack.c.b16 %v1027, %v1023
    %v1208 = vpack.c.b16 %v1028, %v1024
    %v1209 = vpack.c.b16 %v1033, %v1029
    %v1210 = vpack.c.b16 %v1034, %v1030
    %v1211 = vpack.c.b16 %v1035, %v1031
    %v1212 = vpack.c.b16 %v1036, %v1032
    %v1213 = vpack.c.b16 %v1041, %v1037
    %v1214 = vpack.c.b16 %v1042, %v1038
    %v1215 = vpack.c.b16 %v1043, %v1039
    %v1216 = vpack.c.b16 %v1044, %v1040
    %v1217 = vpack.c.b16 %v1049, %v1045
    %v1218 = vpack.c.b16 %v1050, %v1046
    %v1219 = vpack.c.b16 %v1051, %v1047
    %v1220 = vpack.c.b16 %v1052, %v1048
    %v1221 = vpack.c.b16 %v1057, %v1053
    %v1222 = vpack.c.b16 %v1058, %v1054
    %v1223 = vpack.c.b16 %v1059, %v1055
    %v1224 = vpack.c.b16 %v1060, %v1056
    %v1225 = vpack.c.b16 %v1065, %v1061
    %v1226 = vpack.c.b16 %v1066, %v1062
    %v1227 = vpack.c.b16 %v1067, %v1063
    %v1228 = vpack.c.b16 %v1068, %v1064
    %v1229 = vpack.c.b16 %v1073, %v1069
    %v1230 = vpack.c.b16 %v1074, %v1070
    %v1231 = vpack.c.b16 %v1075, %v1071
    %v1232 = vpack.c.b16 %v1076, %v1072
    %v1233 = vpack.c.b16 %v1081, %v1077
    %v1234 = vpack.c.b16 %v1082, %v1078
    %v1235 = vpack.c.b16 %v1083, %v1079
    %v1236 = vpack.c.b16 %v1084, %v1080
    %v1237 = vpack.c.b16 %v1089, %v1085
    %v1238 = vpack.c.b16 %v1090, %v1086
    %v1239 = vpack.c.b16 %v1091, %v1087
    %v1240 = vpack.c.b16 %v1092, %v1088
    %v1241 = vpack.c.b16 %v1097, %v1093
    %v1242 = vpack.c.b16 %v1098, %v1094
    %v1243 = vpack.c.b16 %v1099, %v1095
    %v1244 = vpack.c.b16 %v1100, %v1096
    %v1245 = vpack.c.b16 %v1105, %v1101
    %v1246 = vpack.c.b16 %v1106, %v1102
    %v1247 = vpack.c.b16 %v1107, %v1103
    %v1248 = vpack.c.b16 %v1108, %v1104
    %v1249 = vpack.c.b16 %v1113, %v1109
    %v1250 = vpack.c.b16 %v1114, %v1110
    %v1251 = vpack.c.b16 %v1115, %v1111
    %v1252 = vpack.c.b16 %v1116, %v1112
    %v1253 = vpack.c.b16 %v1121, %v1117
    %v1254 = vpack.c.b16 %v1122, %v1118
    %v1255 = vpack.c.b16 %v1123, %v1119
    %v1256 = vpack.c.b16 %v1124, %v1120
    %v1257 = vpack.c.b16 %v1129, %v1125
    %v1258 = vpack.c.b16 %v1130, %v1126
    %v1259 = vpack.c.b16 %v1131, %v1127
    %v1260 = vpack.c.b16 %v1132, %v1128
    %1389 = vmatprep.subr.bf16.mxu0 %v1134
    %1390 = vmatpush1.bf16.msra.mxu0 %v1133
    %1391 = vmatprep.subr.bf16.mxu0 %v1138
    %1392 = vmatpush1.bf16.msra.mxu0 %v1137
    %1393 = vmatprep.subr.bf16.mxu0 %v1142
    %1394 = vmatpush1.bf16.msra.mxu0 %v1141
    %1395 = vmatprep.subr.bf16.mxu0 %v1146
    %1396 = vmatpush1.bf16.msra.mxu0 %v1145
    %1397 = vmatprep.subr.bf16.mxu0 %v1150
    %1398 = vmatpush1.bf16.msra.mxu0 %v1149
    %1399 = vmatprep.subr.bf16.mxu0 %v1154
    %1400 = vmatpush1.bf16.msra.mxu0 %v1153
    %1401 = vmatprep.subr.bf16.mxu0 %v1158
    %1402 = vmatpush1.bf16.msra.mxu0 %v1157
    %1403 = vmatprep.subr.bf16.mxu0 %v1162
    %1404 = vmatpush1.bf16.msra.mxu0 %v1161
    %1405 = vmatprep.subr.bf16.mxu0 %v1166
    %1406 = vmatpush1.bf16.msra.mxu0 %v1165
    %1407 = vmatprep.subr.bf16.mxu0 %v1170
    %1408 = vmatpush1.bf16.msra.mxu0 %v1169
    %1409 = vmatprep.subr.bf16.mxu0 %v1174
    %1410 = vmatpush1.bf16.msra.mxu0 %v1173
    %1411 = vmatprep.subr.bf16.mxu0 %v1178
    %1412 = vmatpush1.bf16.msra.mxu0 %v1177
    %1413 = vmatprep.subr.bf16.mxu0 %v1182
    %1414 = vmatpush1.bf16.msra.mxu0 %v1181
    %1415 = vmatprep.subr.bf16.mxu0 %v1186
    %1416 = vmatpush1.bf16.msra.mxu0 %v1185
    %1417 = vmatprep.subr.bf16.mxu0 %v1190
    %1418 = vmatpush1.bf16.msra.mxu0 %v1189
    %1419 = vmatprep.subr.bf16.mxu0 %v1194
    %1420 = vmatpush1.bf16.msra.mxu0 %v1193
    %1421 = vmatprep.mubr.bf16.mxu0 %v596
    %1422 = vmatmul.mubr.bf16.gmra.mrb[0].mxu0 %v595
    %v1423 = vpop.f32.mrb[0].mxu0
    %v1424 = vadd.f32 %v732, %v1423
    %v1425 = vpop.f32.mrb[0].mxu0
    %v1426 = vadd.f32 %v736, %v1425
    %v1427 = vpop.f32.mrb[0].mxu0
    %v1428 = vadd.f32 %v732, %v1427
    %v1429 = vpop.f32.mrb[0].mxu0
    %v1430 = vadd.f32 %v736, %v1429
    %1431 = vdwg.mxu0
    %1432 = vmatprep.subr.bf16.mxu0 %v1198
    %1433 = vmatpush1.bf16.msra.mxu0 %v1197
    %1434 = vmatprep.subr.bf16.mxu0 %v1202
    %1435 = vmatpush1.bf16.msra.mxu0 %v1201
    %1436 = vmatprep.subr.bf16.mxu0 %v1206
    %1437 = vmatpush1.bf16.msra.mxu0 %v1205
    %1438 = vmatprep.subr.bf16.mxu0 %v1210
    %1439 = vmatpush1.bf16.msra.mxu0 %v1209
    %1440 = vmatprep.subr.bf16.mxu0 %v1214
    %1441 = vmatpush1.bf16.msra.mxu0 %v1213
    %1442 = vmatprep.subr.bf16.mxu0 %v1218
    %1443 = vmatpush1.bf16.msra.mxu0 %v1217
    %1444 = vmatprep.subr.bf16.mxu0 %v1222
    %1445 = vmatpush1.bf16.msra.mxu0 %v1221
    %1446 = vmatprep.subr.bf16.mxu0 %v1226
    %1447 = vmatpush1.bf16.msra.mxu0 %v1225
    %1448 = vmatprep.subr.bf16.mxu0 %v1230
    %1449 = vmatpush1.bf16.msra.mxu0 %v1229
    %1450 = vmatprep.subr.bf16.mxu0 %v1234
    %1451 = vmatpush1.bf16.msra.mxu0 %v1233
    %1452 = vmatprep.subr.bf16.mxu0 %v1238
    %1453 = vmatpush1.bf16.msra.mxu0 %v1237
    %1454 = vmatprep.subr.bf16.mxu0 %v1242
    %1455 = vmatpush1.bf16.msra.mxu0 %v1241
    %1456 = vmatprep.subr.bf16.mxu0 %v1246
    %1457 = vmatpush1.bf16.msra.mxu0 %v1245
    %1458 = vmatprep.subr.bf16.mxu0 %v1250
    %1459 = vmatpush1.bf16.msra.mxu0 %v1249
    %1460 = vmatprep.subr.bf16.mxu0 %v1254
    %1461 = vmatpush1.bf16.msra.mxu0 %v1253
    %1462 = vmatprep.subr.bf16.mxu0 %v1258
    %1463 = vmatpush1.bf16.msra.mxu0 %v1257
    %1464 = vmatprep.mubr.bf16.mxu0 %v598
    %1465 = vmatmul.mubr.bf16.gmra.mrb[0].mxu0 %v597
    %v1466 = vpop.f32.mrb[0].mxu0
    %v1467 = vadd.f32 %v1424, %v1466
    %v1468 = vpop.f32.mrb[0].mxu0
    %v1469 = vadd.f32 %v1426, %v1468
    %v1470 = vpop.f32.mrb[0].mxu0
    %v1471 = vadd.f32 %v1428, %v1470
    %v1472 = vpop.f32.mrb[0].mxu0
    %v1473 = vadd.f32 %v1430, %v1472
    %1474 = vdwg.mxu0
    %1475 = vmatprep.subr.bf16.mxu0 %v1136
    %1476 = vmatpush1.bf16.msra.mxu0 %v1135
    %1477 = vmatprep.subr.bf16.mxu0 %v1140
    %1478 = vmatpush1.bf16.msra.mxu0 %v1139
    %1479 = vmatprep.subr.bf16.mxu0 %v1144
    %1480 = vmatpush1.bf16.msra.mxu0 %v1143
    %1481 = vmatprep.subr.bf16.mxu0 %v1148
    %1482 = vmatpush1.bf16.msra.mxu0 %v1147
    %1483 = vmatprep.subr.bf16.mxu0 %v1152
    %1484 = vmatpush1.bf16.msra.mxu0 %v1151
    %1485 = vmatprep.subr.bf16.mxu0 %v1156
    %1486 = vmatpush1.bf16.msra.mxu0 %v1155
    %1487 = vmatprep.subr.bf16.mxu0 %v1160
    %1488 = vmatpush1.bf16.msra.mxu0 %v1159
    %1489 = vmatprep.subr.bf16.mxu0 %v1164
    %1490 = vmatpush1.bf16.msra.mxu0 %v1163
    %1491 = vmatprep.subr.bf16.mxu0 %v1168
    %1492 = vmatpush1.bf16.msra.mxu0 %v1167
    %1493 = vmatprep.subr.bf16.mxu0 %v1172
    %1494 = vmatpush1.bf16.msra.mxu0 %v1171
    %1495 = vmatprep.subr.bf16.mxu0 %v1176
    %1496 = vmatpush1.bf16.msra.mxu0 %v1175
    %1497 = vmatprep.subr.bf16.mxu0 %v1180
    %1498 = vmatpush1.bf16.msra.mxu0 %v1179
    %1499 = vmatprep.subr.bf16.mxu0 %v1184
    %1500 = vmatpush1.bf16.msra.mxu0 %v1183
    %1501 = vmatprep.subr.bf16.mxu0 %v1188
    %1502 = vmatpush1.bf16.msra.mxu0 %v1187
    %1503 = vmatprep.subr.bf16.mxu0 %v1192
    %1504 = vmatpush1.bf16.msra.mxu0 %v1191
    %1505 = vmatprep.subr.bf16.mxu0 %v1196
    %1506 = vmatpush1.bf16.msra.mxu0 %v1195
    %1507 = vmatprep.mubr.bf16.mxu0 %v596
    %1508 = vmatmul.mubr.bf16.gmra.mrb[0].mxu0 %v595
    %v1509 = vpop.f32.mrb[0].mxu0
    %v1510 = vadd.f32 %v740, %v1509
    %v1511 = vpop.f32.mrb[0].mxu0
    %v1512 = vadd.f32 %v744, %v1511
    %v1513 = vpop.f32.mrb[0].mxu0
    %v1514 = vadd.f32 %v740, %v1513
    %v1515 = vpop.f32.mrb[0].mxu0
    %v1516 = vadd.f32 %v744, %v1515
    %1517 = vdwg.mxu0
    %1518 = vmatprep.subr.bf16.mxu0 %v1200
    %1519 = vmatpush1.bf16.msra.mxu0 %v1199
    %1520 = vmatprep.subr.bf16.mxu0 %v1204
    %1521 = vmatpush1.bf16.msra.mxu0 %v1203
    %1522 = vmatprep.subr.bf16.mxu0 %v1208
    %1523 = vmatpush1.bf16.msra.mxu0 %v1207
    %1524 = vmatprep.subr.bf16.mxu0 %v1212
    %1525 = vmatpush1.bf16.msra.mxu0 %v1211
    %1526 = vmatprep.subr.bf16.mxu0 %v1216
    %1527 = vmatpush1.bf16.msra.mxu0 %v1215
    %1528 = vmatprep.subr.bf16.mxu0 %v1220
    %1529 = vmatpush1.bf16.msra.mxu0 %v1219
    %1530 = vmatprep.subr.bf16.mxu0 %v1224
    %1531 = vmatpush1.bf16.msra.mxu0 %v1223
    %1532 = vmatprep.subr.bf16.mxu0 %v1228
    %1533 = vmatpush1.bf16.msra.mxu0 %v1227
    %1534 = vmatprep.subr.bf16.mxu0 %v1232
    %1535 = vmatpush1.bf16.msra.mxu0 %v1231
    %1536 = vmatprep.subr.bf16.mxu0 %v1236
    %1537 = vmatpush1.bf16.msra.mxu0 %v1235
    %1538 = vmatprep.subr.bf16.mxu0 %v1240
    %1539 = vmatpush1.bf16.msra.mxu0 %v1239
    %1540 = vmatprep.subr.bf16.mxu0 %v1244
    %1541 = vmatpush1.bf16.msra.mxu0 %v1243
    %1542 = vmatprep.subr.bf16.mxu0 %v1248
    %1543 = vmatpush1.bf16.msra.mxu0 %v1247
    %1544 = vmatprep.subr.bf16.mxu0 %v1252
    %1545 = vmatpush1.bf16.msra.mxu0 %v1251
    %1546 = vmatprep.subr.bf16.mxu0 %v1256
    %1547 = vmatpush1.bf16.msra.mxu0 %v1255
    %1548 = vmatprep.subr.bf16.mxu0 %v1260
    %1549 = vmatpush1.bf16.msra.mxu0 %v1259
    %1550 = vmatprep.mubr.bf16.mxu0 %v598
    %1551 = vmatmul.mubr.bf16.gmra.mrb[0].mxu0 %v597
    %v1552 = vpop.f32.mrb[0].mxu0
    %v1553 = vadd.f32 %v1510, %v1552
    %v1554 = vpop.f32.mrb[0].mxu0
    %v1555 = vadd.f32 %v1512, %v1554
    %v1556 = vpop.f32.mrb[0].mxu0
    %v1557 = vadd.f32 %v1514, %v1556
    %v1558 = vpop.f32.mrb[0].mxu0
    %v1559 = vadd.f32 %v1516, %v1558
    %1560 = vdwg.mxu0
    %v1561 = vmax.f32 %v1467, 0.0
    %v1562 = vmax.f32 %v1469, 0.0
    %v1563 = vmax.f32 %v1553, 0.0
    %v1564 = vmax.f32 %v1555, 0.0
    %v1565 = vmax.f32 %v1471, 0.0
    %v1566 = vmax.f32 %v1473, 0.0
    %v1567 = vmax.f32 %v1557, 0.0
    %v1568 = vmax.f32 %v1559, 0.0
    %v1569 = vpack.c.bf16 %v1565, %v1561
    %v1570 = vpack.c.bf16 %v1566, %v1562
    %v1571 = vpack.c.bf16 %v1567, %v1563
    %v1572 = vpack.c.bf16 %v1568, %v1564
    %v1573 = vld [vmem:[#allocation8] sm:$0xf]
    %v1574 = vld [vmem:[#allocation8 + $0x4] sm:$0xf]
    %v1575 = vld [vmem:[#allocation8 + $0x8] sm:$0xf]
    %v1576 = vld [vmem:[#allocation8 + $0xc] sm:$0xf]
    %v1577 = vld [vmem:[#allocation8 + $0x10] sm:$0xf]
    %v1578 = vld [vmem:[#allocation8 + $0x14] sm:$0xf]
    %v1579 = vld [vmem:[#allocation8 + $0x18] sm:$0xf]
    %v1580 = vld [vmem:[#allocation8 + $0x1c] sm:$0xf]
    %v1581 = vld [vmem:[#allocation8 + $0x20] sm:$0xf]
    %v1582 = vld [vmem:[#allocation8 + $0x24] sm:$0xf]
    %v1583 = vld [vmem:[#allocation8 + $0x28] sm:$0xf]
    %v1584 = vld [vmem:[#allocation8 + $0x2c] sm:$0xf]
    %v1585 = vld [vmem:[#allocation8 + $0x30] sm:$0xf]
    %v1586 = vld [vmem:[#allocation8 + $0x34] sm:$0xf]
    %v1587 = vld [vmem:[#allocation8 + $0x38] sm:$0xf]
    %v1588 = vld [vmem:[#allocation8 + $0x3c] sm:$0xf]
    %v1589 = vld [vmem:[#allocation8 + $0x40] sm:$0xf]
    %v1590 = vld [vmem:[#allocation8 + $0x44] sm:$0xf]
    %v1591 = vld [vmem:[#allocation8 + $0x48] sm:$0xf]
    %v1592 = vld [vmem:[#allocation8 + $0x4c] sm:$0xf]
    %v1593 = vld [vmem:[#allocation8 + $0x50] sm:$0xf]
    %v1594 = vld [vmem:[#allocation8 + $0x54] sm:$0xf]
    %v1595 = vld [vmem:[#allocation8 + $0x58] sm:$0xf]
    %v1596 = vld [vmem:[#allocation8 + $0x5c] sm:$0xf]
    %v1597 = vld [vmem:[#allocation8 + $0x60] sm:$0xf]
    %v1598 = vld [vmem:[#allocation8 + $0x64] sm:$0xf]
    %v1599 = vld [vmem:[#allocation8 + $0x68] sm:$0xf]
    %v1600 = vld [vmem:[#allocation8 + $0x6c] sm:$0xf]
    %v1601 = vld [vmem:[#allocation8 + $0x70] sm:$0xf]
    %v1602 = vld [vmem:[#allocation8 + $0x74] sm:$0xf]
    %v1603 = vld [vmem:[#allocation8 + $0x78] sm:$0xf]
    %v1604 = vld [vmem:[#allocation8 + $0x7c] sm:$0xf]
    %v1605 = vld [vmem:[#allocation8 + $0x80] sm:$0xf]
    %v1606 = vld [vmem:[#allocation8 + $0x84] sm:$0xf]
    %v1607 = vld [vmem:[#allocation8 + $0x88] sm:$0xf]
    %v1608 = vld [vmem:[#allocation8 + $0x8c] sm:$0xf]
    %v1609 = vld [vmem:[#allocation8 + $0x90] sm:$0xf]
    %v1610 = vld [vmem:[#allocation8 + $0x94] sm:$0xf]
    %v1611 = vld [vmem:[#allocation8 + $0x98] sm:$0xf]
    %v1612 = vld [vmem:[#allocation8 + $0x9c] sm:$0xf]
    %v1613 = vld [vmem:[#allocation8 + $0xa0] sm:$0xf]
    %v1614 = vld [vmem:[#allocation8 + $0xa4] sm:$0xf]
    %v1615 = vld [vmem:[#allocation8 + $0xa8] sm:$0xf]
    %v1616 = vld [vmem:[#allocation8 + $0xac] sm:$0xf]
    %v1617 = vld [vmem:[#allocation8 + $0xb0] sm:$0xf]
    %v1618 = vld [vmem:[#allocation8 + $0xb4] sm:$0xf]
    %v1619 = vld [vmem:[#allocation8 + $0xb8] sm:$0xf]
    %v1620 = vld [vmem:[#allocation8 + $0xbc] sm:$0xf]
    %v1621 = vld [vmem:[#allocation8 + $0xc0] sm:$0xf]
    %v1622 = vld [vmem:[#allocation8 + $0xc4] sm:$0xf]
    %v1623 = vld [vmem:[#allocation8 + $0xc8] sm:$0xf]
    %v1624 = vld [vmem:[#allocation8 + $0xcc] sm:$0xf]
    %v1625 = vld [vmem:[#allocation8 + $0xd0] sm:$0xf]
    %v1626 = vld [vmem:[#allocation8 + $0xd4] sm:$0xf]
    %v1627 = vld [vmem:[#allocation8 + $0xd8] sm:$0xf]
    %v1628 = vld [vmem:[#allocation8 + $0xdc] sm:$0xf]
    %v1629 = vld [vmem:[#allocation8 + $0xe0] sm:$0xf]
    %v1630 = vld [vmem:[#allocation8 + $0xe4] sm:$0xf]
    %v1631 = vld [vmem:[#allocation8 + $0xe8] sm:$0xf]
    %v1632 = vld [vmem:[#allocation8 + $0xec] sm:$0xf]
    %v1633 = vld [vmem:[#allocation8 + $0xf0] sm:$0xf]
    %v1634 = vld [vmem:[#allocation8 + $0xf4] sm:$0xf]
    %v1635 = vld [vmem:[#allocation8 + $0xf8] sm:$0xf]
    %v1636 = vld [vmem:[#allocation8 + $0xfc] sm:$0xf]
    %v1637 = vld [vmem:[%s6] sm:$0x1]
    %v1639 = vlaneseq
    %v1640 = vshrl.u32 %v1639, 7
    %v1641 = vsub.s32 0, %v1640
    %v1642 = vrot.slane %v1637, %v1641
    %v1708 = vunpack.c.l.b16 %v1573
    %v1709 = vunpack.c.l.b16 %v1574
    %v1710 = vunpack.c.l.b16 %v1575
    %v1711 = vunpack.c.l.b16 %v1576
    %v1712 = vunpack.c.l.b16 %v1577
    %v1713 = vunpack.c.l.b16 %v1578
    %v1714 = vunpack.c.l.b16 %v1579
    %v1715 = vunpack.c.l.b16 %v1580
    %v1716 = vunpack.c.l.b16 %v1581
    %v1717 = vunpack.c.l.b16 %v1582
    %v1718 = vunpack.c.l.b16 %v1583
    %v1719 = vunpack.c.l.b16 %v1584
    %v1720 = vunpack.c.l.b16 %v1585
    %v1721 = vunpack.c.l.b16 %v1586
    %v1722 = vunpack.c.l.b16 %v1587
    %v1723 = vunpack.c.l.b16 %v1588
    %v1724 = vunpack.c.l.b16 %v1589
    %v1725 = vunpack.c.l.b16 %v1590
    %v1726 = vunpack.c.l.b16 %v1591
    %v1727 = vunpack.c.l.b16 %v1592
    %v1728 = vunpack.c.l.b16 %v1593
    %v1729 = vunpack.c.l.b16 %v1594
    %v1730 = vunpack.c.l.b16 %v1595
    %v1731 = vunpack.c.l.b16 %v1596
    %v1732 = vunpack.c.l.b16 %v1597
    %v1733 = vunpack.c.l.b16 %v1598
    %v1734 = vunpack.c.l.b16 %v1599
    %v1735 = vunpack.c.l.b16 %v1600
    %v1736 = vunpack.c.l.b16 %v1601
    %v1737 = vunpack.c.l.b16 %v1602
    %v1738 = vunpack.c.l.b16 %v1603
    %v1739 = vunpack.c.l.b16 %v1604
    %v1740 = vunpack.c.l.b16 %v1605
    %v1741 = vunpack.c.l.b16 %v1606
    %v1742 = vunpack.c.l.b16 %v1607
    %v1743 = vunpack.c.l.b16 %v1608
    %v1744 = vunpack.c.l.b16 %v1609
    %v1745 = vunpack.c.l.b16 %v1610
    %v1746 = vunpack.c.l.b16 %v1611
    %v1747 = vunpack.c.l.b16 %v1612
    %v1748 = vunpack.c.l.b16 %v1613
    %v1749 = vunpack.c.l.b16 %v1614
    %v1750 = vunpack.c.l.b16 %v1615
    %v1751 = vunpack.c.l.b16 %v1616
    %v1752 = vunpack.c.l.b16 %v1617
    %v1753 = vunpack.c.l.b16 %v1618
    %v1754 = vunpack.c.l.b16 %v1619
    %v1755 = vunpack.c.l.b16 %v1620
    %v1756 = vunpack.c.l.b16 %v1621
    %v1757 = vunpack.c.l.b16 %v1622
    %v1758 = vunpack.c.l.b16 %v1623
    %v1759 = vunpack.c.l.b16 %v1624
    %v1760 = vunpack.c.l.b16 %v1625
    %v1761 = vunpack.c.l.b16 %v1626
    %v1762 = vunpack.c.l.b16 %v1627
    %v1763 = vunpack.c.l.b16 %v1628
    %v1764 = vunpack.c.l.b16 %v1629
    %v1765 = vunpack.c.l.b16 %v1630
    %v1766 = vunpack.c.l.b16 %v1631
    %v1767 = vunpack.c.l.b16 %v1632
    %v1768 = vunpack.c.l.b16 %v1633
    %v1769 = vunpack.c.l.b16 %v1634
    %v1770 = vunpack.c.l.b16 %v1635
    %v1771 = vunpack.c.l.b16 %v1636
    %v1772 = vpack.c.b16 %v1709, %v1708
    %v1773 = vpack.c.b16 %v1711, %v1710
    %v1774 = vpack.c.b16 %v1713, %v1712
    %v1775 = vpack.c.b16 %v1715, %v1714
    %v1776 = vpack.c.b16 %v1717, %v1716
    %v1777 = vpack.c.b16 %v1719, %v1718
    %v1778 = vpack.c.b16 %v1721, %v1720
    %v1779 = vpack.c.b16 %v1723, %v1722
    %v1780 = vpack.c.b16 %v1725, %v1724
    %v1781 = vpack.c.b16 %v1727, %v1726
    %v1782 = vpack.c.b16 %v1729, %v1728
    %v1783 = vpack.c.b16 %v1731, %v1730
    %v1784 = vpack.c.b16 %v1733, %v1732
    %v1785 = vpack.c.b16 %v1735, %v1734
    %v1786 = vpack.c.b16 %v1737, %v1736
    %v1787 = vpack.c.b16 %v1739, %v1738
    %v1788 = vpack.c.b16 %v1741, %v1740
    %v1789 = vpack.c.b16 %v1743, %v1742
    %v1790 = vpack.c.b16 %v1745, %v1744
    %v1791 = vpack.c.b16 %v1747, %v1746
    %v1792 = vpack.c.b16 %v1749, %v1748
    %v1793 = vpack.c.b16 %v1751, %v1750
    %v1794 = vpack.c.b16 %v1753, %v1752
    %v1795 = vpack.c.b16 %v1755, %v1754
    %v1796 = vpack.c.b16 %v1757, %v1756
    %v1797 = vpack.c.b16 %v1759, %v1758
    %v1798 = vpack.c.b16 %v1761, %v1760
    %v1799 = vpack.c.b16 %v1763, %v1762
    %v1800 = vpack.c.b16 %v1765, %v1764
    %v1801 = vpack.c.b16 %v1767, %v1766
    %v1802 = vpack.c.b16 %v1769, %v1768
    %v1803 = vpack.c.b16 %v1771, %v1770
    %1836 = vmatprep.subr.bf16.mxu0 0
    %1837 = vmatpush1.bf16.msra.mxu0 %v1772
    %1838 = vmatprep.subr.bf16.mxu0 0
    %1839 = vmatpush1.bf16.msra.mxu0 %v1773
    %1840 = vmatprep.subr.bf16.mxu0 0
    %1841 = vmatpush1.bf16.msra.mxu0 %v1774
    %1842 = vmatprep.subr.bf16.mxu0 0
    %1843 = vmatpush1.bf16.msra.mxu0 %v1775
    %1844 = vmatprep.subr.bf16.mxu0 0
    %1845 = vmatpush1.bf16.msra.mxu0 %v1776
    %1846 = vmatprep.subr.bf16.mxu0 0
    %1847 = vmatpush1.bf16.msra.mxu0 %v1777
    %1848 = vmatprep.subr.bf16.mxu0 0
    %1849 = vmatpush1.bf16.msra.mxu0 %v1778
    %1850 = vmatprep.subr.bf16.mxu0 0
    %1851 = vmatpush1.bf16.msra.mxu0 %v1779
    %1852 = vmatprep.subr.bf16.mxu0 0
    %1853 = vmatpush1.bf16.msra.mxu0 %v1780
    %1854 = vmatprep.subr.bf16.mxu0 0
    %1855 = vmatpush1.bf16.msra.mxu0 %v1781
    %1856 = vmatprep.subr.bf16.mxu0 0
    %1857 = vmatpush1.bf16.msra.mxu0 %v1782
    %1858 = vmatprep.subr.bf16.mxu0 0
    %1859 = vmatpush1.bf16.msra.mxu0 %v1783
    %1860 = vmatprep.subr.bf16.mxu0 0
    %1861 = vmatpush1.bf16.msra.mxu0 %v1784
    %1862 = vmatprep.subr.bf16.mxu0 0
    %1863 = vmatpush1.bf16.msra.mxu0 %v1785
    %1864 = vmatprep.subr.bf16.mxu0 0
    %1865 = vmatpush1.bf16.msra.mxu0 %v1786
    %1866 = vmatprep.subr.bf16.mxu0 0
    %1867 = vmatpush1.bf16.msra.mxu0 %v1787
    %1868 = vmatprep.mubr.bf16.mxu0 %v1570
    %1869 = vmatmul.mubr.bf16.gmra.mrb[0].mxu0 %v1569
    %v1870 = vpop.f32.mrb[0].mxu0
    %v1871 = vadd.f32 %v1642, %v1870
    %v1872 = vpop.f32.mrb[0].mxu0
    %v1873 = vpop.f32.mrb[0].mxu0
    %v1874 = vadd.f32 %v1642, %v1873
    %v1875 = vpop.f32.mrb[0].mxu0
    %1876 = vdwg.mxu0
    %1877 = vmatprep.subr.bf16.mxu0 0
    %1878 = vmatpush1.bf16.msra.mxu0 %v1788
    %1879 = vmatprep.subr.bf16.mxu0 0
    %1880 = vmatpush1.bf16.msra.mxu0 %v1789
    %1881 = vmatprep.subr.bf16.mxu0 0
    %1882 = vmatpush1.bf16.msra.mxu0 %v1790
    %1883 = vmatprep.subr.bf16.mxu0 0
    %1884 = vmatpush1.bf16.msra.mxu0 %v1791
    %1885 = vmatprep.subr.bf16.mxu0 0
    %1886 = vmatpush1.bf16.msra.mxu0 %v1792
    %1887 = vmatprep.subr.bf16.mxu0 0
    %1888 = vmatpush1.bf16.msra.mxu0 %v1793
    %1889 = vmatprep.subr.bf16.mxu0 0
    %1890 = vmatpush1.bf16.msra.mxu0 %v1794
    %1891 = vmatprep.subr.bf16.mxu0 0
    %1892 = vmatpush1.bf16.msra.mxu0 %v1795
    %1893 = vmatprep.subr.bf16.mxu0 0
    %1894 = vmatpush1.bf16.msra.mxu0 %v1796
    %1895 = vmatprep.subr.bf16.mxu0 0
    %1896 = vmatpush1.bf16.msra.mxu0 %v1797
    %1897 = vmatprep.subr.bf16.mxu0 0
    %1898 = vmatpush1.bf16.msra.mxu0 %v1798
    %1899 = vmatprep.subr.bf16.mxu0 0
    %1900 = vmatpush1.bf16.msra.mxu0 %v1799
    %1901 = vmatprep.subr.bf16.mxu0 0
    %1902 = vmatpush1.bf16.msra.mxu0 %v1800
    %1903 = vmatprep.subr.bf16.mxu0 0
    %1904 = vmatpush1.bf16.msra.mxu0 %v1801
    %1905 = vmatprep.subr.bf16.mxu0 0
    %1906 = vmatpush1.bf16.msra.mxu0 %v1802
    %1907 = vmatprep.subr.bf16.mxu0 0
    %1908 = vmatpush1.bf16.msra.mxu0 %v1803
    %1909 = vmatprep.mubr.bf16.mxu0 %v1572
    %1910 = vmatmul.mubr.bf16.gmra.mrb[0].mxu0 %v1571
    %v1911 = vpop.f32.mrb[0].mxu0
    %v1912 = vadd.f32 %v1871, %v1911
    %v1913 = vpop.f32.mrb[0].mxu0
    %v1914 = vpop.f32.mrb[0].mxu0
    %v1915 = vadd.f32 %v1874, %v1914
    %v1916 = vpop.f32.mrb[0].mxu0
    %1917 = vdwg.mxu0
    %1918 = vst [vmem:[#allocation10] sm:$0xff] %v1912
    %1919 = vst [vmem:[#allocation10 + $0x8] sm:$0xff] %v1915
    // Predicated region
    $region46: #{tpu_custom_call.1} parent=1 // pred_check
      _
    $region47: #{tpu_custom_call.1} parent=1 // pred_check_branch
      %1921 = sbr.rel (0) target = $region49
    $region48: #{tpu_custom_call.1} parent=1 // pred_region
      %s1923 = ssub.s32 256, 256
      %1924 = vsyncadd [#allocation4], %s1923
      %s1925 = sshll.u32 [#allocation10], 4
      %s1926 = int_to_ptr.vmem [resolvable:$true] %s1925
      %1931 = dma.vmem_to_hbm [thread:$0]  %s1926, 256, %s7, [#allocation4], 128, 128, 8
    $region49: #{tpu_custom_call.1} parent=1 // pred_fallthru
      _
    // Predicated region
    $region50: #{tpu_custom_call.1} parent=1 // pred_check
      _
    $region51: #{tpu_custom_call.1} parent=1 // pred_check_branch
      %1933 = sbr.rel (0) target = $region53
    $region52: #{tpu_custom_call.1} parent=1 // pred_region
      %1934 = dma.done [#allocation4], 256
    $region53: #{tpu_custom_call.1} parent=1 // pred_fallthru
      _
    %1935 = vsyncpa [#allocation3], 1
    %1936 = vsyncpa [#allocation6], 1
    %1937 = vsyncpa [#allocation9], 1
    %1938 = vsyncpa [#allocation4], 1

// kernel: tpu_custom_call.1
$region0: #{tpu_custom_call.1}
  #allocation0 [shape = 'u32[]', space=smem, size = 0x4, offset = 0x4, fixed_abs, tag = 'smem constant byte address 0x4 - core index']
  #allocation1 [shape = 'u32[144,128]{1,0:T(1,128)}', space=vmem, size = 0x12000, scoped, tag = 'internal scratch']
  %s0 = inlined_call_operand.hbm [shape: bf16[16,256], index: 0, kind: input, shape index: {}]
  %s1 = inlined_call_operand.hbm [shape: bf16[256,512], index: 1, kind: input, shape index: {}]
  %s2 = inlined_call_operand.vmem [shape: f32[1,512], index: 2, kind: input, shape index: {}]
  %s3 = inlined_call_operand.hbm [shape: bf16[512,512], index: 3, kind: input, shape index: {}]
  %s4 = inlined_call_operand.vmem [shape: f32[1,512], index: 4, kind: input, shape index: {}]
  %s5 = inlined_call_operand.hbm [shape: bf16[512,128], index: 5, kind: input, shape index: {}]
  %s6 = inlined_call_operand.vmem [shape: f32[1,128], index: 6, kind: input, shape index: {}]
  %s7 = inlined_call_operand.hbm [shape: f32[16,128], index: 7, kind: output, shape index: {}]
  %s8 = sld [smem:[#allocation0]]
  $region54: #{tpu_custom_call.1} parent=0
    _
  %s10 = ssub.s32 1, %s8
  %s11 = scalar_select 0, %s10, %s8
  $region1: #{tpu_custom_call.1} parent=0
    #allocation2 [shape = 'u8[8192]{0}', space=vmem, size = 0x2000, scoped, tag = 'input window, operand 0, single buffered']
    #allocation3 [shape = 's32[1]{0}', space=sflag, size = 0x4, scoped, tag = 'scoped memory for tpu_custom_call.1']
    #allocation4 [shape = 's32[1]{0}', space=sflag, size = 0x4, scoped, tag = 'scoped memory for tpu_custom_call.1']
    #allocation5 [shape = 'u8[262144]{0}', space=vmem, size = 0x40000, scoped, tag = 'input window, operand 1, single buffered']
    #allocation6 [shape = 's32[1]{0}', space=sflag, size = 0x4, scoped, tag = 'scoped memory for tpu_custom_call.1']
    #allocation7 [shape = 'u8[524288]{0}', space=vmem, size = 0x80000, scoped, tag = 'input window, operand 3, single buffered']
    #allocation8 [shape = 'u8[131072]{0}', space=vmem, size = 0x20000, scoped, tag = 'input window, operand 5, single buffered']
    #allocation9 [shape = 's32[1]{0}', space=sflag, size = 0x4, scoped, tag = 'scoped memory for tpu_custom_call.1']
    #allocation10 [shape = 'u8[8192]{0}', space=vmem, size = 0x2000, scoped, tag = 'output window, operand 0, single buffered']
    %12 = vsyncpa [#allocation3], 0
    %13 = vsyncpa [#allocation6], 0
    %14 = vsyncpa [#allocation9], 0
    %15 = vsyncpa [#allocation4], 0
    // Predicated region
    $region2: #{tpu_custom_call.1} parent=1 // pred_check
      _
    $region3: #{tpu_custom_call.1} parent=1 // pred_check_branch
      %17 = sbr.rel (0) target = $region5
    $region4: #{tpu_custom_call.1} parent=1 // pred_region
      %s19 = ssub.s32 256, 256
      %20 = vsyncadd [#allocation3], %s19
      %s21 = sshll.u32 [#allocation2], 4
      %s22 = int_to_ptr.vmem [resolvable:$true] %s21
      %27 = dma.hbm_to_vmem [thread:$0]  %s0, 256, %s22, [#allocation3], 128, 128, 8
    $region5: #{tpu_custom_call.1} parent=1 // pred_fallthru
      _
    // Predicated region
    $region6: #{tpu_custom_call.1} parent=1 // pred_check
      _
    $region7: #{tpu_custom_call.1} parent=1 // pred_check_branch
      %29 = sbr.rel (0) target = $region9
    $region8: #{tpu_custom_call.1} parent=1 // pred_region
      %s31 = ssub.s32 8192, 8192
      %32 = vsyncadd [#allocation6], %s31
      %s33 = sshll.u32 [#allocation5], 4
      %s34 = int_to_ptr.vmem [resolvable:$true] %s33
      %39 = dma.hbm_to_vmem [thread:$0]  %s1, 8192, %s34, [#allocation6], 256, 256, 16
    $region9: #{tpu_custom_call.1} parent=1 // pred_fallthru
      _
    // Predicated region
    $region10: #{tpu_custom_call.1} parent=1 // pred_check
      _
    $region11: #{tpu_custom_call.1} parent=1 // pred_check_branch
      %41 = sbr.rel (0) target = $region13
    $region12: #{tpu_custom_call.1} parent=1 // pred_region
      _
    $region13: #{tpu_custom_call.1} parent=1 // pred_fallthru
      _
    // Predicated region
    $region14: #{tpu_custom_call.1} parent=1 // pred_check
      _
    $region15: #{tpu_custom_call.1} parent=1 // pred_check_branch
      %43 = sbr.rel (0) target = $region17
    $region16: #{tpu_custom_call.1} parent=1 // pred_region
      %s45 = ssub.s32 16384, 16384
      %46 = vsyncadd [#allocation6], %s45
      %s47 = sshll.u32 [#allocation7], 4
      %s48 = int_to_ptr.vmem [resolvable:$true] %s47
      %53 = dma.hbm_to_vmem [thread:$0]  %s3, 16384, %s48, [#allocation6], 256, 256, 16
    $region17: #{tpu_custom_call.1} parent=1 // pred_fallthru
      _
    // Predicated region
    $region18: #{tpu_custom_call.1} parent=1 // pred_check
      _
    $region19: #{tpu_custom_call.1} parent=1 // pred_check_branch
      %55 = sbr.rel (0) target = $region21
    $region20: #{tpu_custom_call.1} parent=1 // pred_region
      _
    $region21: #{tpu_custom_call.1} parent=1 // pred_fallthru
      _
    // Predicated region
    $region22: #{tpu_custom_call.1} parent=1 // pred_check
      _
    $region23: #{tpu_custom_call.1} parent=1 // pred_check_branch
      %57 = sbr.rel (0) target = $region25
    $region24: #{tpu_custom_call.1} parent=1 // pred_region
      %s59 = ssub.s32 4096, 4096
      %60 = vsyncadd [#allocation9], %s59
      %s61 = sshll.u32 [#allocation8], 4
      %s62 = int_to_ptr.vmem [resolvable:$true] %s61
      %67 = dma.hbm_to_vmem [thread:$0]  %s5, 4096, %s62, [#allocation9], 64, 64, 4
    $region25: #{tpu_custom_call.1} parent=1 // pred_fallthru
      _
    // Predicated region
    $region26: #{tpu_custom_call.1} parent=1 // pred_check
      _
    $region27: #{tpu_custom_call.1} parent=1 // pred_check_branch
      %69 = sbr.rel (0) target = $region29
    $region28: #{tpu_custom_call.1} parent=1 // pred_region
      _
    $region29: #{tpu_custom_call.1} parent=1 // pred_fallthru
      _
    // Predicated region
    $region30: #{tpu_custom_call.1} parent=1 // pred_check
      _
    $region31: #{tpu_custom_call.1} parent=1 // pred_check_branch
      %71 = sbr.rel (0) target = $region33
    $region32: #{tpu_custom_call.1} parent=1 // pred_region
      %72 = dma.done [#allocation3], 256
    $region33: #{tpu_custom_call.1} parent=1 // pred_fallthru
      _
    // Predicated region
    $region34: #{tpu_custom_call.1} parent=1 // pred_check
      _
    $region35: #{tpu_custom_call.1} parent=1 // pred_check_branch
      %74 = sbr.rel (0) target = $region37
    $region36: #{tpu_custom_call.1} parent=1 // pred_region
      %75 = dma.done [#allocation6], 8192
    $region37: #{tpu_custom_call.1} parent=1 // pred_fallthru
      _
    // Predicated region
    $region38: #{tpu_custom_call.1} parent=1 // pred_check
      _
    $region39: #{tpu_custom_call.1} parent=1 // pred_check_branch
      %77 = sbr.rel (0) target = $region41
    $region40: #{tpu_custom_call.1} parent=1 // pred_region
      %78 = dma.done [#allocation6], 16384
    $region41: #{tpu_custom_call.1} parent=1 // pred_fallthru
      _
    // Predicated region
    $region42: #{tpu_custom_call.1} parent=1 // pred_check
      _
    $region43: #{tpu_custom_call.1} parent=1 // pred_check_branch
      %80 = sbr.rel (0) target = $region45
    $region44: #{tpu_custom_call.1} parent=1 // pred_region
      %81 = dma.done [#allocation9], 4096
    $region45: #{tpu_custom_call.1} parent=1 // pred_fallthru
      _
    %v83 = vld [vmem:[#allocation2] sm:$0xff]
    %v84 = vld [vmem:[#allocation2 + $0x8] sm:$0xff]
    %v85 = vld [vmem:[#allocation5] sm:$0xff]
    %v86 = vld [vmem:[#allocation5 + $0x8] sm:$0xff]
    %v87 = vld [vmem:[#allocation5 + $0x10] sm:$0xff]
    %v88 = vld [vmem:[#allocation5 + $0x18] sm:$0xff]
    %v89 = vld [vmem:[#allocation5 + $0x20] sm:$0xff]
    %v90 = vld [vmem:[#allocation5 + $0x28] sm:$0xff]
    %v91 = vld [vmem:[#allocation5 + $0x30] sm:$0xff]
    %v92 = vld [vmem:[#allocation5 + $0x38] sm:$0xff]
    %v93 = vld [vmem:[#allocation5 + $0x40] sm:$0xff]
    %v94 = vld [vmem:[#allocation5 + $0x48] sm:$0xff]
    %v95 = vld [vmem:[#allocation5 + $0x50] sm:$0xff]
    %v96 = vld [vmem:[#allocation5 + $0x58] sm:$0xff]
    %v97 = vld [vmem:[#allocation5 + $0x60] sm:$0xff]
    %v98 = vld [vmem:[#allocation5 + $0x68] sm:$0xff]
    %v99 = vld [vmem:[#allocation5 + $0x70] sm:$0xff]
    %v100 = vld [vmem:[#allocation5 + $0x78] sm:$0xff]
    %v101 = vld [vmem:[#allocation5 + $0x80] sm:$0xff]
    %v102 = vld [vmem:[#allocation5 + $0x88] sm:$0xff]
    %v103 = vld [vmem:[#allocation5 + $0x90] sm:$0xff]
    %v104 = vld [vmem:[#allocation5 + $0x98] sm:$0xff]
    %v105 = vld [vmem:[#allocation5 + $0xa0] sm:$0xff]
    %v106 = vld [vmem:[#allocation5 + $0xa8] sm:$0xff]
    %v107 = vld [vmem:[#allocation5 + $0xb0] sm:$0xff]
    %v108 = vld [vmem:[#allocation5 + $0xb8] sm:$0xff]
    %v109 = vld [vmem:[#allocation5 + $0xc0] sm:$0xff]
    %v110 = vld [vmem:[#allocation5 + $0xc8] sm:$0xff]
    %v111 = vld [vmem:[#allocation5 + $0xd0] sm:$0xff]
    %v112 = vld [vmem:[#allocation5 + $0xd8] sm:$0xff]
    %v113 = vld [vmem:[#allocation5 + $0xe0] sm:$0xff]
    %v114 = vld [vmem:[#allocation5 + $0xe8] sm:$0xff]
    %v115 = vld [vmem:[#allocation5 + $0xf0] sm:$0xff]
    %v116 = vld [vmem:[#allocation5 + $0xf8] sm:$0xff]
    %v117 = vld [vmem:[#allocation5 + $0x100] sm:$0xff]
    %v118 = vld [vmem:[#allocation5 + $0x108] sm:$0xff]
    %v119 = vld [vmem:[#allocation5 + $0x110] sm:$0xff]
    %v120 = vld [vmem:[#allocation5 + $0x118] sm:$0xff]
    %v121 = vld [vmem:[#allocation5 + $0x120] sm:$0xff]
    %v122 = vld [vmem:[#allocation5 + $0x128] sm:$0xff]
    %v123 = vld [vmem:[#allocation5 + $0x130] sm:$0xff]
    %v124 = vld [vmem:[#allocation5 + $0x138] sm:$0xff]
    %v125 = vld [vmem:[#allocation5 + $0x140] sm:$0xff]
    %v126 = vld [vmem:[#allocation5 + $0x148] sm:$0xff]
    %v127 = vld [vmem:[#allocation5 + $0x150] sm:$0xff]
    %v128 = vld [vmem:[#allocation5 + $0x158] sm:$0xff]
    %v129 = vld [vmem:[#allocation5 + $0x160] sm:$0xff]
    %v130 = vld [vmem:[#allocation5 + $0x168] sm:$0xff]
    %v131 = vld [vmem:[#allocation5 + $0x170] sm:$0xff]
    %v132 = vld [vmem:[#allocation5 + $0x178] sm:$0xff]
    %v133 = vld [vmem:[#allocation5 + $0x180] sm:$0xff]
    %v134 = vld [vmem:[#allocation5 + $0x188] sm:$0xff]
    %v135 = vld [vmem:[#allocation5 + $0x190] sm:$0xff]
    %v136 = vld [vmem:[#allocation5 + $0x198] sm:$0xff]
    %v137 = vld [vmem:[#allocation5 + $0x1a0] sm:$0xff]
    %v138 = vld [vmem:[#allocation5 + $0x1a8] sm:$0xff]
    %v139 = vld [vmem:[#allocation5 + $0x1b0] sm:$0xff]
    %v140 = vld [vmem:[#allocation5 + $0x1b8] sm:$0xff]
    %v141 = vld [vmem:[#allocation5 + $0x1c0] sm:$0xff]
    %v142 = vld [vmem:[#allocation5 + $0x1c8] sm:$0xff]
    %v143 = vld [vmem:[#allocation5 + $0x1d0] sm:$0xff]
    %v144 = vld [vmem:[#allocation5 + $0x1d8] sm:$0xff]
    %v145 = vld [vmem:[#allocation5 + $0x1e0] sm:$0xff]
    %v146 = vld [vmem:[#allocation5 + $0x1e8] sm:$0xff]
    %v147 = vld [vmem:[#allocation5 + $0x1f0] sm:$0xff]
    %v148 = vld [vmem:[#allocation5 + $0x1f8] sm:$0xff]
    %v149 = vld [vmem:[%s2] sm:$0xf]
    %v151 = vlaneseq
    %v152 = vshrl.u32 %v151, 7
    %v153 = vsub.s32 0, %v152
    %v154 = vrot.slane %v149, %v153
    %v155 = vlaneseq
    %v156 = vshrl.u32 %v155, 7
    %v157 = vsub.s32 1, %v156
    %v158 = vrot.slane %v149, %v157
    %v159 = vlaneseq
    %v160 = vshrl.u32 %v159, 7
    %v161 = vsub.s32 2, %v160
    %v162 = vrot.slane %v149, %v161
    %v163 = vlaneseq
    %v164 = vshrl.u32 %v163, 7
    %v165 = vsub.s32 3, %v164
    %v166 = vrot.slane %v149, %v165
    %v173 = vunpack.c.l.b16 %v83
    %v174 = vunpack.c.h.b16 %v83
    %v175 = vunpack.c.l.b16 %v84
    %v176 = vunpack.c.h.b16 %v84
    %v177 = vpack.c.b16 %v175, %v173
    %v178 = vpack.c.b16 %v176, %v174
    %v245 = vunpack.c.l.b16 %v85
    %v246 = vunpack.c.h.b16 %v85
    %v247 = vunpack.c.l.b16 %v86
    %v248 = vunpack.c.h.b16 %v86
    %v249 = vunpack.c.l.b16 %v87
    %v250 = vunpack.c.h.b16 %v87
    %v251 = vunpack.c.l.b16 %v88
    %v252 = vunpack.c.h.b16 %v88
    %v253 = vunpack.c.l.b16 %v89
    %v254 = vunpack.c.h.b16 %v89
    %v255 = vunpack.c.l.b16 %v90
    %v256 = vunpack.c.h.b16 %v90
    %v257 = vunpack.c.l.b16 %v91
    %v258 = vunpack.c.h.b16 %v91
    %v259 = vunpack.c.l.b16 %v92
    %v260 = vunpack.c.h.b16 %v92
    %v261 = vunpack.c.l.b16 %v93
    %v262 = vunpack.c.h.b16 %v93
    %v263 = vunpack.c.l.b16 %v94
    %v264 = vunpack.c.h.b16 %v94
    %v265 = vunpack.c.l.b16 %v95
    %v266 = vunpack.c.h.b16 %v95
    %v267 = vunpack.c.l.b16 %v96
    %v268 = vunpack.c.h.b16 %v96
    %v269 = vunpack.c.l.b16 %v97
    %v270 = vunpack.c.h.b16 %v97
    %v271 = vunpack.c.l.b16 %v98
    %v272 = vunpack.c.h.b16 %v98
    %v273 = vunpack.c.l.b16 %v99
    %v274 = vunpack.c.h.b16 %v99
    %v275 = vunpack.c.l.b16 %v100
    %v276 = vunpack.c.h.b16 %v100
    %v277 = vunpack.c.l.b16 %v101
    %v278 = vunpack.c.h.b16 %v101
    %v279 = vunpack.c.l.b16 %v102
    %v280 = vunpack.c.h.b16 %v102
    %v281 = vunpack.c.l.b16 %v103
    %v282 = vunpack.c.h.b16 %v103
    %v283 = vunpack.c.l.b16 %v104
    %v284 = vunpack.c.h.b16 %v104
    %v285 = vunpack.c.l.b16 %v105
    %v286 = vunpack.c.h.b16 %v105
    %v287 = vunpack.c.l.b16 %v106
    %v288 = vunpack.c.h.b16 %v106
    %v289 = vunpack.c.l.b16 %v107
    %v290 = vunpack.c.h.b16 %v107
    %v291 = vunpack.c.l.b16 %v108
    %v292 = vunpack.c.h.b16 %v108
    %v293 = vunpack.c.l.b16 %v109
    %v294 = vunpack.c.h.b16 %v109
    %v295 = vunpack.c.l.b16 %v110
    %v296 = vunpack.c.h.b16 %v110
    %v297 = vunpack.c.l.b16 %v111
    %v298 = vunpack.c.h.b16 %v111
    %v299 = vunpack.c.l.b16 %v112
    %v300 = vunpack.c.h.b16 %v112
    %v301 = vunpack.c.l.b16 %v113
    %v302 = vunpack.c.h.b16 %v113
    %v303 = vunpack.c.l.b16 %v114
    %v304 = vunpack.c.h.b16 %v114
    %v305 = vunpack.c.l.b16 %v115
    %v306 = vunpack.c.h.b16 %v115
    %v307 = vunpack.c.l.b16 %v116
    %v308 = vunpack.c.h.b16 %v116
    %v309 = vunpack.c.l.b16 %v117
    %v310 = vunpack.c.h.b16 %v117
    %v311 = vunpack.c.l.b16 %v118
    %v312 = vunpack.c.h.b16 %v118
    %v313 = vunpack.c.l.b16 %v119
    %v314 = vunpack.c.h.b16 %v119
    %v315 = vunpack.c.l.b16 %v120
    %v316 = vunpack.c.h.b16 %v120
    %v317 = vunpack.c.l.b16 %v121
    %v318 = vunpack.c.h.b16 %v121
    %v319 = vunpack.c.l.b16 %v122
    %v320 = vunpack.c.h.b16 %v122
    %v321 = vunpack.c.l.b16 %v123
    %v322 = vunpack.c.h.b16 %v123
    %v323 = vunpack.c.l.b16 %v124
    %v324 = vunpack.c.h.b16 %v124
    %v325 = vunpack.c.l.b16 %v125
    %v326 = vunpack.c.h.b16 %v125
    %v327 = vunpack.c.l.b16 %v126
    %v328 = vunpack.c.h.b16 %v126
    %v329 = vunpack.c.l.b16 %v127
    %v330 = vunpack.c.h.b16 %v127
    %v331 = vunpack.c.l.b16 %v128
    %v332 = vunpack.c.h.b16 %v128
    %v333 = vunpack.c.l.b16 %v129
    %v334 = vunpack.c.h.b16 %v129
    %v335 = vunpack.c.l.b16 %v130
    %v336 = vunpack.c.h.b16 %v130
    %v337 = vunpack.c.l.b16 %v131
    %v338 = vunpack.c.h.b16 %v131
    %v339 = vunpack.c.l.b16 %v132
    %v340 = vunpack.c.h.b16 %v132
    %v341 = vunpack.c.l.b16 %v133
    %v342 = vunpack.c.h.b16 %v133
    %v343 = vunpack.c.l.b16 %v134
    %v344 = vunpack.c.h.b16 %v134
    %v345 = vunpack.c.l.b16 %v135
    %v346 = vunpack.c.h.b16 %v135
    %v347 = vunpack.c.l.b16 %v136
    %v348 = vunpack.c.h.b16 %v136
    %v349 = vunpack.c.l.b16 %v137
    %v350 = vunpack.c.h.b16 %v137
    %v351 = vunpack.c.l.b16 %v138
    %v352 = vunpack.c.h.b16 %v138
    %v353 = vunpack.c.l.b16 %v139
    %v354 = vunpack.c.h.b16 %v139
    %v355 = vunpack.c.l.b16 %v140
    %v356 = vunpack.c.h.b16 %v140
    %v357 = vunpack.c.l.b16 %v141
    %v358 = vunpack.c.h.b16 %v141
    %v359 = vunpack.c.l.b16 %v142
    %v360 = vunpack.c.h.b16 %v142
    %v361 = vunpack.c.l.b16 %v143
    %v362 = vunpack.c.h.b16 %v143
    %v363 = vunpack.c.l.b16 %v144
    %v364 = vunpack.c.h.b16 %v144
    %v365 = vunpack.c.l.b16 %v145
    %v366 = vunpack.c.h.b16 %v145
    %v367 = vunpack.c.l.b16 %v146
    %v368 = vunpack.c.h.b16 %v146
    %v369 = vunpack.c.l.b16 %v147
    %v370 = vunpack.c.h.b16 %v147
    %v371 = vunpack.c.l.b16 %v148
    %v372 = vunpack.c.h.b16 %v148
    %v373 = vpack.c.b16 %v249, %v245
    %v374 = vpack.c.b16 %v250, %v246
    %v375 = vpack.c.b16 %v251, %v247
    %v376 = vpack.c.b16 %v252, %v248
    %v377 = vpack.c.b16 %v257, %v253
    %v378 = vpack.c.b16 %v258, %v254
    %v379 = vpack.c.b16 %v259, %v255
    %v380 = vpack.c.b16 %v260, %v256
    %v381 = vpack.c.b16 %v265, %v261
    %v382 = vpack.c.b16 %v266, %v262
    %v383 = vpack.c.b16 %v267, %v263
    %v384 = vpack.c.b16 %v268, %v264
    %v385 = vpack.c.b16 %v273, %v269
    %v386 = vpack.c.b16 %v274, %v270
    %v387 = vpack.c.b16 %v275, %v271
    %v388 = vpack.c.b16 %v276, %v272
    %v389 = vpack.c.b16 %v281, %v277
    %v390 = vpack.c.b16 %v282, %v278
    %v391 = vpack.c.b16 %v283, %v279
    %v392 = vpack.c.b16 %v284, %v280
    %v393 = vpack.c.b16 %v289, %v285
    %v394 = vpack.c.b16 %v290, %v286
    %v395 = vpack.c.b16 %v291, %v287
    %v396 = vpack.c.b16 %v292, %v288
    %v397 = vpack.c.b16 %v297, %v293
    %v398 = vpack.c.b16 %v298, %v294
    %v399 = vpack.c.b16 %v299, %v295
    %v400 = vpack.c.b16 %v300, %v296
    %v401 = vpack.c.b16 %v305, %v301
    %v402 = vpack.c.b16 %v306, %v302
    %v403 = vpack.c.b16 %v307, %v303
    %v404 = vpack.c.b16 %v308, %v304
    %v405 = vpack.c.b16 %v313, %v309
    %v406 = vpack.c.b16 %v314, %v310
    %v407 = vpack.c.b16 %v315, %v311
    %v408 = vpack.c.b16 %v316, %v312
    %v409 = vpack.c.b16 %v321, %v317
    %v410 = vpack.c.b16 %v322, %v318
    %v411 = vpack.c.b16 %v323, %v319
    %v412 = vpack.c.b16 %v324, %v320
    %v413 = vpack.c.b16 %v329, %v325
    %v414 = vpack.c.b16 %v330, %v326
    %v415 = vpack.c.b16 %v331, %v327
    %v416 = vpack.c.b16 %v332, %v328
    %v417 = vpack.c.b16 %v337, %v333
    %v418 = vpack.c.b16 %v338, %v334
    %v419 = vpack.c.b16 %v339, %v335
    %v420 = vpack.c.b16 %v340, %v336
    %v421 = vpack.c.b16 %v345, %v341
    %v422 = vpack.c.b16 %v346, %v342
    %v423 = vpack.c.b16 %v347, %v343
    %v424 = vpack.c.b16 %v348, %v344
    %v425 = vpack.c.b16 %v353, %v349
    %v426 = vpack.c.b16 %v354, %v350
    %v427 = vpack.c.b16 %v355, %v351
    %v428 = vpack.c.b16 %v356, %v352
    %v429 = vpack.c.b16 %v361, %v357
    %v430 = vpack.c.b16 %v362, %v358
    %v431 = vpack.c.b16 %v363, %v359
    %v432 = vpack.c.b16 %v364, %v360
    %v433 = vpack.c.b16 %v369, %v365
    %v434 = vpack.c.b16 %v370, %v366
    %v435 = vpack.c.b16 %v371, %v367
    %v436 = vpack.c.b16 %v372, %v368
    %501 = vmatprep.subr.bf16.mxu0 %v374
    %502 = vmatpush1.bf16.msra.mxu0 %v373
    %503 = vmatprep.subr.bf16.mxu0 %v378
    %504 = vmatpush1.bf16.msra.mxu0 %v377
    %505 = vmatprep.subr.bf16.mxu0 %v382
    %506 = vmatpush1.bf16.msra.mxu0 %v381
    %507 = vmatprep.subr.bf16.mxu0 %v386
    %508 = vmatpush1.bf16.msra.mxu0 %v385
    %509 = vmatprep.subr.bf16.mxu0 %v390
    %510 = vmatpush1.bf16.msra.mxu0 %v389
    %511 = vmatprep.subr.bf16.mxu0 %v394
    %512 = vmatpush1.bf16.msra.mxu0 %v393
    %513 = vmatprep.subr.bf16.mxu0 %v398
    %514 = vmatpush1.bf16.msra.mxu0 %v397
    %515 = vmatprep.subr.bf16.mxu0 %v402
    %516 = vmatpush1.bf16.msra.mxu0 %v401
    %517 = vmatprep.subr.bf16.mxu0 %v406
    %518 = vmatpush1.bf16.msra.mxu0 %v405
    %519 = vmatprep.subr.bf16.mxu0 %v410
    %520 = vmatpush1.bf16.msra.mxu0 %v409
    %521 = vmatprep.subr.bf16.mxu0 %v414
    %522 = vmatpush1.bf16.msra.mxu0 %v413
    %523 = vmatprep.subr.bf16.mxu0 %v418
    %524 = vmatpush1.bf16.msra.mxu0 %v417
    %525 = vmatprep.subr.bf16.mxu0 %v422
    %526 = vmatpush1.bf16.msra.mxu0 %v421
    %527 = vmatprep.subr.bf16.mxu0 %v426
    %528 = vmatpush1.bf16.msra.mxu0 %v425
    %529 = vmatprep.subr.bf16.mxu0 %v430
    %530 = vmatpush1.bf16.msra.mxu0 %v429
    %531 = vmatprep.subr.bf16.mxu0 %v434
    %532 = vmatpush1.bf16.msra.mxu0 %v433
    %533 = vmatprep.mubr.bf16.mxu0 %v178
    %534 = vmatmul.mubr.bf16.gmra.mrb[0].mxu0 %v177
    %v535 = vpop.f32.mrb[0].mxu0
    %v536 = vadd.f32 %v154, %v535
    %v537 = vpop.f32.mrb[0].mxu0
    %v538 = vadd.f32 %v158, %v537
    %v539 = vpop.f32.mrb[0].mxu0
    %v540 = vadd.f32 %v154, %v539
    %v541 = vpop.f32.mrb[0].mxu0
    %v542 = vadd.f32 %v158, %v541
    %543 = vdwg.mxu0
    %544 = vmatprep.subr.bf16.mxu0 %v376
    %545 = vmatpush1.bf16.msra.mxu0 %v375
    %546 = vmatprep.subr.bf16.mxu0 %v380
    %547 = vmatpush1.bf16.msra.mxu0 %v379
    %548 = vmatprep.subr.bf16.mxu0 %v384
    %549 = vmatpush1.bf16.msra.mxu0 %v383
    %550 = vmatprep.subr.bf16.mxu0 %v388
    %551 = vmatpush1.bf16.msra.mxu0 %v387
    %552 = vmatprep.subr.bf16.mxu0 %v392
    %553 = vmatpush1.bf16.msra.mxu0 %v391
    %554 = vmatprep.subr.bf16.mxu0 %v396
    %555 = vmatpush1.bf16.msra.mxu0 %v395
    %556 = vmatprep.subr.bf16.mxu0 %v400
    %557 = vmatpush1.bf16.msra.mxu0 %v399
    %558 = vmatprep.subr.bf16.mxu0 %v404
    %559 = vmatpush1.bf16.msra.mxu0 %v403
    %560 = vmatprep.subr.bf16.mxu0 %v408
    %561 = vmatpush1.bf16.msra.mxu0 %v407
    %562 = vmatprep.subr.bf16.mxu0 %v412
    %563 = vmatpush1.bf16.msra.mxu0 %v411
    %564 = vmatprep.subr.bf16.mxu0 %v416
    %565 = vmatpush1.bf16.msra.mxu0 %v415
    %566 = vmatprep.subr.bf16.mxu0 %v420
    %567 = vmatpush1.bf16.msra.mxu0 %v419
    %568 = vmatprep.subr.bf16.mxu0 %v424
    %569 = vmatpush1.bf16.msra.mxu0 %v423
    %570 = vmatprep.subr.bf16.mxu0 %v428
    %571 = vmatpush1.bf16.msra.mxu0 %v427
    %572 = vmatprep.subr.bf16.mxu0 %v432
    %573 = vmatpush1.bf16.msra.mxu0 %v431
    %574 = vmatprep.subr.bf16.mxu0 %v436
    %575 = vmatpush1.bf16.msra.mxu0 %v435
    %576 = vmatprep.mubr.bf16.mxu0 %v178
    %577 = vmatmul.mubr.bf16.gmra.mrb[0].mxu0 %v177
    %v578 = vpop.f32.mrb[0].mxu0
    %v579 = vadd.f32 %v162, %v578
    %v580 = vpop.f32.mrb[0].mxu0
    %v581 = vadd.f32 %v166, %v580
    %v582 = vpop.f32.mrb[0].mxu0
    %v583 = vadd.f32 %v162, %v582
    %v584 = vpop.f32.mrb[0].mxu0
    %v585 = vadd.f32 %v166, %v584
    %586 = vdwg.mxu0
    %v587 = vmax.f32 %v536, 0.0
    %v588 = vmax.f32 %v538, 0.0
    %v589 = vmax.f32 %v579, 0.0
    %v590 = vmax.f32 %v581, 0.0
    %v591 = vmax.f32 %v540, 0.0
    %v592 = vmax.f32 %v542, 0.0
    %v593 = vmax.f32 %v583, 0.0
    %v594 = vmax.f32 %v585, 0.0
    %v595 = vpack.c.bf16 %v591, %v587
    %v596 = vpack.c.bf16 %v592, %v588
    %v597 = vpack.c.bf16 %v593, %v589
    %v598 = vpack.c.bf16 %v594, %v590
    %v599 = vld [vmem:[#allocation7] sm:$0xff]
    %v600 = vld [vmem:[#allocation7 + $0x8] sm:$0xff]
    %v601 = vld [vmem:[#allocation7 + $0x10] sm:$0xff]
    %v602 = vld [vmem:[#allocation7 + $0x18] sm:$0xff]
    %v603 = vld [vmem:[#allocation7 + $0x20] sm:$0xff]
    %v604 = vld [vmem:[#allocation7 + $0x28] sm:$0xff]
    %v605 = vld [vmem:[#allocation7 + $0x30] sm:$0xff]
    %v606 = vld [vmem:[#allocation7 + $0x38] sm:$0xff]
    %v607 = vld [vmem:[#allocation7 + $0x40] sm:$0xff]
    %v608 = vld [vmem:[#allocation7 + $0x48] sm:$0xff]
    %v609 = vld [vmem:[#allocation7 + $0x50] sm:$0xff]
    %v610 = vld [vmem:[#allocation7 + $0x58] sm:$0xff]
    %v611 = vld [vmem:[#allocation7 + $0x60] sm:$0xff]
    %v612 = vld [vmem:[#allocation7 + $0x68] sm:$0xff]
    %v613 = vld [vmem:[#allocation7 + $0x70] sm:$0xff]
    %v614 = vld [vmem:[#allocation7 + $0x78] sm:$0xff]
    %v615 = vld [vmem:[#allocation7 + $0x80] sm:$0xff]
    %v616 = vld [vmem:[#allocation7 + $0x88] sm:$0xff]
    %v617 = vld [vmem:[#allocation7 + $0x90] sm:$0xff]
    %v618 = vld [vmem:[#allocation7 + $0x98] sm:$0xff]
    %v619 = vld [vmem:[#allocation7 + $0xa0] sm:$0xff]
    %v620 = vld [vmem:[#allocation7 + $0xa8] sm:$0xff]
    %v621 = vld [vmem:[#allocation7 + $0xb0] sm:$0xff]
    %v622 = vld [vmem:[#allocation7 + $0xb8] sm:$0xff]
    %v623 = vld [vmem:[#allocation7 + $0xc0] sm:$0xff]
    %v624 = vld [vmem:[#allocation7 + $0xc8] sm:$0xff]
    %v625 = vld [vmem:[#allocation7 + $0xd0] sm:$0xff]
    %v626 = vld [vmem:[#allocation7 + $0xd8] sm:$0xff]
    %v627 = vld [vmem:[#allocation7 + $0xe0] sm:$0xff]
    %v628 = vld [vmem:[#allocation7 + $0xe8] sm:$0xff]
    %v629 = vld [vmem:[#allocation7 + $0xf0] sm:$0xff]
    %v630 = vld [vmem:[#allocation7 + $0xf8] sm:$0xff]
    %v631 = vld [vmem:[#allocation7 + $0x100] sm:$0xff]
    %v632 = vld [vmem:[#allocation7 + $0x108] sm:$0xff]
    %v633 = vld [vmem:[#allocation7 + $0x110] sm:$0xff]
    %v634 = vld [vmem:[#allocation7 + $0x118] sm:$0xff]
    %v635 = vld [vmem:[#allocation7 + $0x120] sm:$0xff]
    %v636 = vld [vmem:[#allocation7 + $0x128] sm:$0xff]
    %v637 = vld [vmem:[#allocation7 + $0x130] sm:$0xff]
    %v638 = vld [vmem:[#allocation7 + $0x138] sm:$0xff]
    %v639 = vld [vmem:[#allocation7 + $0x140] sm:$0xff]
    %v640 = vld [vmem:[#allocation7 + $0x148] sm:$0xff]
    %v641 = vld [vmem:[#allocation7 + $0x150] sm:$0xff]
    %v642 = vld [vmem:[#allocation7 + $0x158] sm:$0xff]
    %v643 = vld [vmem:[#allocation7 + $0x160] sm:$0xff]
    %v644 = vld [vmem:[#allocation7 + $0x168] sm:$0xff]
    %v645 = vld [vmem:[#allocation7 + $0x170] sm:$0xff]
    %v646 = vld [vmem:[#allocation7 + $0x178] sm:$0xff]
    %v647 = vld [vmem:[#allocation7 + $0x180] sm:$0xff]
    %v648 = vld [vmem:[#allocation7 + $0x188] sm:$0xff]
    %v649 = vld [vmem:[#allocation7 + $0x190] sm:$0xff]
    %v650 = vld [vmem:[#allocation7 + $0x198] sm:$0xff]
    %v651 = vld [vmem:[#allocation7 + $0x1a0] sm:$0xff]
    %v652 = vld [vmem:[#allocation7 + $0x1a8] sm:$0xff]
    %v653 = vld [vmem:[#allocation7 + $0x1b0] sm:$0xff]
    %v654 = vld [vmem:[#allocation7 + $0x1b8] sm:$0xff]
    %v655 = vld [vmem:[#allocation7 + $0x1c0] sm:$0xff]
    %v656 = vld [vmem:[#allocation7 + $0x1c8] sm:$0xff]
    %v657 = vld [vmem:[#allocation7 + $0x1d0] sm:$0xff]
    %v658 = vld [vmem:[#allocation7 + $0x1d8] sm:$0xff]
    %v659 = vld [vmem:[#allocation7 + $0x1e0] sm:$0xff]
    %v660 = vld [vmem:[#allocation7 + $0x1e8] sm:$0xff]
    %v661 = vld [vmem:[#allocation7 + $0x1f0] sm:$0xff]
    %v662 = vld [vmem:[#allocation7 + $0x1f8] sm:$0xff]
    %v663 = vld [vmem:[#allocation7 + $0x200] sm:$0xff]
    %v664 = vld [vmem:[#allocation7 + $0x208] sm:$0xff]
    %v665 = vld [vmem:[#allocation7 + $0x210] sm:$0xff]
    %v666 = vld [vmem:[#allocation7 + $0x218] sm:$0xff]
    %v667 = vld [vmem:[#allocation7 + $0x220] sm:$0xff]
    %v668 = vld [vmem:[#allocation7 + $0x228] sm:$0xff]
    %v669 = vld [vmem:[#allocation7 + $0x230] sm:$0xff]
    %v670 = vld [vmem:[#allocation7 + $0x238] sm:$0xff]
    %v671 = vld [vmem:[#allocation7 + $0x240] sm:$0xff]
    %v672 = vld [vmem:[#allocation7 + $0x248] sm:$0xff]
    %v673 = vld [vmem:[#allocation7 + $0x250] sm:$0xff]
    %v674 = vld [vmem:[#allocation7 + $0x258] sm:$0xff]
    %v675 = vld [vmem:[#allocation7 + $0x260] sm:$0xff]
    %v676 = vld [vmem:[#allocation7 + $0x268] sm:$0xff]
    %v677 = vld [vmem:[#allocation7 + $0x270] sm:$0xff]
    %v678 = vld [vmem:[#allocation7 + $0x278] sm:$0xff]
    %v679 = vld [vmem:[#allocation7 + $0x280] sm:$0xff]
    %v680 = vld [vmem:[#allocation7 + $0x288] sm:$0xff]
    %v681 = vld [vmem:[#allocation7 + $0x290] sm:$0xff]
    %v682 = vld [vmem:[#allocation7 + $0x298] sm:$0xff]
    %v683 = vld [vmem:[#allocation7 + $0x2a0] sm:$0xff]
    %v684 = vld [vmem:[#allocation7 + $0x2a8] sm:$0xff]
    %v685 = vld [vmem:[#allocation7 + $0x2b0] sm:$0xff]
    %v686 = vld [vmem:[#allocation7 + $0x2b8] sm:$0xff]
    %v687 = vld [vmem:[#allocation7 + $0x2c0] sm:$0xff]
    %v688 = vld [vmem:[#allocation7 + $0x2c8] sm:$0xff]
    %v689 = vld [vmem:[#allocation7 + $0x2d0] sm:$0xff]
    %v690 = vld [vmem:[#allocation7 + $0x2d8] sm:$0xff]
    %v691 = vld [vmem:[#allocation7 + $0x2e0] sm:$0xff]
    %v692 = vld [vmem:[#allocation7 + $0x2e8] sm:$0xff]
    %v693 = vld [vmem:[#allocation7 + $0x2f0] sm:$0xff]
    %v694 = vld [vmem:[#allocation7 + $0x2f8] sm:$0xff]
    %v695 = vld [vmem:[#allocation7 + $0x300] sm:$0xff]
    %v696 = vld [vmem:[#allocation7 + $0x308] sm:$0xff]
    %v697 = vld [vmem:[#allocation7 + $0x310] sm:$0xff]
    %v698 = vld [vmem:[#allocation7 + $0x318] sm:$0xff]
    %v699 = vld [vmem:[#allocation7 + $0x320] sm:$0xff]
    %v700 = vld [vmem:[#allocation7 + $0x328] sm:$0xff]
    %v701 = vld [vmem:[#allocation7 + $0x330] sm:$0xff]
    %v702 = vld [vmem:[#allocation7 + $0x338] sm:$0xff]
    %v703 = vld [vmem:[#allocation7 + $0x340] sm:$0xff]
    %v704 = vld [vmem:[#allocation7 + $0x348] sm:$0xff]
    %v705 = vld [vmem:[#allocation7 + $0x350] sm:$0xff]
    %v706 = vld [vmem:[#allocation7 + $0x358] sm:$0xff]
    %v707 = vld [vmem:[#allocation7 + $0x360] sm:$0xff]
    %v708 = vld [vmem:[#allocation7 + $0x368] sm:$0xff]
    %v709 = vld [vmem:[#allocation7 + $0x370] sm:$0xff]
    %v710 = vld [vmem:[#allocation7 + $0x378] sm:$0xff]
    %v711 = vld [vmem:[#allocation7 + $0x380] sm:$0xff]
    %v712 = vld [vmem:[#allocation7 + $0x388] sm:$0xff]
    %v713 = vld [vmem:[#allocation7 + $0x390] sm:$0xff]
    %v714 = vld [vmem:[#allocation7 + $0x398] sm:$0xff]
    %v715 = vld [vmem:[#allocation7 + $0x3a0] sm:$0xff]
    %v716 = vld [vmem:[#allocation7 + $0x3a8] sm:$0xff]
    %v717 = vld [vmem:[#allocation7 + $0x3b0] sm:$0xff]
    %v718 = vld [vmem:[#allocation7 + $0x3b8] sm:$0xff]
    %v719 = vld [vmem:[#allocation7 + $0x3c0] sm:$0xff]
    %v720 = vld [vmem:[#allocation7 + $0x3c8] sm:$0xff]
    %v721 = vld [vmem:[#allocation7 + $0x3d0] sm:$0xff]
    %v722 = vld [vmem:[#allocation7 + $0x3d8] sm:$0xff]
    %v723 = vld [vmem:[#allocation7 + $0x3e0] sm:$0xff]
    %v724 = vld [vmem:[#allocation7 + $0x3e8] sm:$0xff]
    %v725 = vld [vmem:[#allocation7 + $0x3f0] sm:$0xff]
    %v726 = vld [vmem:[#allocation7 + $0x3f8] sm:$0xff]
    %v727 = vld [vmem:[%s4] sm:$0xf]
    %v729 = vlaneseq
    %v730 = vshrl.u32 %v729, 7
    %v731 = vsub.s32 0, %v730
    %v732 = vrot.slane %v727, %v731
    %v733 = vlaneseq
    %v734 = vshrl.u32 %v733, 7
    %v735 = vsub.s32 1, %v734
    %v736 = vrot.slane %v727, %v735
    %v737 = vlaneseq
    %v738 = vshrl.u32 %v737, 7
    %v739 = vsub.s32 2, %v738
    %v740 = vrot.slane %v727, %v739
    %v741 = vlaneseq
    %v742 = vshrl.u32 %v741, 7
    %v743 = vsub.s32 3, %v742
    %v744 = vrot.slane %v727, %v743
    %v877 = vunpack.c.l.b16 %v599
    %v878 = vunpack.c.h.b16 %v599
    %v879 = vunpack.c.l.b16 %v600
    %v880 = vunpack.c.h.b16 %v600
    %v881 = vunpack.c.l.b16 %v601
    %v882 = vunpack.c.h.b16 %v601
    %v883 = vunpack.c.l.b16 %v602
    %v884 = vunpack.c.h.b16 %v602
    %v885 = vunpack.c.l.b16 %v603
    %v886 = vunpack.c.h.b16 %v603
    %v887 = vunpack.c.l.b16 %v604
    %v888 = vunpack.c.h.b16 %v604
    %v889 = vunpack.c.l.b16 %v605
    %v890 = vunpack.c.h.b16 %v605
    %v891 = vunpack.c.l.b16 %v606
    %v892 = vunpack.c.h.b16 %v606
    %v893 = vunpack.c.l.b16 %v607
    %v894 = vunpack.c.h.b16 %v607
    %v895 = vunpack.c.l.b16 %v608
    %v896 = vunpack.c.h.b16 %v608
    %v897 = vunpack.c.l.b16 %v609
    %v898 = vunpack.c.h.b16 %v609
    %v899 = vunpack.c.l.b16 %v610
    %v900 = vunpack.c.h.b16 %v610
    %v901 = vunpack.c.l.b16 %v611
    %v902 = vunpack.c.h.b16 %v611
    %v903 = vunpack.c.l.b16 %v612
    %v904 = vunpack.c.h.b16 %v612
    %v905 = vunpack.c.l.b16 %v613
    %v906 = vunpack.c.h.b16 %v613
    %v907 = vunpack.c.l.b16 %v614
    %v908 = vunpack.c.h.b16 %v614
    %v909 = vunpack.c.l.b16 %v615
    %v910 = vunpack.c.h.b16 %v615
    %v911 = vunpack.c.l.b16 %v616
    %v912 = vunpack.c.h.b16 %v616
    %v913 = vunpack.c.l.b16 %v617
    %v914 = vunpack.c.h.b16 %v617
    %v915 = vunpack.c.l.b16 %v618
    %v916 = vunpack.c.h.b16 %v618
    %v917 = vunpack.c.l.b16 %v619
    %v918 = vunpack.c.h.b16 %v619
    %v919 = vunpack.c.l.b16 %v620
    %v920 = vunpack.c.h.b16 %v620
    %v921 = vunpack.c.l.b16 %v621
    %v922 = vunpack.c.h.b16 %v621
    %v923 = vunpack.c.l.b16 %v622
    %v924 = vunpack.c.h.b16 %v622
    %v925 = vunpack.c.l.b16 %v623
    %v926 = vunpack.c.h.b16 %v623
    %v927 = vunpack.c.l.b16 %v624
    %v928 = vunpack.c.h.b16 %v624
    %v929 = vunpack.c.l.b16 %v625
    %v930 = vunpack.c.h.b16 %v625
    %v931 = vunpack.c.l.b16 %v626
    %v932 = vunpack.c.h.b16 %v626
    %v933 = vunpack.c.l.b16 %v627
    %v934 = vunpack.c.h.b16 %v627
    %v935 = vunpack.c.l.b16 %v628
    %v936 = vunpack.c.h.b16 %v628
    %v937 = vunpack.c.l.b16 %v629
    %v938 = vunpack.c.h.b16 %v629
    %v939 = vunpack.c.l.b16 %v630
    %v940 = vunpack.c.h.b16 %v630
    %v941 = vunpack.c.l.b16 %v631
    %v942 = vunpack.c.h.b16 %v631
    %v943 = vunpack.c.l.b16 %v632
    %v944 = vunpack.c.h.b16 %v632
    %v945 = vunpack.c.l.b16 %v633
    %v946 = vunpack.c.h.b16 %v633
    %v947 = vunpack.c.l.b16 %v634
    %v948 = vunpack.c.h.b16 %v634
    %v949 = vunpack.c.l.b16 %v635
    %v950 = vunpack.c.h.b16 %v635
    %v951 = vunpack.c.l.b16 %v636
    %v952 = vunpack.c.h.b16 %v636
    %v953 = vunpack.c.l.b16 %v637
    %v954 = vunpack.c.h.b16 %v637
    %v955 = vunpack.c.l.b16 %v638
    %v956 = vunpack.c.h.b16 %v638
    %v957 = vunpack.c.l.b16 %v639
    %v958 = vunpack.c.h.b16 %v639
    %v959 = vunpack.c.l.b16 %v640
    %v960 = vunpack.c.h.b16 %v640
    %v961 = vunpack.c.l.b16 %v641
    %v962 = vunpack.c.h.b16 %v641
    %v963 = vunpack.c.l.b16 %v642
    %v964 = vunpack.c.h.b16 %v642
    %v965 = vunpack.c.l.b16 %v643
    %v966 = vunpack.c.h.b16 %v643
    %v967 = vunpack.c.l.b16 %v644
    %v968 = vunpack.c.h.b16 %v644
    %v969 = vunpack.c.l.b16 %v645
    %v970 = vunpack.c.h.b16 %v645
    %v971 = vunpack.c.l.b16 %v646
    %v972 = vunpack.c.h.b16 %v646
    %v973 = vunpack.c.l.b16 %v647
    %v974 = vunpack.c.h.b16 %v647
    %v975 = vunpack.c.l.b16 %v648
    %v976 = vunpack.c.h.b16 %v648
    %v977 = vunpack.c.l.b16 %v649
    %v978 = vunpack.c.h.b16 %v649
    %v979 = vunpack.c.l.b16 %v650
    %v980 = vunpack.c.h.b16 %v650
    %v981 = vunpack.c.l.b16 %v651
    %v982 = vunpack.c.h.b16 %v651
    %v983 = vunpack.c.l.b16 %v652
    %v984 = vunpack.c.h.b16 %v652
    %v985 = vunpack.c.l.b16 %v653
    %v986 = vunpack.c.h.b16 %v653
    %v987 = vunpack.c.l.b16 %v654
    %v988 = vunpack.c.h.b16 %v654
    %v989 = vunpack.c.l.b16 %v655
    %v990 = vunpack.c.h.b16 %v655
    %v991 = vunpack.c.l.b16 %v656
    %v992 = vunpack.c.h.b16 %v656
    %v993 = vunpack.c.l.b16 %v657
    %v994 = vunpack.c.h.b16 %v657
    %v995 = vunpack.c.l.b16 %v658
    %v996 = vunpack.c.h.b16 %v658
    %v997 = vunpack.c.l.b16 %v659
    %v998 = vunpack.c.h.b16 %v659
    %v999 = vunpack.c.l.b16 %v660
    %v1000 = vunpack.c.h.b16 %v660
    %v1001 = vunpack.c.l.b16 %v661
    %v1002 = vunpack.c.h.b16 %v661
    %v1003 = vunpack.c.l.b16 %v662
    %v1004 = vunpack.c.h.b16 %v662
    %v1005 = vunpack.c.l.b16 %v663
    %v1006 = vunpack.c.h.b16 %v663
    %v1007 = vunpack.c.l.b16 %v664
    %v1008 = vunpack.c.h.b16 %v664
    %v1009 = vunpack.c.l.b16 %v665
    %v1010 = vunpack.c.h.b16 %v665
    %v1011 = vunpack.c.l.b16 %v666
    %v1012 = vunpack.c.h.b16 %v666
    %v1013 = vunpack.c.l.b16 %v667
    %v1014 = vunpack.c.h.b16 %v667
    %v1015 = vunpack.c.l.b16 %v668
    %v1016 = vunpack.c.h.b16 %v668
    %v1017 = vunpack.c.l.b16 %v669
    %v1018 = vunpack.c.h.b16 %v669
    %v1019 = vunpack.c.l.b16 %v670
    %v1020 = vunpack.c.h.b16 %v670
    %v1021 = vunpack.c.l.b16 %v671
    %v1022 = vunpack.c.h.b16 %v671
    %v1023 = vunpack.c.l.b16 %v672
    %v1024 = vunpack.c.h.b16 %v672
    %v1025 = vunpack.c.l.b16 %v673
    %v1026 = vunpack.c.h.b16 %v673
    %v1027 = vunpack.c.l.b16 %v674
    %v1028 = vunpack.c.h.b16 %v674
    %v1029 = vunpack.c.l.b16 %v675
    %v1030 = vunpack.c.h.b16 %v675
    %v1031 = vunpack.c.l.b16 %v676
    %v1032 = vunpack.c.h.b16 %v676
    %v1033 = vunpack.c.l.b16 %v677
    %v1034 = vunpack.c.h.b16 %v677
    %v1035 = vunpack.c.l.b16 %v678
    %v1036 = vunpack.c.h.b16 %v678
    %v1037 = vunpack.c.l.b16 %v679
    %v1038 = vunpack.c.h.b16 %v679
    %v1039 = vunpack.c.l.b16 %v680
    %v1040 = vunpack.c.h.b16 %v680
    %v1041 = vunpack.c.l.b16 %v681
    %v1042 = vunpack.c.h.b16 %v681
    %v1043 = vunpack.c.l.b16 %v682
    %v1044 = vunpack.c.h.b16 %v682
    %v1045 = vunpack.c.l.b16 %v683
    %v1046 = vunpack.c.h.b16 %v683
    %v1047 = vunpack.c.l.b16 %v684
    %v1048 = vunpack.c.h.b16 %v684
    %v1049 = vunpack.c.l.b16 %v685
    %v1050 = vunpack.c.h.b16 %v685
    %v1051 = vunpack.c.l.b16 %v686
    %v1052 = vunpack.c.h.b16 %v686
    %v1053 = vunpack.c.l.b16 %v687
    %v1054 = vunpack.c.h.b16 %v687
    %v1055 = vunpack.c.l.b16 %v688
    %v1056 = vunpack.c.h.b16 %v688
    %v1057 = vunpack.c.l.b16 %v689
    %v1058 = vunpack.c.h.b16 %v689
    %v1059 = vunpack.c.l.b16 %v690
    %v1060 = vunpack.c.h.b16 %v690
    %v1061 = vunpack.c.l.b16 %v691
    %v1062 = vunpack.c.h.b16 %v691
    %v1063 = vunpack.c.l.b16 %v692
    %v1064 = vunpack.c.h.b16 %v692
    %v1065 = vunpack.c.l.b16 %v693
    %v1066 = vunpack.c.h.b16 %v693
    %v1067 = vunpack.c.l.b16 %v694
    %v1068 = vunpack.c.h.b16 %v694
    %v1069 = vunpack.c.l.b16 %v695
    %v1070 = vunpack.c.h.b16 %v695
    %v1071 = vunpack.c.l.b16 %v696
    %v1072 = vunpack.c.h.b16 %v696
    %v1073 = vunpack.c.l.b16 %v697
    %v1074 = vunpack.c.h.b16 %v697
    %v1075 = vunpack.c.l.b16 %v698
    %v1076 = vunpack.c.h.b16 %v698
    %v1077 = vunpack.c.l.b16 %v699
    %v1078 = vunpack.c.h.b16 %v699
    %v1079 = vunpack.c.l.b16 %v700
    %v1080 = vunpack.c.h.b16 %v700
    %v1081 = vunpack.c.l.b16 %v701
    %v1082 = vunpack.c.h.b16 %v701
    %v1083 = vunpack.c.l.b16 %v702
    %v1084 = vunpack.c.h.b16 %v702
    %v1085 = vunpack.c.l.b16 %v703
    %v1086 = vunpack.c.h.b16 %v703
    %v1087 = vunpack.c.l.b16 %v704
    %v1088 = vunpack.c.h.b16 %v704
    %v1089 = vunpack.c.l.b16 %v705
    %v1090 = vunpack.c.h.b16 %v705
    %v1091 = vunpack.c.l.b16 %v706
    %v1092 = vunpack.c.h.b16 %v706
    %v1093 = vunpack.c.l.b16 %v707
    %v1094 = vunpack.c.h.b16 %v707
    %v1095 = vunpack.c.l.b16 %v708
    %v1096 = vunpack.c.h.b16 %v708
    %v1097 = vunpack.c.l.b16 %v709
    %v1098 = vunpack.c.h.b16 %v709
    %v1099 = vunpack.c.l.b16 %v710
    %v1100 = vunpack.c.h.b16 %v710
    %v1101 = vunpack.c.l.b16 %v711
    %v1102 = vunpack.c.h.b16 %v711
    %v1103 = vunpack.c.l.b16 %v712
    %v1104 = vunpack.c.h.b16 %v712
    %v1105 = vunpack.c.l.b16 %v713
    %v1106 = vunpack.c.h.b16 %v713
    %v1107 = vunpack.c.l.b16 %v714
    %v1108 = vunpack.c.h.b16 %v714
    %v1109 = vunpack.c.l.b16 %v715
    %v1110 = vunpack.c.h.b16 %v715
    %v1111 = vunpack.c.l.b16 %v716
    %v1112 = vunpack.c.h.b16 %v716
    %v1113 = vunpack.c.l.b16 %v717
    %v1114 = vunpack.c.h.b16 %v717
    %v1115 = vunpack.c.l.b16 %v718
    %v1116 = vunpack.c.h.b16 %v718
    %v1117 = vunpack.c.l.b16 %v719
    %v1118 = vunpack.c.h.b16 %v719
    %v1119 = vunpack.c.l.b16 %v720
    %v1120 = vunpack.c.h.b16 %v720
    %v1121 = vunpack.c.l.b16 %v721
    %v1122 = vunpack.c.h.b16 %v721
    %v1123 = vunpack.c.l.b16 %v722
    %v1124 = vunpack.c.h.b16 %v722
    %v1125 = vunpack.c.l.b16 %v723
    %v1126 = vunpack.c.h.b16 %v723
    %v1127 = vunpack.c.l.b16 %v724
    %v1128 = vunpack.c.h.b16 %v724
    %v1129 = vunpack.c.l.b16 %v725
    %v1130 = vunpack.c.h.b16 %v725
    %v1131 = vunpack.c.l.b16 %v726
    %v1132 = vunpack.c.h.b16 %v726
    %v1133 = vpack.c.b16 %v881, %v877
    %v1134 = vpack.c.b16 %v882, %v878
    %v1135 = vpack.c.b16 %v883, %v879
    %v1136 = vpack.c.b16 %v884, %v880
    %v1137 = vpack.c.b16 %v889, %v885
    %v1138 = vpack.c.b16 %v890, %v886
    %v1139 = vpack.c.b16 %v891, %v887
    %v1140 = vpack.c.b16 %v892, %v888
    %v1141 = vpack.c.b16 %v897, %v893
    %v1142 = vpack.c.b16 %v898, %v894
    %v1143 = vpack.c.b16 %v899, %v895
    %v1144 = vpack.c.b16 %v900, %v896
    %v1145 = vpack.c.b16 %v905, %v901
    %v1146 = vpack.c.b16 %v906, %v902
    %v1147 = vpack.c.b16 %v907, %v903
    %v1148 = vpack.c.b16 %v908, %v904
    %v1149 = vpack.c.b16 %v913, %v909
    %v1150 = vpack.c.b16 %v914, %v910
    %v1151 = vpack.c.b16 %v915, %v911
    %v1152 = vpack.c.b16 %v916, %v912
    %v1153 = vpack.c.b16 %v921, %v917
    %v1154 = vpack.c.b16 %v922, %v918
    %v1155 = vpack.c.b16 %v923, %v919
    %v1156 = vpack.c.b16 %v924, %v920
    %v1157 = vpack.c.b16 %v929, %v925
    %v1158 = vpack.c.b16 %v930, %v926
    %v1159 = vpack.c.b16 %v931, %v927
    %v1160 = vpack.c.b16 %v932, %v928
    %v1161 = vpack.c.b16 %v937, %v933
    %v1162 = vpack.c.b16 %v938, %v934
    %v1163 = vpack.c.b16 %v939, %v935
    %v1164 = vpack.c.b16 %v940, %v936
    %v1165 = vpack.c.b16 %v945, %v941
    %v1166 = vpack.c.b16 %v946, %v942
    %v1167 = vpack.c.b16 %v947, %v943
    %v1168 = vpack.c.b16 %v948, %v944
    %v1169 = vpack.c.b16 %v953, %v949
    %v1170 = vpack.c.b16 %v954, %v950
    %v1171 = vpack.c.b16 %v955, %v951
    %v1172 = vpack.c.b16 %v956, %v952
    %v1173 = vpack.c.b16 %v961, %v957
    %v1174 = vpack.c.b16 %v962, %v958
    %v1175 = vpack.c.b16 %v963, %v959
    %v1176 = vpack.c.b16 %v964, %v960
    %v1177 = vpack.c.b16 %v969, %v965
    %v1178 = vpack.c.b16 %v970, %v966
    %v1179 = vpack.c.b16 %v971, %v967
    %v1180 = vpack.c.b16 %v972, %v968
    %v1181 = vpack.c.b16 %v977, %v973
    %v1182 = vpack.c.b16 %v978, %v974
    %v1183 = vpack.c.b16 %v979, %v975
    %v1184 = vpack.c.b16 %v980, %v976
    %v1185 = vpack.c.b16 %v985, %v981
    %v1186 = vpack.c.b16 %v986, %v982
    %v1187 = vpack.c.b16 %v987, %v983
    %v1188 = vpack.c.b16 %v988, %v984
    %v1189 = vpack.c.b16 %v993, %v989
    %v1190 = vpack.c.b16 %v994, %v990
    %v1191 = vpack.c.b16 %v995, %v991
    %v1192 = vpack.c.b16 %v996, %v992
    %v1193 = vpack.c.b16 %v1001, %v997
    %v1194 = vpack.c.b16 %v1002, %v998
    %v1195 = vpack.c.b16 %v1003, %v999
    %v1196 = vpack.c.b16 %v1004, %v1000
    %v1197 = vpack.c.b16 %v1009, %v1005
    %v1198 = vpack.c.b16 %v1010, %v1006
    %v1199 = vpack.c.b16 %v1011, %v1007
    %v1200 = vpack.c.b16 %v1012, %v1008
    %v1201 = vpack.c.b16 %v1017, %v1013
    %v1202 = vpack.c.b16 %v1018, %v1014
    %v1203 = vpack.c.b16 %v1019, %v1015
    %v1204 = vpack.c.b16 %v1020, %v1016
    %v1205 = vpack.c.b16 %v1025, %v1021
    %v1206 = vpack.c.b16 %v1026, %v1022
    %v1207 = vpack.c.b16 %v1027, %v1023
    %v1208 = vpack.c.b16 %v1028, %v1024
    %v1209 = vpack.c.b16 %v1033, %v1029
    %v1210 = vpack.c.b16 %v1034, %v1030
    %v1211 = vpack.c.b16 %v1035, %v1031
    %v1212 = vpack.c.b16 %v1036, %v1032
    %v1213 = vpack.c.b16 %v1041, %v1037
    %v1214 = vpack.c.b16 %v1042, %v1038
    %v1215 = vpack.c.b16 %v1043, %v1039
    %v1216 = vpack.c.b16 %v1044, %v1040
    %v1217 = vpack.c.b16 %v1049, %v1045
    %v1218 = vpack.c.b16 %v1050, %v1046
    %v1219 = vpack.c.b16 %v1051, %v1047
    %v1220 = vpack.c.b16 %v1052, %v1048
    %v1221 = vpack.c.b16 %v1057, %v1053
    %v1222 = vpack.c.b16 %v1058, %v1054
    %v1223 = vpack.c.b16 %v1059, %v1055
    %v1224 = vpack.c.b16 %v1060, %v1056
    %v1225 = vpack.c.b16 %v1065, %v1061
    %v1226 = vpack.c.b16 %v1066, %v1062
    %v1227 = vpack.c.b16 %v1067, %v1063
    %v1228 = vpack.c.b16 %v1068, %v1064
    %v1229 = vpack.c.b16 %v1073, %v1069
    %v1230 = vpack.c.b16 %v1074, %v1070
    %v1231 = vpack.c.b16 %v1075, %v1071
    %v1232 = vpack.c.b16 %v1076, %v1072
    %v1233 = vpack.c.b16 %v1081, %v1077
    %v1234 = vpack.c.b16 %v1082, %v1078
    %v1235 = vpack.c.b16 %v1083, %v1079
    %v1236 = vpack.c.b16 %v1084, %v1080
    %v1237 = vpack.c.b16 %v1089, %v1085
    %v1238 = vpack.c.b16 %v1090, %v1086
    %v1239 = vpack.c.b16 %v1091, %v1087
    %v1240 = vpack.c.b16 %v1092, %v1088
    %v1241 = vpack.c.b16 %v1097, %v1093
    %v1242 = vpack.c.b16 %v1098, %v1094
    %v1243 = vpack.c.b16 %v1099, %v1095
    %v1244 = vpack.c.b16 %v1100, %v1096
    %v1245 = vpack.c.b16 %v1105, %v1101
    %v1246 = vpack.c.b16 %v1106, %v1102
    %v1247 = vpack.c.b16 %v1107, %v1103
    %v1248 = vpack.c.b16 %v1108, %v1104
    %v1249 = vpack.c.b16 %v1113, %v1109
    %v1250 = vpack.c.b16 %v1114, %v1110
    %v1251 = vpack.c.b16 %v1115, %v1111
    %v1252 = vpack.c.b16 %v1116, %v1112
    %v1253 = vpack.c.b16 %v1121, %v1117
    %v1254 = vpack.c.b16 %v1122, %v1118
    %v1255 = vpack.c.b16 %v1123, %v1119
    %v1256 = vpack.c.b16 %v1124, %v1120
    %v1257 = vpack.c.b16 %v1129, %v1125
    %v1258 = vpack.c.b16 %v1130, %v1126
    %v1259 = vpack.c.b16 %v1131, %v1127
    %v1260 = vpack.c.b16 %v1132, %v1128
    %1389 = vmatprep.subr.bf16.mxu0 %v1134
    %1390 = vmatpush1.bf16.msra.mxu0 %v1133
    %1391 = vmatprep.subr.bf16.mxu0 %v1138
    %1392 = vmatpush1.bf16.msra.mxu0 %v1137
    %1393 = vmatprep.subr.bf16.mxu0 %v1142
    %1394 = vmatpush1.bf16.msra.mxu0 %v1141
    %1395 = vmatprep.subr.bf16.mxu0 %v1146
    %1396 = vmatpush1.bf16.msra.mxu0 %v1145
    %1397 = vmatprep.subr.bf16.mxu0 %v1150
    %1398 = vmatpush1.bf16.msra.mxu0 %v1149
    %1399 = vmatprep.subr.bf16.mxu0 %v1154
    %1400 = vmatpush1.bf16.msra.mxu0 %v1153
    %1401 = vmatprep.subr.bf16.mxu0 %v1158
    %1402 = vmatpush1.bf16.msra.mxu0 %v1157
    %1403 = vmatprep.subr.bf16.mxu0 %v1162
    %1404 = vmatpush1.bf16.msra.mxu0 %v1161
    %1405 = vmatprep.subr.bf16.mxu0 %v1166
    %1406 = vmatpush1.bf16.msra.mxu0 %v1165
    %1407 = vmatprep.subr.bf16.mxu0 %v1170
    %1408 = vmatpush1.bf16.msra.mxu0 %v1169
    %1409 = vmatprep.subr.bf16.mxu0 %v1174
    %1410 = vmatpush1.bf16.msra.mxu0 %v1173
    %1411 = vmatprep.subr.bf16.mxu0 %v1178
    %1412 = vmatpush1.bf16.msra.mxu0 %v1177
    %1413 = vmatprep.subr.bf16.mxu0 %v1182
    %1414 = vmatpush1.bf16.msra.mxu0 %v1181
    %1415 = vmatprep.subr.bf16.mxu0 %v1186
    %1416 = vmatpush1.bf16.msra.mxu0 %v1185
    %1417 = vmatprep.subr.bf16.mxu0 %v1190
    %1418 = vmatpush1.bf16.msra.mxu0 %v1189
    %1419 = vmatprep.subr.bf16.mxu0 %v1194
    %1420 = vmatpush1.bf16.msra.mxu0 %v1193
    %1421 = vmatprep.mubr.bf16.mxu0 %v596
    %1422 = vmatmul.mubr.bf16.gmra.mrb[0].mxu0 %v595
    %v1423 = vpop.f32.mrb[0].mxu0
    %v1424 = vadd.f32 %v732, %v1423
    %v1425 = vpop.f32.mrb[0].mxu0
    %v1426 = vadd.f32 %v736, %v1425
    %v1427 = vpop.f32.mrb[0].mxu0
    %v1428 = vadd.f32 %v732, %v1427
    %v1429 = vpop.f32.mrb[0].mxu0
    %v1430 = vadd.f32 %v736, %v1429
    %1431 = vdwg.mxu0
    %1432 = vmatprep.subr.bf16.mxu0 %v1198
    %1433 = vmatpush1.bf16.msra.mxu0 %v1197
    %1434 = vmatprep.subr.bf16.mxu0 %v1202
    %1435 = vmatpush1.bf16.msra.mxu0 %v1201
    %1436 = vmatprep.subr.bf16.mxu0 %v1206
    %1437 = vmatpush1.bf16.msra.mxu0 %v1205
    %1438 = vmatprep.subr.bf16.mxu0 %v1210
    %1439 = vmatpush1.bf16.msra.mxu0 %v1209
    %1440 = vmatprep.subr.bf16.mxu0 %v1214
    %1441 = vmatpush1.bf16.msra.mxu0 %v1213
    %1442 = vmatprep.subr.bf16.mxu0 %v1218
    %1443 = vmatpush1.bf16.msra.mxu0 %v1217
    %1444 = vmatprep.subr.bf16.mxu0 %v1222
    %1445 = vmatpush1.bf16.msra.mxu0 %v1221
    %1446 = vmatprep.subr.bf16.mxu0 %v1226
    %1447 = vmatpush1.bf16.msra.mxu0 %v1225
    %1448 = vmatprep.subr.bf16.mxu0 %v1230
    %1449 = vmatpush1.bf16.msra.mxu0 %v1229
    %1450 = vmatprep.subr.bf16.mxu0 %v1234
    %1451 = vmatpush1.bf16.msra.mxu0 %v1233
    %1452 = vmatprep.subr.bf16.mxu0 %v1238
    %1453 = vmatpush1.bf16.msra.mxu0 %v1237
    %1454 = vmatprep.subr.bf16.mxu0 %v1242
    %1455 = vmatpush1.bf16.msra.mxu0 %v1241
    %1456 = vmatprep.subr.bf16.mxu0 %v1246
    %1457 = vmatpush1.bf16.msra.mxu0 %v1245
    %1458 = vmatprep.subr.bf16.mxu0 %v1250
    %1459 = vmatpush1.bf16.msra.mxu0 %v1249
    %1460 = vmatprep.subr.bf16.mxu0 %v1254
    %1461 = vmatpush1.bf16.msra.mxu0 %v1253
    %1462 = vmatprep.subr.bf16.mxu0 %v1258
    %1463 = vmatpush1.bf16.msra.mxu0 %v1257
    %1464 = vmatprep.mubr.bf16.mxu0 %v598
    %1465 = vmatmul.mubr.bf16.gmra.mrb[0].mxu0 %v597
    %v1466 = vpop.f32.mrb[0].mxu0
    %v1467 = vadd.f32 %v1424, %v1466
    %v1468 = vpop.f32.mrb[0].mxu0
    %v1469 = vadd.f32 %v1426, %v1468
    %v1470 = vpop.f32.mrb[0].mxu0
    %v1471 = vadd.f32 %v1428, %v1470
    %v1472 = vpop.f32.mrb[0].mxu0
    %v1473 = vadd.f32 %v1430, %v1472
    %1474 = vdwg.mxu0
    %1475 = vmatprep.subr.bf16.mxu0 %v1136
    %1476 = vmatpush1.bf16.msra.mxu0 %v1135
    %1477 = vmatprep.subr.bf16.mxu0 %v1140
    %1478 = vmatpush1.bf16.msra.mxu0 %v1139
    %1479 = vmatprep.subr.bf16.mxu0 %v1144
    %1480 = vmatpush1.bf16.msra.mxu0 %v1143
    %1481 = vmatprep.subr.bf16.mxu0 %v1148
    %1482 = vmatpush1.bf16.msra.mxu0 %v1147
    %1483 = vmatprep.subr.bf16.mxu0 %v1152
    %1484 = vmatpush1.bf16.msra.mxu0 %v1151
    %1485 = vmatprep.subr.bf16.mxu0 %v1156
    %1486 = vmatpush1.bf16.msra.mxu0 %v1155
    %1487 = vmatprep.subr.bf16.mxu0 %v1160
    %1488 = vmatpush1.bf16.msra.mxu0 %v1159
    %1489 = vmatprep.subr.bf16.mxu0 %v1164
    %1490 = vmatpush1.bf16.msra.mxu0 %v1163
    %1491 = vmatprep.subr.bf16.mxu0 %v1168
    %1492 = vmatpush1.bf16.msra.mxu0 %v1167
    %1493 = vmatprep.subr.bf16.mxu0 %v1172
    %1494 = vmatpush1.bf16.msra.mxu0 %v1171
    %1495 = vmatprep.subr.bf16.mxu0 %v1176
    %1496 = vmatpush1.bf16.msra.mxu0 %v1175
    %1497 = vmatprep.subr.bf16.mxu0 %v1180
    %1498 = vmatpush1.bf16.msra.mxu0 %v1179
    %1499 = vmatprep.subr.bf16.mxu0 %v1184
    %1500 = vmatpush1.bf16.msra.mxu0 %v1183
    %1501 = vmatprep.subr.bf16.mxu0 %v1188
    %1502 = vmatpush1.bf16.msra.mxu0 %v1187
    %1503 = vmatprep.subr.bf16.mxu0 %v1192
    %1504 = vmatpush1.bf16.msra.mxu0 %v1191
    %1505 = vmatprep.subr.bf16.mxu0 %v1196
    %1506 = vmatpush1.bf16.msra.mxu0 %v1195
    %1507 = vmatprep.mubr.bf16.mxu0 %v596
    %1508 = vmatmul.mubr.bf16.gmra.mrb[0].mxu0 %v595
    %v1509 = vpop.f32.mrb[0].mxu0
    %v1510 = vadd.f32 %v740, %v1509
    %v1511 = vpop.f32.mrb[0].mxu0
    %v1512 = vadd.f32 %v744, %v1511
    %v1513 = vpop.f32.mrb[0].mxu0
    %v1514 = vadd.f32 %v740, %v1513
    %v1515 = vpop.f32.mrb[0].mxu0
    %v1516 = vadd.f32 %v744, %v1515
    %1517 = vdwg.mxu0
    %1518 = vmatprep.subr.bf16.mxu0 %v1200
    %1519 = vmatpush1.bf16.msra.mxu0 %v1199
    %1520 = vmatprep.subr.bf16.mxu0 %v1204
    %1521 = vmatpush1.bf16.msra.mxu0 %v1203
    %1522 = vmatprep.subr.bf16.mxu0 %v1208
    %1523 = vmatpush1.bf16.msra.mxu0 %v1207
    %1524 = vmatprep.subr.bf16.mxu0 %v1212
    %1525 = vmatpush1.bf16.msra.mxu0 %v1211
    %1526 = vmatprep.subr.bf16.mxu0 %v1216
    %1527 = vmatpush1.bf16.msra.mxu0 %v1215
    %1528 = vmatprep.subr.bf16.mxu0 %v1220
    %1529 = vmatpush1.bf16.msra.mxu0 %v1219
    %1530 = vmatprep.subr.bf16.mxu0 %v1224
    %1531 = vmatpush1.bf16.msra.mxu0 %v1223
    %1532 = vmatprep.subr.bf16.mxu0 %v1228
    %1533 = vmatpush1.bf16.msra.mxu0 %v1227
    %1534 = vmatprep.subr.bf16.mxu0 %v1232
    %1535 = vmatpush1.bf16.msra.mxu0 %v1231
    %1536 = vmatprep.subr.bf16.mxu0 %v1236
    %1537 = vmatpush1.bf16.msra.mxu0 %v1235
    %1538 = vmatprep.subr.bf16.mxu0 %v1240
    %1539 = vmatpush1.bf16.msra.mxu0 %v1239
    %1540 = vmatprep.subr.bf16.mxu0 %v1244
    %1541 = vmatpush1.bf16.msra.mxu0 %v1243
    %1542 = vmatprep.subr.bf16.mxu0 %v1248
    %1543 = vmatpush1.bf16.msra.mxu0 %v1247
    %1544 = vmatprep.subr.bf16.mxu0 %v1252
    %1545 = vmatpush1.bf16.msra.mxu0 %v1251
    %1546 = vmatprep.subr.bf16.mxu0 %v1256
    %1547 = vmatpush1.bf16.msra.mxu0 %v1255
    %1548 = vmatprep.subr.bf16.mxu0 %v1260
    %1549 = vmatpush1.bf16.msra.mxu0 %v1259
    %1550 = vmatprep.mubr.bf16.mxu0 %v598
    %1551 = vmatmul.mubr.bf16.gmra.mrb[0].mxu0 %v597
    %v1552 = vpop.f32.mrb[0].mxu0
    %v1553 = vadd.f32 %v1510, %v1552
    %v1554 = vpop.f32.mrb[0].mxu0
    %v1555 = vadd.f32 %v1512, %v1554
    %v1556 = vpop.f32.mrb[0].mxu0
    %v1557 = vadd.f32 %v1514, %v1556
    %v1558 = vpop.f32.mrb[0].mxu0
    %v1559 = vadd.f32 %v1516, %v1558
    %1560 = vdwg.mxu0
    %v1561 = vmax.f32 %v1467, 0.0
    %v1562 = vmax.f32 %v1469, 0.0
    %v1563 = vmax.f32 %v1553, 0.0
    %v1564 = vmax.f32 %v1555, 0.0
    %v1565 = vmax.f32 %v1471, 0.0
    %v1566 = vmax.f32 %v1473, 0.0
    %v1567 = vmax.f32 %v1557, 0.0
    %v1568 = vmax.f32 %v1559, 0.0
    %v1569 = vpack.c.bf16 %v1565, %v1561
    %v1570 = vpack.c.bf16 %v1566, %v1562
    %v1571 = vpack.c.bf16 %v1567, %v1563
    %v1572 = vpack.c.bf16 %v1568, %v1564
    %v1573 = vld [vmem:[#allocation8] sm:$0xf]
    %v1574 = vld [vmem:[#allocation8 + $0x4] sm:$0xf]
    %v1575 = vld [vmem:[#allocation8 + $0x8] sm:$0xf]
    %v1576 = vld [vmem:[#allocation8 + $0xc] sm:$0xf]
    %v1577 = vld [vmem:[#allocation8 + $0x10] sm:$0xf]
    %v1578 = vld [vmem:[#allocation8 + $0x14] sm:$0xf]
    %v1579 = vld [vmem:[#allocation8 + $0x18] sm:$0xf]
    %v1580 = vld [vmem:[#allocation8 + $0x1c] sm:$0xf]
    %v1581 = vld [vmem:[#allocation8 + $0x20] sm:$0xf]
    %v1582 = vld [vmem:[#allocation8 + $0x24] sm:$0xf]
    %v1583 = vld [vmem:[#allocation8 + $0x28] sm:$0xf]
    %v1584 = vld [vmem:[#allocation8 + $0x2c] sm:$0xf]
    %v1585 = vld [vmem:[#allocation8 + $0x30] sm:$0xf]
    %v1586 = vld [vmem:[#allocation8 + $0x34] sm:$0xf]
    %v1587 = vld [vmem:[#allocation8 + $0x38] sm:$0xf]
    %v1588 = vld [vmem:[#allocation8 + $0x3c] sm:$0xf]
    %v1589 = vld [vmem:[#allocation8 + $0x40] sm:$0xf]
    %v1590 = vld [vmem:[#allocation8 + $0x44] sm:$0xf]
    %v1591 = vld [vmem:[#allocation8 + $0x48] sm:$0xf]
    %v1592 = vld [vmem:[#allocation8 + $0x4c] sm:$0xf]
    %v1593 = vld [vmem:[#allocation8 + $0x50] sm:$0xf]
    %v1594 = vld [vmem:[#allocation8 + $0x54] sm:$0xf]
    %v1595 = vld [vmem:[#allocation8 + $0x58] sm:$0xf]
    %v1596 = vld [vmem:[#allocation8 + $0x5c] sm:$0xf]
    %v1597 = vld [vmem:[#allocation8 + $0x60] sm:$0xf]
    %v1598 = vld [vmem:[#allocation8 + $0x64] sm:$0xf]
    %v1599 = vld [vmem:[#allocation8 + $0x68] sm:$0xf]
    %v1600 = vld [vmem:[#allocation8 + $0x6c] sm:$0xf]
    %v1601 = vld [vmem:[#allocation8 + $0x70] sm:$0xf]
    %v1602 = vld [vmem:[#allocation8 + $0x74] sm:$0xf]
    %v1603 = vld [vmem:[#allocation8 + $0x78] sm:$0xf]
    %v1604 = vld [vmem:[#allocation8 + $0x7c] sm:$0xf]
    %v1605 = vld [vmem:[#allocation8 + $0x80] sm:$0xf]
    %v1606 = vld [vmem:[#allocation8 + $0x84] sm:$0xf]
    %v1607 = vld [vmem:[#allocation8 + $0x88] sm:$0xf]
    %v1608 = vld [vmem:[#allocation8 + $0x8c] sm:$0xf]
    %v1609 = vld [vmem:[#allocation8 + $0x90] sm:$0xf]
    %v1610 = vld [vmem:[#allocation8 + $0x94] sm:$0xf]
    %v1611 = vld [vmem:[#allocation8 + $0x98] sm:$0xf]
    %v1612 = vld [vmem:[#allocation8 + $0x9c] sm:$0xf]
    %v1613 = vld [vmem:[#allocation8 + $0xa0] sm:$0xf]
    %v1614 = vld [vmem:[#allocation8 + $0xa4] sm:$0xf]
    %v1615 = vld [vmem:[#allocation8 + $0xa8] sm:$0xf]
    %v1616 = vld [vmem:[#allocation8 + $0xac] sm:$0xf]
    %v1617 = vld [vmem:[#allocation8 + $0xb0] sm:$0xf]
    %v1618 = vld [vmem:[#allocation8 + $0xb4] sm:$0xf]
    %v1619 = vld [vmem:[#allocation8 + $0xb8] sm:$0xf]
    %v1620 = vld [vmem:[#allocation8 + $0xbc] sm:$0xf]
    %v1621 = vld [vmem:[#allocation8 + $0xc0] sm:$0xf]
    %v1622 = vld [vmem:[#allocation8 + $0xc4] sm:$0xf]
    %v1623 = vld [vmem:[#allocation8 + $0xc8] sm:$0xf]
    %v1624 = vld [vmem:[#allocation8 + $0xcc] sm:$0xf]
    %v1625 = vld [vmem:[#allocation8 + $0xd0] sm:$0xf]
    %v1626 = vld [vmem:[#allocation8 + $0xd4] sm:$0xf]
    %v1627 = vld [vmem:[#allocation8 + $0xd8] sm:$0xf]
    %v1628 = vld [vmem:[#allocation8 + $0xdc] sm:$0xf]
    %v1629 = vld [vmem:[#allocation8 + $0xe0] sm:$0xf]
    %v1630 = vld [vmem:[#allocation8 + $0xe4] sm:$0xf]
    %v1631 = vld [vmem:[#allocation8 + $0xe8] sm:$0xf]
    %v1632 = vld [vmem:[#allocation8 + $0xec] sm:$0xf]
    %v1633 = vld [vmem:[#allocation8 + $0xf0] sm:$0xf]
    %v1634 = vld [vmem:[#allocation8 + $0xf4] sm:$0xf]
    %v1635 = vld [vmem:[#allocation8 + $0xf8] sm:$0xf]
    %v1636 = vld [vmem:[#allocation8 + $0xfc] sm:$0xf]
    %v1637 = vld [vmem:[%s6] sm:$0x1]
    %v1639 = vlaneseq
    %v1640 = vshrl.u32 %v1639, 7
    %v1641 = vsub.s32 0, %v1640
    %v1642 = vrot.slane %v1637, %v1641
    %v1708 = vunpack.c.l.b16 %v1573
    %v1709 = vunpack.c.l.b16 %v1574
    %v1710 = vunpack.c.l.b16 %v1575
    %v1711 = vunpack.c.l.b16 %v1576
    %v1712 = vunpack.c.l.b16 %v1577
    %v1713 = vunpack.c.l.b16 %v1578
    %v1714 = vunpack.c.l.b16 %v1579
    %v1715 = vunpack.c.l.b16 %v1580
    %v1716 = vunpack.c.l.b16 %v1581
    %v1717 = vunpack.c.l.b16 %v1582
    %v1718 = vunpack.c.l.b16 %v1583
    %v1719 = vunpack.c.l.b16 %v1584
    %v1720 = vunpack.c.l.b16 %v1585
    %v1721 = vunpack.c.l.b16 %v1586
    %v1722 = vunpack.c.l.b16 %v1587
    %v1723 = vunpack.c.l.b16 %v1588
    %v1724 = vunpack.c.l.b16 %v1589
    %v1725 = vunpack.c.l.b16 %v1590
    %v1726 = vunpack.c.l.b16 %v1591
    %v1727 = vunpack.c.l.b16 %v1592
    %v1728 = vunpack.c.l.b16 %v1593
    %v1729 = vunpack.c.l.b16 %v1594
    %v1730 = vunpack.c.l.b16 %v1595
    %v1731 = vunpack.c.l.b16 %v1596
    %v1732 = vunpack.c.l.b16 %v1597
    %v1733 = vunpack.c.l.b16 %v1598
    %v1734 = vunpack.c.l.b16 %v1599
    %v1735 = vunpack.c.l.b16 %v1600
    %v1736 = vunpack.c.l.b16 %v1601
    %v1737 = vunpack.c.l.b16 %v1602
    %v1738 = vunpack.c.l.b16 %v1603
    %v1739 = vunpack.c.l.b16 %v1604
    %v1740 = vunpack.c.l.b16 %v1605
    %v1741 = vunpack.c.l.b16 %v1606
    %v1742 = vunpack.c.l.b16 %v1607
    %v1743 = vunpack.c.l.b16 %v1608
    %v1744 = vunpack.c.l.b16 %v1609
    %v1745 = vunpack.c.l.b16 %v1610
    %v1746 = vunpack.c.l.b16 %v1611
    %v1747 = vunpack.c.l.b16 %v1612
    %v1748 = vunpack.c.l.b16 %v1613
    %v1749 = vunpack.c.l.b16 %v1614
    %v1750 = vunpack.c.l.b16 %v1615
    %v1751 = vunpack.c.l.b16 %v1616
    %v1752 = vunpack.c.l.b16 %v1617
    %v1753 = vunpack.c.l.b16 %v1618
    %v1754 = vunpack.c.l.b16 %v1619
    %v1755 = vunpack.c.l.b16 %v1620
    %v1756 = vunpack.c.l.b16 %v1621
    %v1757 = vunpack.c.l.b16 %v1622
    %v1758 = vunpack.c.l.b16 %v1623
    %v1759 = vunpack.c.l.b16 %v1624
    %v1760 = vunpack.c.l.b16 %v1625
    %v1761 = vunpack.c.l.b16 %v1626
    %v1762 = vunpack.c.l.b16 %v1627
    %v1763 = vunpack.c.l.b16 %v1628
    %v1764 = vunpack.c.l.b16 %v1629
    %v1765 = vunpack.c.l.b16 %v1630
    %v1766 = vunpack.c.l.b16 %v1631
    %v1767 = vunpack.c.l.b16 %v1632
    %v1768 = vunpack.c.l.b16 %v1633
    %v1769 = vunpack.c.l.b16 %v1634
    %v1770 = vunpack.c.l.b16 %v1635
    %v1771 = vunpack.c.l.b16 %v1636
    %v1772 = vpack.c.b16 %v1709, %v1708
    %v1773 = vpack.c.b16 %v1711, %v1710
    %v1774 = vpack.c.b16 %v1713, %v1712
    %v1775 = vpack.c.b16 %v1715, %v1714
    %v1776 = vpack.c.b16 %v1717, %v1716
    %v1777 = vpack.c.b16 %v1719, %v1718
    %v1778 = vpack.c.b16 %v1721, %v1720
    %v1779 = vpack.c.b16 %v1723, %v1722
    %v1780 = vpack.c.b16 %v1725, %v1724
    %v1781 = vpack.c.b16 %v1727, %v1726
    %v1782 = vpack.c.b16 %v1729, %v1728
    %v1783 = vpack.c.b16 %v1731, %v1730
    %v1784 = vpack.c.b16 %v1733, %v1732
    %v1785 = vpack.c.b16 %v1735, %v1734
    %v1786 = vpack.c.b16 %v1737, %v1736
    %v1787 = vpack.c.b16 %v1739, %v1738
    %v1788 = vpack.c.b16 %v1741, %v1740
    %v1789 = vpack.c.b16 %v1743, %v1742
    %v1790 = vpack.c.b16 %v1745, %v1744
    %v1791 = vpack.c.b16 %v1747, %v1746
    %v1792 = vpack.c.b16 %v1749, %v1748
    %v1793 = vpack.c.b16 %v1751, %v1750
    %v1794 = vpack.c.b16 %v1753, %v1752
    %v1795 = vpack.c.b16 %v1755, %v1754
    %v1796 = vpack.c.b16 %v1757, %v1756
    %v1797 = vpack.c.b16 %v1759, %v1758
    %v1798 = vpack.c.b16 %v1761, %v1760
    %v1799 = vpack.c.b16 %v1763, %v1762
    %v1800 = vpack.c.b16 %v1765, %v1764
    %v1801 = vpack.c.b16 %v1767, %v1766
    %v1802 = vpack.c.b16 %v1769, %v1768
    %v1803 = vpack.c.b16 %v1771, %v1770
    %1836 = vmatprep.subr.bf16.mxu0 0
    %1837 = vmatpush1.bf16.msra.mxu0 %v1772
    %1838 = vmatprep.subr.bf16.mxu0 0
    %1839 = vmatpush1.bf16.msra.mxu0 %v1773
    %1840 = vmatprep.subr.bf16.mxu0 0
    %1841 = vmatpush1.bf16.msra.mxu0 %v1774
    %1842 = vmatprep.subr.bf16.mxu0 0
    %1843 = vmatpush1.bf16.msra.mxu0 %v1775
    %1844 = vmatprep.subr.bf16.mxu0 0
    %1845 = vmatpush1.bf16.msra.mxu0 %v1776
    %1846 = vmatprep.subr.bf16.mxu0 0
    %1847 = vmatpush1.bf16.msra.mxu0 %v1777
    %1848 = vmatprep.subr.bf16.mxu0 0
    %1849 = vmatpush1.bf16.msra.mxu0 %v1778
    %1850 = vmatprep.subr.bf16.mxu0 0
    %1851 = vmatpush1.bf16.msra.mxu0 %v1779
    %1852 = vmatprep.subr.bf16.mxu0 0
    %1853 = vmatpush1.bf16.msra.mxu0 %v1780
    %1854 = vmatprep.subr.bf16.mxu0 0
    %1855 = vmatpush1.bf16.msra.mxu0 %v1781
    %1856 = vmatprep.subr.bf16.mxu0 0
    %1857 = vmatpush1.bf16.msra.mxu0 %v1782
    %1858 = vmatprep.subr.bf16.mxu0 0
    %1859 = vmatpush1.bf16.msra.mxu0 %v1783
    %1860 = vmatprep.subr.bf16.mxu0 0
    %1861 = vmatpush1.bf16.msra.mxu0 %v1784
    %1862 = vmatprep.subr.bf16.mxu0 0
    %1863 = vmatpush1.bf16.msra.mxu0 %v1785
    %1864 = vmatprep.subr.bf16.mxu0 0
    %1865 = vmatpush1.bf16.msra.mxu0 %v1786
    %1866 = vmatprep.subr.bf16.mxu0 0
    %1867 = vmatpush1.bf16.msra.mxu0 %v1787
    %1868 = vmatprep.mubr.bf16.mxu0 %v1570
    %1869 = vmatmul.mubr.bf16.gmra.mrb[0].mxu0 %v1569
    %v1870 = vpop.f32.mrb[0].mxu0
    %v1871 = vadd.f32 %v1642, %v1870
    %v1872 = vpop.f32.mrb[0].mxu0
    %v1873 = vpop.f32.mrb[0].mxu0
    %v1874 = vadd.f32 %v1642, %v1873
    %v1875 = vpop.f32.mrb[0].mxu0
    %1876 = vdwg.mxu0
    %1877 = vmatprep.subr.bf16.mxu0 0
    %1878 = vmatpush1.bf16.msra.mxu0 %v1788
    %1879 = vmatprep.subr.bf16.mxu0 0
    %1880 = vmatpush1.bf16.msra.mxu0 %v1789
    %1881 = vmatprep.subr.bf16.mxu0 0
    %1882 = vmatpush1.bf16.msra.mxu0 %v1790
    %1883 = vmatprep.subr.bf16.mxu0 0
    %1884 = vmatpush1.bf16.msra.mxu0 %v1791
    %1885 = vmatprep.subr.bf16.mxu0 0
    %1886 = vmatpush1.bf16.msra.mxu0 %v1792
    %1887 = vmatprep.subr.bf16.mxu0 0
    %1888 = vmatpush1.bf16.msra.mxu0 %v1793
    %1889 = vmatprep.subr.bf16.mxu0 0
    %1890 = vmatpush1.bf16.msra.mxu0 %v1794
    %1891 = vmatprep.subr.bf16.mxu0 0
    %1892 = vmatpush1.bf16.msra.mxu0 %v1795
    %1893 = vmatprep.subr.bf16.mxu0 0
    %1894 = vmatpush1.bf16.msra.mxu0 %v1796
    %1895 = vmatprep.subr.bf16.mxu0 0
    %1896 = vmatpush1.bf16.msra.mxu0 %v1797
    %1897 = vmatprep.subr.bf16.mxu0 0
    %1898 = vmatpush1.bf16.msra.mxu0 %v1798
    %1899 = vmatprep.subr.bf16.mxu0 0
    %1900 = vmatpush1.bf16.msra.mxu0 %v1799
    %1901 = vmatprep.subr.bf16.mxu0 0
    %1902 = vmatpush1.bf16.msra.mxu0 %v1800
    %1903 = vmatprep.subr.bf16.mxu0 0
    %1904 = vmatpush1.bf16.msra.mxu0 %v1801
    %1905 = vmatprep.subr.bf16.mxu0 0
    %1906 = vmatpush1.bf16.msra.mxu0 %v1802
    %1907 = vmatprep.subr.bf16.mxu0 0
    %1908 = vmatpush1.bf16.msra.mxu0 %v1803
    %1909 = vmatprep.mubr.bf16.mxu0 %v1572
    %1910 = vmatmul.mubr.bf16.gmra.mrb[0].mxu0 %v1571
    %v1911 = vpop.f32.mrb[0].mxu0
    %v1912 = vadd.f32 %v1871, %v1911
    %v1913 = vpop.f32.mrb[0].mxu0
    %v1914 = vpop.f32.mrb[0].mxu0
    %v1915 = vadd.f32 %v1874, %v1914
    %v1916 = vpop.f32.mrb[0].mxu0
    %1917 = vdwg.mxu0
    %1918 = vst [vmem:[#allocation10] sm:$0xff] %v1912
    %1919 = vst [vmem:[#allocation10 + $0x8] sm:$0xff] %v1915
    // Predicated region
    $region46: #{tpu_custom_call.1} parent=1 // pred_check
      _
    $region47: #{tpu_custom_call.1} parent=1 // pred_check_branch
      %1921 = sbr.rel (0) target = $region49
    $region48: #{tpu_custom_call.1} parent=1 // pred_region
      %s1923 = ssub.s32 256, 256
      %1924 = vsyncadd [#allocation4], %s1923
      %s1925 = sshll.u32 [#allocation10], 4
      %s1926 = int_to_ptr.vmem [resolvable:$true] %s1925
      %1931 = dma.vmem_to_hbm [thread:$0]  %s1926, 256, %s7, [#allocation4], 128, 128, 8
    $region49: #{tpu_custom_call.1} parent=1 // pred_fallthru
      _
    // Predicated region
    $region50: #{tpu_custom_call.1} parent=1 // pred_check
      _
    $region51: #{tpu_custom_call.1} parent=1 // pred_check_branch
      %1933 = sbr.rel (0) target = $region53
    $region52: #{tpu_custom_call.1} parent=1 // pred_region
      %1934 = dma.done [#allocation4], 256
    $region53: #{tpu_custom_call.1} parent=1 // pred_fallthru
      _
    %1935 = vsyncpa [#allocation3], 1
    %1936 = vsyncpa [#allocation6], 1
    %1937 = vsyncpa [#allocation9], 1
    %1938 = vsyncpa [#allocation4], 1

// kernel: tpu_custom_call.1
$region0: #{tpu_custom_call.1}
  #allocation0 [shape = 'u32[]', space=smem, size = 0x4, offset = 0x4, fixed_abs, tag = 'smem constant byte address 0x4 - core index']
  #allocation1 [shape = 'u32[144,128]{1,0:T(1,128)}', space=vmem, size = 0x12000, scoped, tag = 'internal scratch']
  %s0 = inlined_call_operand.hbm [shape: bf16[16,256], index: 0, kind: input, shape index: {}]
  %s1 = inlined_call_operand.hbm [shape: bf16[256,512], index: 1, kind: input, shape index: {}]
  %s2 = inlined_call_operand.vmem [shape: f32[1,512], index: 2, kind: input, shape index: {}]
  %s3 = inlined_call_operand.hbm [shape: bf16[16,512], index: 3, kind: output, shape index: {}]
  %s4 = sld [smem:[#allocation0]]
  $region30: #{tpu_custom_call.1} parent=0
    _
  %s6 = ssub.s32 1, %s4
  %s7 = scalar_select 0, %s6, %s4
  $region1: #{tpu_custom_call.1} parent=0
    #allocation2 [shape = 'u8[8192]{0}', space=vmem, size = 0x2000, scoped, tag = 'input window, operand 0, single buffered']
    #allocation3 [shape = 's32[1]{0}', space=sflag, size = 0x4, scoped, tag = 'scoped memory for tpu_custom_call.1']
    #allocation4 [shape = 's32[1]{0}', space=sflag, size = 0x4, scoped, tag = 'scoped memory for tpu_custom_call.1']
    #allocation5 [shape = 'u8[262144]{0}', space=vmem, size = 0x40000, scoped, tag = 'input window, operand 1, single buffered']
    #allocation6 [shape = 's32[1]{0}', space=sflag, size = 0x4, scoped, tag = 'scoped memory for tpu_custom_call.1']
    #allocation7 [shape = 'u8[16384]{0}', space=vmem, size = 0x4000, scoped, tag = 'output window, operand 0, single buffered']
    %8 = vsyncpa [#allocation3], 0
    %9 = vsyncpa [#allocation6], 0
    %10 = vsyncpa [#allocation4], 0
    // Predicated region
    $region2: #{tpu_custom_call.1} parent=1 // pred_check
      _
    $region3: #{tpu_custom_call.1} parent=1 // pred_check_branch
      %12 = sbr.rel (0) target = $region5
    $region4: #{tpu_custom_call.1} parent=1 // pred_region
      %s14 = ssub.s32 256, 256
      %15 = vsyncadd [#allocation3], %s14
      %s16 = sshll.u32 [#allocation2], 4
      %s17 = int_to_ptr.vmem [resolvable:$true] %s16
      %22 = dma.hbm_to_vmem [thread:$0]  %s0, 256, %s17, [#allocation3], 128, 128, 8
    $region5: #{tpu_custom_call.1} parent=1 // pred_fallthru
      _
    // Predicated region
    $region6: #{tpu_custom_call.1} parent=1 // pred_check
      _
    $region7: #{tpu_custom_call.1} parent=1 // pred_check_branch
      %24 = sbr.rel (0) target = $region9
    $region8: #{tpu_custom_call.1} parent=1 // pred_region
      %s26 = ssub.s32 8192, 8192
      %27 = vsyncadd [#allocation6], %s26
      %s28 = sshll.u32 [#allocation5], 4
      %s29 = int_to_ptr.vmem [resolvable:$true] %s28
      %34 = dma.hbm_to_vmem [thread:$0]  %s1, 8192, %s29, [#allocation6], 256, 256, 16
    $region9: #{tpu_custom_call.1} parent=1 // pred_fallthru
      _
    // Predicated region
    $region10: #{tpu_custom_call.1} parent=1 // pred_check
      _
    $region11: #{tpu_custom_call.1} parent=1 // pred_check_branch
      %36 = sbr.rel (0) target = $region13
    $region12: #{tpu_custom_call.1} parent=1 // pred_region
      _
    $region13: #{tpu_custom_call.1} parent=1 // pred_fallthru
      _
    // Predicated region
    $region14: #{tpu_custom_call.1} parent=1 // pred_check
      _
    $region15: #{tpu_custom_call.1} parent=1 // pred_check_branch
      %38 = sbr.rel (0) target = $region17
    $region16: #{tpu_custom_call.1} parent=1 // pred_region
      %39 = dma.done [#allocation3], 256
    $region17: #{tpu_custom_call.1} parent=1 // pred_fallthru
      _
    // Predicated region
    $region18: #{tpu_custom_call.1} parent=1 // pred_check
      _
    $region19: #{tpu_custom_call.1} parent=1 // pred_check_branch
      %41 = sbr.rel (0) target = $region21
    $region20: #{tpu_custom_call.1} parent=1 // pred_region
      %42 = dma.done [#allocation6], 8192
    $region21: #{tpu_custom_call.1} parent=1 // pred_fallthru
      _
    %v43 = vld [vmem:[#allocation2] sm:$0xff]
    %v44 = vld [vmem:[#allocation2 + $0x8] sm:$0xff]
    %v45 = vld [vmem:[#allocation5] sm:$0xff]
    %v46 = vld [vmem:[#allocation5 + $0x8] sm:$0xff]
    %v47 = vld [vmem:[#allocation5 + $0x10] sm:$0xff]
    %v48 = vld [vmem:[#allocation5 + $0x18] sm:$0xff]
    %v49 = vld [vmem:[#allocation5 + $0x20] sm:$0xff]
    %v50 = vld [vmem:[#allocation5 + $0x28] sm:$0xff]
    %v51 = vld [vmem:[#allocation5 + $0x30] sm:$0xff]
    %v52 = vld [vmem:[#allocation5 + $0x38] sm:$0xff]
    %v53 = vld [vmem:[#allocation5 + $0x40] sm:$0xff]
    %v54 = vld [vmem:[#allocation5 + $0x48] sm:$0xff]
    %v55 = vld [vmem:[#allocation5 + $0x50] sm:$0xff]
    %v56 = vld [vmem:[#allocation5 + $0x58] sm:$0xff]
    %v57 = vld [vmem:[#allocation5 + $0x60] sm:$0xff]
    %v58 = vld [vmem:[#allocation5 + $0x68] sm:$0xff]
    %v59 = vld [vmem:[#allocation5 + $0x70] sm:$0xff]
    %v60 = vld [vmem:[#allocation5 + $0x78] sm:$0xff]
    %v61 = vld [vmem:[#allocation5 + $0x80] sm:$0xff]
    %v62 = vld [vmem:[#allocation5 + $0x88] sm:$0xff]
    %v63 = vld [vmem:[#allocation5 + $0x90] sm:$0xff]
    %v64 = vld [vmem:[#allocation5 + $0x98] sm:$0xff]
    %v65 = vld [vmem:[#allocation5 + $0xa0] sm:$0xff]
    %v66 = vld [vmem:[#allocation5 + $0xa8] sm:$0xff]
    %v67 = vld [vmem:[#allocation5 + $0xb0] sm:$0xff]
    %v68 = vld [vmem:[#allocation5 + $0xb8] sm:$0xff]
    %v69 = vld [vmem:[#allocation5 + $0xc0] sm:$0xff]
    %v70 = vld [vmem:[#allocation5 + $0xc8] sm:$0xff]
    %v71 = vld [vmem:[#allocation5 + $0xd0] sm:$0xff]
    %v72 = vld [vmem:[#allocation5 + $0xd8] sm:$0xff]
    %v73 = vld [vmem:[#allocation5 + $0xe0] sm:$0xff]
    %v74 = vld [vmem:[#allocation5 + $0xe8] sm:$0xff]
    %v75 = vld [vmem:[#allocation5 + $0xf0] sm:$0xff]
    %v76 = vld [vmem:[#allocation5 + $0xf8] sm:$0xff]
    %v77 = vld [vmem:[#allocation5 + $0x100] sm:$0xff]
    %v78 = vld [vmem:[#allocation5 + $0x108] sm:$0xff]
    %v79 = vld [vmem:[#allocation5 + $0x110] sm:$0xff]
    %v80 = vld [vmem:[#allocation5 + $0x118] sm:$0xff]
    %v81 = vld [vmem:[#allocation5 + $0x120] sm:$0xff]
    %v82 = vld [vmem:[#allocation5 + $0x128] sm:$0xff]
    %v83 = vld [vmem:[#allocation5 + $0x130] sm:$0xff]
    %v84 = vld [vmem:[#allocation5 + $0x138] sm:$0xff]
    %v85 = vld [vmem:[#allocation5 + $0x140] sm:$0xff]
    %v86 = vld [vmem:[#allocation5 + $0x148] sm:$0xff]
    %v87 = vld [vmem:[#allocation5 + $0x150] sm:$0xff]
    %v88 = vld [vmem:[#allocation5 + $0x158] sm:$0xff]
    %v89 = vld [vmem:[#allocation5 + $0x160] sm:$0xff]
    %v90 = vld [vmem:[#allocation5 + $0x168] sm:$0xff]
    %v91 = vld [vmem:[#allocation5 + $0x170] sm:$0xff]
    %v92 = vld [vmem:[#allocation5 + $0x178] sm:$0xff]
    %v93 = vld [vmem:[#allocation5 + $0x180] sm:$0xff]
    %v94 = vld [vmem:[#allocation5 + $0x188] sm:$0xff]
    %v95 = vld [vmem:[#allocation5 + $0x190] sm:$0xff]
    %v96 = vld [vmem:[#allocation5 + $0x198] sm:$0xff]
    %v97 = vld [vmem:[#allocation5 + $0x1a0] sm:$0xff]
    %v98 = vld [vmem:[#allocation5 + $0x1a8] sm:$0xff]
    %v99 = vld [vmem:[#allocation5 + $0x1b0] sm:$0xff]
    %v100 = vld [vmem:[#allocation5 + $0x1b8] sm:$0xff]
    %v101 = vld [vmem:[#allocation5 + $0x1c0] sm:$0xff]
    %v102 = vld [vmem:[#allocation5 + $0x1c8] sm:$0xff]
    %v103 = vld [vmem:[#allocation5 + $0x1d0] sm:$0xff]
    %v104 = vld [vmem:[#allocation5 + $0x1d8] sm:$0xff]
    %v105 = vld [vmem:[#allocation5 + $0x1e0] sm:$0xff]
    %v106 = vld [vmem:[#allocation5 + $0x1e8] sm:$0xff]
    %v107 = vld [vmem:[#allocation5 + $0x1f0] sm:$0xff]
    %v108 = vld [vmem:[#allocation5 + $0x1f8] sm:$0xff]
    %v109 = vld [vmem:[%s2] sm:$0xf]
    %v111 = vlaneseq
    %v112 = vshrl.u32 %v111, 7
    %v113 = vsub.s32 0, %v112
    %v114 = vrot.slane %v109, %v113
    %v115 = vlaneseq
    %v116 = vshrl.u32 %v115, 7
    %v117 = vsub.s32 1, %v116
    %v118 = vrot.slane %v109, %v117
    %v119 = vlaneseq
    %v120 = vshrl.u32 %v119, 7
    %v121 = vsub.s32 2, %v120
    %v122 = vrot.slane %v109, %v121
    %v123 = vlaneseq
    %v124 = vshrl.u32 %v123, 7
    %v125 = vsub.s32 3, %v124
    %v126 = vrot.slane %v109, %v125
    %v133 = vunpack.c.l.b16 %v43
    %v134 = vunpack.c.h.b16 %v43
    %v135 = vunpack.c.l.b16 %v44
    %v136 = vunpack.c.h.b16 %v44
    %v137 = vpack.c.b16 %v135, %v133
    %v138 = vpack.c.b16 %v136, %v134
    %v205 = vunpack.c.l.b16 %v45
    %v206 = vunpack.c.h.b16 %v45
    %v207 = vunpack.c.l.b16 %v46
    %v208 = vunpack.c.h.b16 %v46
    %v209 = vunpack.c.l.b16 %v47
    %v210 = vunpack.c.h.b16 %v47
    %v211 = vunpack.c.l.b16 %v48
    %v212 = vunpack.c.h.b16 %v48
    %v213 = vunpack.c.l.b16 %v49
    %v214 = vunpack.c.h.b16 %v49
    %v215 = vunpack.c.l.b16 %v50
    %v216 = vunpack.c.h.b16 %v50
    %v217 = vunpack.c.l.b16 %v51
    %v218 = vunpack.c.h.b16 %v51
    %v219 = vunpack.c.l.b16 %v52
    %v220 = vunpack.c.h.b16 %v52
    %v221 = vunpack.c.l.b16 %v53
    %v222 = vunpack.c.h.b16 %v53
    %v223 = vunpack.c.l.b16 %v54
    %v224 = vunpack.c.h.b16 %v54
    %v225 = vunpack.c.l.b16 %v55
    %v226 = vunpack.c.h.b16 %v55
    %v227 = vunpack.c.l.b16 %v56
    %v228 = vunpack.c.h.b16 %v56
    %v229 = vunpack.c.l.b16 %v57
    %v230 = vunpack.c.h.b16 %v57
    %v231 = vunpack.c.l.b16 %v58
    %v232 = vunpack.c.h.b16 %v58
    %v233 = vunpack.c.l.b16 %v59
    %v234 = vunpack.c.h.b16 %v59
    %v235 = vunpack.c.l.b16 %v60
    %v236 = vunpack.c.h.b16 %v60
    %v237 = vunpack.c.l.b16 %v61
    %v238 = vunpack.c.h.b16 %v61
    %v239 = vunpack.c.l.b16 %v62
    %v240 = vunpack.c.h.b16 %v62
    %v241 = vunpack.c.l.b16 %v63
    %v242 = vunpack.c.h.b16 %v63
    %v243 = vunpack.c.l.b16 %v64
    %v244 = vunpack.c.h.b16 %v64
    %v245 = vunpack.c.l.b16 %v65
    %v246 = vunpack.c.h.b16 %v65
    %v247 = vunpack.c.l.b16 %v66
    %v248 = vunpack.c.h.b16 %v66
    %v249 = vunpack.c.l.b16 %v67
    %v250 = vunpack.c.h.b16 %v67
    %v251 = vunpack.c.l.b16 %v68
    %v252 = vunpack.c.h.b16 %v68
    %v253 = vunpack.c.l.b16 %v69
    %v254 = vunpack.c.h.b16 %v69
    %v255 = vunpack.c.l.b16 %v70
    %v256 = vunpack.c.h.b16 %v70
    %v257 = vunpack.c.l.b16 %v71
    %v258 = vunpack.c.h.b16 %v71
    %v259 = vunpack.c.l.b16 %v72
    %v260 = vunpack.c.h.b16 %v72
    %v261 = vunpack.c.l.b16 %v73
    %v262 = vunpack.c.h.b16 %v73
    %v263 = vunpack.c.l.b16 %v74
    %v264 = vunpack.c.h.b16 %v74
    %v265 = vunpack.c.l.b16 %v75
    %v266 = vunpack.c.h.b16 %v75
    %v267 = vunpack.c.l.b16 %v76
    %v268 = vunpack.c.h.b16 %v76
    %v269 = vunpack.c.l.b16 %v77
    %v270 = vunpack.c.h.b16 %v77
    %v271 = vunpack.c.l.b16 %v78
    %v272 = vunpack.c.h.b16 %v78
    %v273 = vunpack.c.l.b16 %v79
    %v274 = vunpack.c.h.b16 %v79
    %v275 = vunpack.c.l.b16 %v80
    %v276 = vunpack.c.h.b16 %v80
    %v277 = vunpack.c.l.b16 %v81
    %v278 = vunpack.c.h.b16 %v81
    %v279 = vunpack.c.l.b16 %v82
    %v280 = vunpack.c.h.b16 %v82
    %v281 = vunpack.c.l.b16 %v83
    %v282 = vunpack.c.h.b16 %v83
    %v283 = vunpack.c.l.b16 %v84
    %v284 = vunpack.c.h.b16 %v84
    %v285 = vunpack.c.l.b16 %v85
    %v286 = vunpack.c.h.b16 %v85
    %v287 = vunpack.c.l.b16 %v86
    %v288 = vunpack.c.h.b16 %v86
    %v289 = vunpack.c.l.b16 %v87
    %v290 = vunpack.c.h.b16 %v87
    %v291 = vunpack.c.l.b16 %v88
    %v292 = vunpack.c.h.b16 %v88
    %v293 = vunpack.c.l.b16 %v89
    %v294 = vunpack.c.h.b16 %v89
    %v295 = vunpack.c.l.b16 %v90
    %v296 = vunpack.c.h.b16 %v90
    %v297 = vunpack.c.l.b16 %v91
    %v298 = vunpack.c.h.b16 %v91
    %v299 = vunpack.c.l.b16 %v92
    %v300 = vunpack.c.h.b16 %v92
    %v301 = vunpack.c.l.b16 %v93
    %v302 = vunpack.c.h.b16 %v93
    %v303 = vunpack.c.l.b16 %v94
    %v304 = vunpack.c.h.b16 %v94
    %v305 = vunpack.c.l.b16 %v95
    %v306 = vunpack.c.h.b16 %v95
    %v307 = vunpack.c.l.b16 %v96
    %v308 = vunpack.c.h.b16 %v96
    %v309 = vunpack.c.l.b16 %v97
    %v310 = vunpack.c.h.b16 %v97
    %v311 = vunpack.c.l.b16 %v98
    %v312 = vunpack.c.h.b16 %v98
    %v313 = vunpack.c.l.b16 %v99
    %v314 = vunpack.c.h.b16 %v99
    %v315 = vunpack.c.l.b16 %v100
    %v316 = vunpack.c.h.b16 %v100
    %v317 = vunpack.c.l.b16 %v101
    %v318 = vunpack.c.h.b16 %v101
    %v319 = vunpack.c.l.b16 %v102
    %v320 = vunpack.c.h.b16 %v102
    %v321 = vunpack.c.l.b16 %v103
    %v322 = vunpack.c.h.b16 %v103
    %v323 = vunpack.c.l.b16 %v104
    %v324 = vunpack.c.h.b16 %v104
    %v325 = vunpack.c.l.b16 %v105
    %v326 = vunpack.c.h.b16 %v105
    %v327 = vunpack.c.l.b16 %v106
    %v328 = vunpack.c.h.b16 %v106
    %v329 = vunpack.c.l.b16 %v107
    %v330 = vunpack.c.h.b16 %v107
    %v331 = vunpack.c.l.b16 %v108
    %v332 = vunpack.c.h.b16 %v108
    %v333 = vpack.c.b16 %v209, %v205
    %v334 = vpack.c.b16 %v210, %v206
    %v335 = vpack.c.b16 %v211, %v207
    %v336 = vpack.c.b16 %v212, %v208
    %v337 = vpack.c.b16 %v217, %v213
    %v338 = vpack.c.b16 %v218, %v214
    %v339 = vpack.c.b16 %v219, %v215
    %v340 = vpack.c.b16 %v220, %v216
    %v341 = vpack.c.b16 %v225, %v221
    %v342 = vpack.c.b16 %v226, %v222
    %v343 = vpack.c.b16 %v227, %v223
    %v344 = vpack.c.b16 %v228, %v224
    %v345 = vpack.c.b16 %v233, %v229
    %v346 = vpack.c.b16 %v234, %v230
    %v347 = vpack.c.b16 %v235, %v231
    %v348 = vpack.c.b16 %v236, %v232
    %v349 = vpack.c.b16 %v241, %v237
    %v350 = vpack.c.b16 %v242, %v238
    %v351 = vpack.c.b16 %v243, %v239
    %v352 = vpack.c.b16 %v244, %v240
    %v353 = vpack.c.b16 %v249, %v245
    %v354 = vpack.c.b16 %v250, %v246
    %v355 = vpack.c.b16 %v251, %v247
    %v356 = vpack.c.b16 %v252, %v248
    %v357 = vpack.c.b16 %v257, %v253
    %v358 = vpack.c.b16 %v258, %v254
    %v359 = vpack.c.b16 %v259, %v255
    %v360 = vpack.c.b16 %v260, %v256
    %v361 = vpack.c.b16 %v265, %v261
    %v362 = vpack.c.b16 %v266, %v262
    %v363 = vpack.c.b16 %v267, %v263
    %v364 = vpack.c.b16 %v268, %v264
    %v365 = vpack.c.b16 %v273, %v269
    %v366 = vpack.c.b16 %v274, %v270
    %v367 = vpack.c.b16 %v275, %v271
    %v368 = vpack.c.b16 %v276, %v272
    %v369 = vpack.c.b16 %v281, %v277
    %v370 = vpack.c.b16 %v282, %v278
    %v371 = vpack.c.b16 %v283, %v279
    %v372 = vpack.c.b16 %v284, %v280
    %v373 = vpack.c.b16 %v289, %v285
    %v374 = vpack.c.b16 %v290, %v286
    %v375 = vpack.c.b16 %v291, %v287
    %v376 = vpack.c.b16 %v292, %v288
    %v377 = vpack.c.b16 %v297, %v293
    %v378 = vpack.c.b16 %v298, %v294
    %v379 = vpack.c.b16 %v299, %v295
    %v380 = vpack.c.b16 %v300, %v296
    %v381 = vpack.c.b16 %v305, %v301
    %v382 = vpack.c.b16 %v306, %v302
    %v383 = vpack.c.b16 %v307, %v303
    %v384 = vpack.c.b16 %v308, %v304
    %v385 = vpack.c.b16 %v313, %v309
    %v386 = vpack.c.b16 %v314, %v310
    %v387 = vpack.c.b16 %v315, %v311
    %v388 = vpack.c.b16 %v316, %v312
    %v389 = vpack.c.b16 %v321, %v317
    %v390 = vpack.c.b16 %v322, %v318
    %v391 = vpack.c.b16 %v323, %v319
    %v392 = vpack.c.b16 %v324, %v320
    %v393 = vpack.c.b16 %v329, %v325
    %v394 = vpack.c.b16 %v330, %v326
    %v395 = vpack.c.b16 %v331, %v327
    %v396 = vpack.c.b16 %v332, %v328
    %461 = vmatprep.subr.bf16.mxu0 %v334
    %462 = vmatpush1.bf16.msra.mxu0 %v333
    %463 = vmatprep.subr.bf16.mxu0 %v338
    %464 = vmatpush1.bf16.msra.mxu0 %v337
    %465 = vmatprep.subr.bf16.mxu0 %v342
    %466 = vmatpush1.bf16.msra.mxu0 %v341
    %467 = vmatprep.subr.bf16.mxu0 %v346
    %468 = vmatpush1.bf16.msra.mxu0 %v345
    %469 = vmatprep.subr.bf16.mxu0 %v350
    %470 = vmatpush1.bf16.msra.mxu0 %v349
    %471 = vmatprep.subr.bf16.mxu0 %v354
    %472 = vmatpush1.bf16.msra.mxu0 %v353
    %473 = vmatprep.subr.bf16.mxu0 %v358
    %474 = vmatpush1.bf16.msra.mxu0 %v357
    %475 = vmatprep.subr.bf16.mxu0 %v362
    %476 = vmatpush1.bf16.msra.mxu0 %v361
    %477 = vmatprep.subr.bf16.mxu0 %v366
    %478 = vmatpush1.bf16.msra.mxu0 %v365
    %479 = vmatprep.subr.bf16.mxu0 %v370
    %480 = vmatpush1.bf16.msra.mxu0 %v369
    %481 = vmatprep.subr.bf16.mxu0 %v374
    %482 = vmatpush1.bf16.msra.mxu0 %v373
    %483 = vmatprep.subr.bf16.mxu0 %v378
    %484 = vmatpush1.bf16.msra.mxu0 %v377
    %485 = vmatprep.subr.bf16.mxu0 %v382
    %486 = vmatpush1.bf16.msra.mxu0 %v381
    %487 = vmatprep.subr.bf16.mxu0 %v386
    %488 = vmatpush1.bf16.msra.mxu0 %v385
    %489 = vmatprep.subr.bf16.mxu0 %v390
    %490 = vmatpush1.bf16.msra.mxu0 %v389
    %491 = vmatprep.subr.bf16.mxu0 %v394
    %492 = vmatpush1.bf16.msra.mxu0 %v393
    %493 = vmatprep.mubr.bf16.mxu0 %v138
    %494 = vmatmul.mubr.bf16.gmra.mrb[0].mxu0 %v137
    %v495 = vpop.f32.mrb[0].mxu0
    %v496 = vadd.f32 %v114, %v495
    %v497 = vpop.f32.mrb[0].mxu0
    %v498 = vadd.f32 %v118, %v497
    %v499 = vpop.f32.mrb[0].mxu0
    %v500 = vadd.f32 %v114, %v499
    %v501 = vpop.f32.mrb[0].mxu0
    %v502 = vadd.f32 %v118, %v501
    %503 = vdwg.mxu0
    %504 = vmatprep.subr.bf16.mxu0 %v336
    %505 = vmatpush1.bf16.msra.mxu0 %v335
    %506 = vmatprep.subr.bf16.mxu0 %v340
    %507 = vmatpush1.bf16.msra.mxu0 %v339
    %508 = vmatprep.subr.bf16.mxu0 %v344
    %509 = vmatpush1.bf16.msra.mxu0 %v343
    %510 = vmatprep.subr.bf16.mxu0 %v348
    %511 = vmatpush1.bf16.msra.mxu0 %v347
    %512 = vmatprep.subr.bf16.mxu0 %v352
    %513 = vmatpush1.bf16.msra.mxu0 %v351
    %514 = vmatprep.subr.bf16.mxu0 %v356
    %515 = vmatpush1.bf16.msra.mxu0 %v355
    %516 = vmatprep.subr.bf16.mxu0 %v360
    %517 = vmatpush1.bf16.msra.mxu0 %v359
    %518 = vmatprep.subr.bf16.mxu0 %v364
    %519 = vmatpush1.bf16.msra.mxu0 %v363
    %520 = vmatprep.subr.bf16.mxu0 %v368
    %521 = vmatpush1.bf16.msra.mxu0 %v367
    %522 = vmatprep.subr.bf16.mxu0 %v372
    %523 = vmatpush1.bf16.msra.mxu0 %v371
    %524 = vmatprep.subr.bf16.mxu0 %v376
    %525 = vmatpush1.bf16.msra.mxu0 %v375
    %526 = vmatprep.subr.bf16.mxu0 %v380
    %527 = vmatpush1.bf16.msra.mxu0 %v379
    %528 = vmatprep.subr.bf16.mxu0 %v384
    %529 = vmatpush1.bf16.msra.mxu0 %v383
    %530 = vmatprep.subr.bf16.mxu0 %v388
    %531 = vmatpush1.bf16.msra.mxu0 %v387
    %532 = vmatprep.subr.bf16.mxu0 %v392
    %533 = vmatpush1.bf16.msra.mxu0 %v391
    %534 = vmatprep.subr.bf16.mxu0 %v396
    %535 = vmatpush1.bf16.msra.mxu0 %v395
    %536 = vmatprep.mubr.bf16.mxu0 %v138
    %537 = vmatmul.mubr.bf16.gmra.mrb[0].mxu0 %v137
    %v538 = vpop.f32.mrb[0].mxu0
    %v539 = vadd.f32 %v122, %v538
    %v540 = vpop.f32.mrb[0].mxu0
    %v541 = vadd.f32 %v126, %v540
    %v542 = vpop.f32.mrb[0].mxu0
    %v543 = vadd.f32 %v122, %v542
    %v544 = vpop.f32.mrb[0].mxu0
    %v545 = vadd.f32 %v126, %v544
    %546 = vdwg.mxu0
    %v547 = vmax.f32 %v496, 0.0
    %v548 = vmax.f32 %v498, 0.0
    %v549 = vmax.f32 %v539, 0.0
    %v550 = vmax.f32 %v541, 0.0
    %v551 = vmax.f32 %v500, 0.0
    %v552 = vmax.f32 %v502, 0.0
    %v553 = vmax.f32 %v543, 0.0
    %v554 = vmax.f32 %v545, 0.0
    %v555 = vpack.c.bf16 %v551, %v547
    %v556 = vpack.c.bf16 %v552, %v548
    %v557 = vpack.c.bf16 %v553, %v549
    %v558 = vpack.c.bf16 %v554, %v550
    %v563 = vunpack.c.l.b16 %v555
    %v564 = vunpack.c.l.b16 %v556
    %v565 = vunpack.c.l.b16 %v557
    %v566 = vunpack.c.l.b16 %v558
    %v567 = vunpack.c.h.b16 %v555
    %v568 = vunpack.c.h.b16 %v556
    %v569 = vunpack.c.h.b16 %v557
    %v570 = vunpack.c.h.b16 %v558
    %v571 = vpack.c.b16 %v564, %v563
    %v572 = vpack.c.b16 %v566, %v565
    %v573 = vpack.c.b16 %v568, %v567
    %v574 = vpack.c.b16 %v570, %v569
    %579 = vst [vmem:[#allocation7] sm:$0xff] %v571
    %580 = vst [vmem:[#allocation7 + $0x8] sm:$0xff] %v572
    %581 = vst [vmem:[#allocation7 + $0x10] sm:$0xff] %v573
    %582 = vst [vmem:[#allocation7 + $0x18] sm:$0xff] %v574
    // Predicated region
    $region22: #{tpu_custom_call.1} parent=1 // pred_check
      _
    $region23: #{tpu_custom_call.1} parent=1 // pred_check_branch
      %584 = sbr.rel (0) target = $region25
    $region24: #{tpu_custom_call.1} parent=1 // pred_region
      %s586 = ssub.s32 512, 512
      %587 = vsyncadd [#allocation4], %s586
      %s588 = sshll.u32 [#allocation7], 4
      %s589 = int_to_ptr.vmem [resolvable:$true] %s588
      %594 = dma.vmem_to_hbm [thread:$0]  %s589, 512, %s3, [#allocation4], 256, 256, 16
    $region25: #{tpu_custom_call.1} parent=1 // pred_fallthru
      _
    // Predicated region
    $region26: #{tpu_custom_call.1} parent=1 // pred_check
      _
    $region27: #{tpu_custom_call.1} parent=1 // pred_check_branch
      %596 = sbr.rel (0) target = $region29
    $region28: #{tpu_custom_call.1} parent=1 // pred_region
      %597 = dma.done [#allocation4], 512
    $region29: #{tpu_custom_call.1} parent=1 // pred_fallthru
      _
    %598 = vsyncpa [#allocation3], 1
    %599 = vsyncpa [#allocation6], 1
    %600 = vsyncpa [#allocation4], 1

</llo_original>
